<compile_context>
chip_gen: v5e
topology: v5e:2x2
jax: 0.10.0
libtpu: 0.0.40
codegen_flags: <defaults>
</compile_context>

<pallas_src>
import numpy as np

import jax
import jax.numpy as jnp
from jax.experimental import pallas as pl
from jax.experimental.pallas import tpu as pltpu

_H = 32  # spatial size implied by the module's Linear(l4 * 6 * 6, 512)


# ------------------------------- the kernel --------------------------------


def _cifarnet_kernel(
    x_ref, w1_ref, b1_ref, w2_ref, b2_ref, w3_ref, b3_ref, w4_ref, b4_ref,
    wfc1_hbm, bfc1_ref, wout_ref, bout_ref,          # inputs
    o_ref,                                           # output (1, n_out)
    s_pad1, s_c1, s_c2, s_hp1, s_pad3, s_c3, s_c4, s_hp2, s_p2,
    s_wfc1, fc1_sem,                                 # scratch
):
    f32 = jnp.float32

    # Prefetch the fc1 weight (largest single HBM transfer) so its DMA overlaps
    # all four conv stages instead of sitting on the critical path.
    fc1_copy = pltpu.make_async_copy(wfc1_hbm, s_wfc1, fc1_sem.at[0])
    fc1_copy.start()

    l2 = s_c2.shape[1] // 30          # conv2 output channels
    l4 = s_c4.shape[1] // 13          # conv4 output channels

    def conv3x3_relu(src_ref, w_ref, b_ref, dst_ref):
        # src rows = dst rows + 2 (vertical halo rows already zero-padded).
        # The banded weight folds the 3 horizontal taps + horizontal zero
        # padding, so each tap-row i is one lane-dense MXU matmul.
        oh = dst_ref.shape[0]
        acc = jnp.dot(src_ref[0:oh, :], w_ref[0].astype(f32),
                      preferred_element_type=f32)
        for i in (1, 2):
            acc = acc + jnp.dot(src_ref[i:i + oh, :], w_ref[i].astype(f32),
                                preferred_element_type=f32)
        dst_ref[...] = jnp.maximum(acc + b_ref[...], 0.0)

    def maxpool2x2(src_ref, hp_ref, dst_ref, row0, c):
        # 2x2 / stride-2 max pool with floor; rows = h, cols = (w, c).
        oh = hp_ref.shape[0]
        for h in range(oh):                              # pool along H
            hp_ref[h:h + 1, :] = jnp.maximum(src_ref[2 * h:2 * h + 1, :],
                                             src_ref[2 * h + 1:2 * h + 2, :])
        ow = (src_ref.shape[1] // c) // 2
        for w in range(ow):                              # pool along W groups
            lo = 2 * w * c
            dst_ref[row0:row0 + oh, w * c:(w + 1) * c] = jnp.maximum(
                hp_ref[:, lo:lo + c], hp_ref[:, lo + c:lo + 2 * c])

    # Stage the input into the vertically zero-padded conv1 buffer.
    s_pad1[...] = jnp.zeros_like(s_pad1)
    s_pad1[1:1 + x_ref.shape[0], :] = x_ref[...]

    conv3x3_relu(s_pad1, w1_ref, b1_ref, s_c1)       # 32x32 x l1
    conv3x3_relu(s_c1, w2_ref, b2_ref, s_c2)         # 30x30 x l2

    s_pad3[...] = jnp.zeros_like(s_pad3)
    maxpool2x2(s_c2, s_hp1, s_pad3, 1, l2)           # 15x15 x l2 (padded buf)

    conv3x3_relu(s_pad3, w3_ref, b3_ref, s_c3)       # 15x15 x l3
    conv3x3_relu(s_c3, w4_ref, b4_ref, s_c4)         # 13x13 x l4

    maxpool2x2(s_c4, s_hp2, s_p2, 0, l4)             # 6x6 x l4, (h | w, c)

    # fc1 + ReLU + output layer.  fc1 weight rows were permuted at init so row
    # h*6*l4 + w*l4 + c matches torch.flatten's (c, h, w) ordering.
    fc1_copy.wait()
    kblk = s_p2.shape[1]                             # 6 * l4
    acc = bfc1_ref[...]
    for h in range(6):
        acc = acc + jnp.dot(s_p2[h:h + 1, :],
                            s_wfc1[h * kblk:(h + 1) * kblk, :].astype(f32),
                            preferred_element_type=f32)
    hidden = jnp.maximum(acc, 0.0)
    o_ref[...] = (jnp.dot(hidden, wout_ref[...].astype(f32),
                          preferred_element_type=f32) + bout_ref[...])


# ------------------------- parameter initialization -------------------------


def init_params(key, in_channels, out_channels, l1, l2, l3, l4):
    """Random params in PyTorch layouts (Conv2d: (Cout,Cin,3,3), Linear: (out,in))."""
    def conv_p(k, ic, oc, ks=3):
        k1, k2 = jax.random.split(k)
        bound = 1.0 / (ic * ks * ks) ** 0.5
        w = jax.random.uniform(k1, (oc, ic, ks, ks), jnp.float32, -bound, bound)
        b = jax.random.uniform(k2, (oc,), jnp.float32, -bound, bound)
        return w, b

    def lin_p(k, fi, fo):
        k1, k2 = jax.random.split(k)
        bound = 1.0 / fi ** 0.5
        w = jax.random.uniform(k1, (fo, fi), jnp.float32, -bound, bound)
        b = jax.random.uniform(k2, (fo,), jnp.float32, -bound, bound)
        return w, b

    keys = jax.random.split(key, 6)
    return dict(
        conv1=conv_p(keys[0], in_channels, l1),
        conv2=conv_p(keys[1], l1, l2),
        conv3=conv_p(keys[2], l2, l3),
        conv4=conv_p(keys[3], l3, l4),
        fc1=lin_p(keys[4], l4 * 6 * 6, 512),
        out=lin_p(keys[5], 512, out_channels),
    )


def _band_weight(k_oihw, in_w, pad):
    """Lower a 3x3/stride-1 conv to 3 banded matrices M_i with, for rows = h
    and columns = (w, c) flattened,  out_row[h] = sum_i in_row[h+i] @ M_i.
    Horizontal padding is folded into the band; vertical padding is provided
    by zero rows of the input buffer."""
    k = np.asarray(k_oihw, np.float32)
    cout, cin, kh, kw = k.shape
    out_w = in_w + 2 * pad - kw + 1
    m = np.zeros((kh, in_w * cin, out_w * cout), np.float32)
    for i in range(kh):
        for j in range(kw):
            blk = k[:, :, i, j].T                                 # (cin, cout)
            for w in range(out_w):
                s = w + j - pad
                if 0 <= s < in_w:
                    m[i, s * cin:(s + 1) * cin, w * cout:(w + 1) * cout] = blk
    return m


def prepare_kernel_params(params):
    """Build the bf16 banded conv weights, tiled f32 bias rows and permuted
    fc weights consumed by the fused kernel (done once, outside the kernel)."""
    conv_plan = (("conv1", _H, 1), ("conv2", _H, 0),
                 ("conv3", 15, 1), ("conv4", 15, 0))
    kp = {}
    for n, (name, in_w, pad) in enumerate(conv_plan, start=1):
        w, b = params[name]
        out_w = in_w + 2 * pad - 2
        kp[f"w{n}"] = jnp.asarray(_band_weight(w, in_w, pad), jnp.bfloat16)
        kp[f"b{n}"] = jnp.asarray(np.tile(np.asarray(b, np.float32), out_w)[None, :])

    l4 = int(params["conv4"][0].shape[0])
    wfc1, bfc1 = params["fc1"]
    nh = int(wfc1.shape[0])
    # torch.flatten of (C, 6, 6) is (c, h, w)-ordered; kernel layout is (h, w, c).
    wfc1 = np.asarray(wfc1, np.float32).reshape(nh, l4, 6, 6)
    wfc1 = wfc1.transpose(2, 3, 1, 0).reshape(6 * 6 * l4, nh)
    kp["wfc1"] = jnp.asarray(wfc1, jnp.bfloat16)
    kp["bfc1"] = jnp.asarray(np.asarray(bfc1, np.float32)[None, :])

    wout, bout = params["out"]
    kp["wout"] = jnp.asarray(np.asarray(wout, np.float32).T, jnp.bfloat16)
    kp["bout"] = jnp.asarray(np.asarray(bout, np.float32)[None, :])
    return kp


# --------------------------------- forward ----------------------------------


def _compiler_params():
    cls = getattr(pltpu, "CompilerParams", None) or getattr(pltpu, "TPUCompilerParams")
    return cls(dimension_semantics=("parallel",),        # v7x: 2 TCs share batch
               vmem_limit_bytes=32 * 1024 * 1024)         # safe on v5e/v6e/v7x


def cifarnet_forward(kp, x_nchw):
    """Fused CifarNet forward: a single pallas_call for the whole network."""
    n, cin, hh, ww = x_nchw.shape
    assert (hh, ww) == (_H, _H), "Linear(l4*6*6, 512) implies a 32x32 input"
    l1 = kp["b1"].shape[1] // _H
    l2 = kp["b2"].shape[1] // 30
    l3 = kp["b3"].shape[1] // 15
    l4 = kp["b4"].shape[1] // 13
    nh = kp["bfc1"].shape[1]
    n_out = kp["bout"].shape[1]

    # NCHW -> rows = h, cols = (w, c): the only XLA-side data movement.
    x2 = jnp.transpose(x_nchw, (0, 2, 3, 1)).reshape(n, _H, _H * cin)
    x2 = x2.astype(jnp.float32)

    def full(a):
        nd = a.ndim
        return pl.BlockSpec(a.shape, lambda i, nd=nd: (0,) * nd)

    out = pl.pallas_call(
        _cifarnet_kernel,
        out_shape=jax.ShapeDtypeStruct((n, 1, n_out), jnp.float32),
        grid=(n,),                                       # one batch item / step
        in_specs=[
            pl.BlockSpec((None, _H, _H * cin), lambda i: (i, 0, 0)),
            full(kp["w1"]), full(kp["b1"]),
            full(kp["w2"]), full(kp["b2"]),
            full(kp["w3"]), full(kp["b3"]),
            full(kp["w4"]), full(kp["b4"]),
            pl.BlockSpec(memory_space=pl.ANY),           # fc1 weight: manual DMA
            full(kp["bfc1"]),
            full(kp["wout"]), full(kp["bout"]),
        ],
        out_specs=pl.BlockSpec((None, 1, n_out), lambda i: (i, 0, 0)),
        scratch_shapes=[
            pltpu.VMEM((_H + 2, _H * cin), jnp.float32),  # conv1 in (v-padded)
            pltpu.VMEM((_H, _H * l1), jnp.float32),       # conv1 out
            pltpu.VMEM((30, 30 * l2), jnp.float32),       # conv2 out
            pltpu.VMEM((15, 30 * l2), jnp.float32),       # pool1, H-pooled
            pltpu.VMEM((17, 15 * l2), jnp.float32),       # conv3 in (v-padded)
            pltpu.VMEM((15, 15 * l3), jnp.float32),       # conv3 out
            pltpu.VMEM((13, 13 * l4), jnp.float32),       # conv4 out
            pltpu.VMEM((6, 13 * l4), jnp.float32),        # pool2, H-pooled
            pltpu.VMEM((6, 6 * l4), jnp.float32),         # pool2 out (h|w,c)
            pltpu.VMEM((6 * 6 * l4, nh), jnp.bfloat16),   # fc1 weight landing
            pltpu.SemaphoreType.DMA((1,)),
        ],
        compiler_params=_compiler_params(),
    )(x2, kp["w1"], kp["b1"], kp["w2"], kp["b2"], kp["w3"], kp["b3"],
      kp["w4"], kp["b4"], kp["wfc1"], kp["bfc1"], kp["wout"], kp["bout"])
    return out.reshape(n, n_out)


# ----------------------------------- main -----------------------------------

if __name__ == "__main__":
    key = jax.random.PRNGKey(0)
    k_params, k_x = jax.random.split(key)

    in_channels, out_channels = 3, 10
    l1, l2, l3, l4 = 8, 8, 16, 16
    batch = 2

    params = init_params(k_params, in_channels, out_channels, l1, l2, l3, l4)
    kp = prepare_kernel_params(params)

    x = jax.random.normal(k_x, (batch, in_channels, _H, _H), jnp.float32)

    fwd = jax.jit(cifarnet_forward)
    out = jax.block_until_ready(fwd(kp, x))

    assert out.shape == (batch, out_channels), out.shape
    assert out.dtype == jnp.float32
    assert bool(jnp.all(jnp.isfinite(out)))
    print("KERNEL_OK")
</pallas_src>

<mosaic_0001>
module attributes {stable_mosaic.version = 11 : i64} {
  func.func @_cifarnet_kernel(%arg0: i32, %arg1: memref<1x32x96xf32, #tpu.memory_space<vmem>>, %arg2: memref<3x96x256xbf16, #tpu.memory_space<vmem>>, %arg3: memref<1x256xf32, #tpu.memory_space<vmem>>, %arg4: memref<3x256x240xbf16, #tpu.memory_space<vmem>>, %arg5: memref<1x240xf32, #tpu.memory_space<vmem>>, %arg6: memref<3x120x240xbf16, #tpu.memory_space<vmem>>, %arg7: memref<1x240xf32, #tpu.memory_space<vmem>>, %arg8: memref<3x240x208xbf16, #tpu.memory_space<vmem>>, %arg9: memref<1x208xf32, #tpu.memory_space<vmem>>, %arg10: memref<576x512xbf16, #tpu.memory_space<any>>, %arg11: memref<1x512xf32, #tpu.memory_space<vmem>>, %arg12: memref<512x10xbf16, #tpu.memory_space<vmem>>, %arg13: memref<1x10xf32, #tpu.memory_space<vmem>>, %arg14: memref<1x1x10xf32, #tpu.memory_space<vmem>>, %arg15: memref<34x96xf32, #tpu.memory_space<vmem>>, %arg16: memref<32x256xf32, #tpu.memory_space<vmem>>, %arg17: memref<30x240xf32, #tpu.memory_space<vmem>>, %arg18: memref<15x240xf32, #tpu.memory_space<vmem>>, %arg19: memref<17x120xf32, #tpu.memory_space<vmem>>, %arg20: memref<15x240xf32, #tpu.memory_space<vmem>>, %arg21: memref<13x208xf32, #tpu.memory_space<vmem>>, %arg22: memref<6x208xf32, #tpu.memory_space<vmem>>, %arg23: memref<6x96xf32, #tpu.memory_space<vmem>>, %arg24: memref<576x512xbf16, #tpu.memory_space<vmem>>, %arg25: memref<1x!tpu.dma_semaphore, #tpu.memory_space<semaphore_mem>>) attributes {dimension_semantics = [#tpu.dimension_semantics<parallel>], iteration_bounds = array<i64: 2>, scalar_prefetch = 0 : i64, scratch_operands = 11 : i64, tpu.core_type = #tpu.core_type<tc>, window_params = [{transform_indices = @transform_0, window_bounds = array<i64: 1, 32, 96>}, {pipeline_mode = #tpu.pipeline_mode<synchronous>, transform_indices = @transform_1, window_bounds = array<i64: 3, 96, 256>}, {pipeline_mode = #tpu.pipeline_mode<synchronous>, transform_indices = @transform_2, window_bounds = array<i64: 1, 256>}, {pipeline_mode = #tpu.pipeline_mode<synchronous>, transform_indices = @transform_3, window_bounds = array<i64: 3, 256, 240>}, {pipeline_mode = #tpu.pipeline_mode<synchronous>, transform_indices = @transform_4, window_bounds = array<i64: 1, 240>}, {pipeline_mode = #tpu.pipeline_mode<synchronous>, transform_indices = @transform_5, window_bounds = array<i64: 3, 120, 240>}, {pipeline_mode = #tpu.pipeline_mode<synchronous>, transform_indices = @transform_6, window_bounds = array<i64: 1, 240>}, {pipeline_mode = #tpu.pipeline_mode<synchronous>, transform_indices = @transform_7, window_bounds = array<i64: 3, 240, 208>}, {pipeline_mode = #tpu.pipeline_mode<synchronous>, transform_indices = @transform_8, window_bounds = array<i64: 1, 208>}, {}, {pipeline_mode = #tpu.pipeline_mode<synchronous>, transform_indices = @transform_10, window_bounds = array<i64: 1, 512>}, {pipeline_mode = #tpu.pipeline_mode<synchronous>, transform_indices = @transform_11, window_bounds = array<i64: 512, 10>}, {pipeline_mode = #tpu.pipeline_mode<synchronous>, transform_indices = @transform_12, window_bounds = array<i64: 1, 10>}, {transform_indices = @transform_13, window_bounds = array<i64: 1, 1, 10>}]} {
    %c0_i32 = arith.constant 0 : i32
    %0 = tpu.memref_slice %arg25[%c0_i32] : memref<1x!tpu.dma_semaphore, #tpu.memory_space<semaphore_mem>> -> memref<1x!tpu.dma_semaphore, #tpu.memory_space<semaphore_mem>>
    %1 = tpu.memref_squeeze %0 : memref<1x!tpu.dma_semaphore, #tpu.memory_space<semaphore_mem>> -> memref<!tpu.dma_semaphore, #tpu.memory_space<semaphore_mem>>
    tpu.enqueue_dma source(%arg10 : memref<576x512xbf16, #tpu.memory_space<any>>) target(%arg24 : memref<576x512xbf16, #tpu.memory_space<vmem>>) target_semaphore(%1 : memref<!tpu.dma_semaphore, #tpu.memory_space<semaphore_mem>>)
    %cst = arith.constant 0.000000e+00 : f32
    %2 = vector.broadcast %cst : f32 to vector<34x96xf32>
    %c0 = arith.constant 0 : index
    %c0_0 = arith.constant 0 : index
    %3 = vector.load %arg15[%c0, %c0_0] : memref<34x96xf32, #tpu.memory_space<vmem>>, vector<34x96xf32>
    tpu.vector_store %arg15[%c0, %c0_0], %2 {strides = array<i32>} : memref<34x96xf32, #tpu.memory_space<vmem>>, vector<34x96xf32>,
    %c0_1 = arith.constant 0 : index
    %c0_2 = arith.constant 0 : index
    %c0_3 = arith.constant 0 : index
    %4 = vector.load %arg1[%c0_1, %c0_2, %c0_3] : memref<1x32x96xf32, #tpu.memory_space<vmem>>, vector<1x32x96xf32>
    %5 = vector.shape_cast %4 : vector<1x32x96xf32> to vector<32x96xf32>
    %c1 = arith.constant 1 : index
    %c0_4 = arith.constant 0 : index
    %6 = vector.load %arg15[%c1, %c0_4] : memref<34x96xf32, #tpu.memory_space<vmem>>, vector<32x96xf32>
    tpu.vector_store %arg15[%c1, %c0_4], %5 {strides = array<i32>} : memref<34x96xf32, #tpu.memory_space<vmem>>, vector<32x96xf32>,
    %c0_5 = arith.constant 0 : index
    %c0_6 = arith.constant 0 : index
    %7 = vector.load %arg15[%c0_5, %c0_6] : memref<34x96xf32, #tpu.memory_space<vmem>>, vector<32x96xf32>
    %c0_7 = arith.constant 0 : index
    %c0_8 = arith.constant 0 : index
    %c0_9 = arith.constant 0 : index
    %8 = vector.load %arg2[%c0_7, %c0_8, %c0_9] : memref<3x96x256xbf16, #tpu.memory_space<vmem>>, vector<1x96x256xbf16>
    %9 = vector.shape_cast %8 : vector<1x96x256xbf16> to vector<96x256xbf16>
    %10 = arith.extf %9 : vector<96x256xbf16> to vector<96x256xf32>
    %cst_10 = arith.constant dense<0.000000e+00> : vector<32x256xf32>
    %11 = tpu.matmul %7, %10, %cst_10 {dimension_numbers = #tpu.dot_dimension_numbers<[1], [0], [0], [1], [0, 0, 1, 1], [], []>} : vector<32x96xf32>, vector<96x256xf32>, vector<32x256xf32> -> vector<32x256xf32>
    %c1_11 = arith.constant 1 : index
    %c0_12 = arith.constant 0 : index
    %12 = vector.load %arg15[%c1_11, %c0_12] : memref<34x96xf32, #tpu.memory_space<vmem>>, vector<32x96xf32>
    %c1_13 = arith.constant 1 : index
    %c0_14 = arith.constant 0 : index
    %c0_15 = arith.constant 0 : index
    %13 = vector.load %arg2[%c1_13, %c0_14, %c0_15] : memref<3x96x256xbf16, #tpu.memory_space<vmem>>, vector<1x96x256xbf16>
    %14 = vector.shape_cast %13 : vector<1x96x256xbf16> to vector<96x256xbf16>
    %15 = arith.extf %14 : vector<96x256xbf16> to vector<96x256xf32>
    %cst_16 = arith.constant dense<0.000000e+00> : vector<32x256xf32>
    %16 = tpu.matmul %12, %15, %cst_16 {dimension_numbers = #tpu.dot_dimension_numbers<[1], [0], [0], [1], [0, 0, 1, 1], [], []>} : vector<32x96xf32>, vector<96x256xf32>, vector<32x256xf32> -> vector<32x256xf32>
    %17 = arith.addf %11, %16 : vector<32x256xf32>
    %c2 = arith.constant 2 : index
    %c0_17 = arith.constant 0 : index
    %18 = vector.load %arg15[%c2, %c0_17] : memref<34x96xf32, #tpu.memory_space<vmem>>, vector<32x96xf32>
    %c2_18 = arith.constant 2 : index
    %c0_19 = arith.constant 0 : index
    %c0_20 = arith.constant 0 : index
    %19 = vector.load %arg2[%c2_18, %c0_19, %c0_20] : memref<3x96x256xbf16, #tpu.memory_space<vmem>>, vector<1x96x256xbf16>
    %20 = vector.shape_cast %19 : vector<1x96x256xbf16> to vector<96x256xbf16>
    %21 = arith.extf %20 : vector<96x256xbf16> to vector<96x256xf32>
    %cst_21 = arith.constant dense<0.000000e+00> : vector<32x256xf32>
    %22 = tpu.matmul %18, %21, %cst_21 {dimension_numbers = #tpu.dot_dimension_numbers<[1], [0], [0], [1], [0, 0, 1, 1], [], []>} : vector<32x96xf32>, vector<96x256xf32>, vector<32x256xf32> -> vector<32x256xf32>
    %23 = arith.addf %17, %22 : vector<32x256xf32>
    %c0_22 = arith.constant 0 : index
    %c0_23 = arith.constant 0 : index
    %24 = vector.load %arg3[%c0_22, %c0_23] : memref<1x256xf32, #tpu.memory_space<vmem>>, vector<1x256xf32>
    %25 = vector.broadcast %24 : vector<1x256xf32> to vector<32x256xf32>
    %26 = arith.addf %23, %25 : vector<32x256xf32>
    %cst_24 = arith.constant 0.000000e+00 : f32
    %27 = vector.broadcast %cst_24 : f32 to vector<32x256xf32>
    %28 = arith.maximumf %26, %27 : vector<32x256xf32>
    %c0_25 = arith.constant 0 : index
    %c0_26 = arith.constant 0 : index
    %29 = vector.load %arg16[%c0_25, %c0_26] : memref<32x256xf32, #tpu.memory_space<vmem>>, vector<32x256xf32>
    tpu.vector_store %arg16[%c0_25, %c0_26], %28 {strides = array<i32>} : memref<32x256xf32, #tpu.memory_space<vmem>>, vector<32x256xf32>,
    %c0_27 = arith.constant 0 : index
    %c0_28 = arith.constant 0 : index
    %30 = vector.load %arg16[%c0_27, %c0_28] : memref<32x256xf32, #tpu.memory_space<vmem>>, vector<30x256xf32>
    %c0_29 = arith.constant 0 : index
    %c0_30 = arith.constant 0 : index
    %c0_31 = arith.constant 0 : index
    %31 = vector.load %arg4[%c0_29, %c0_30, %c0_31] : memref<3x256x240xbf16, #tpu.memory_space<vmem>>, vector<1x256x240xbf16>
    %32 = vector.shape_cast %31 : vector<1x256x240xbf16> to vector<256x240xbf16>
    %33 = arith.extf %32 : vector<256x240xbf16> to vector<256x240xf32>
    %cst_32 = arith.constant dense<0.000000e+00> : vector<30x240xf32>
    %34 = tpu.matmul %30, %33, %cst_32 {dimension_numbers = #tpu.dot_dimension_numbers<[1], [0], [0], [1], [0, 0, 1, 1], [], []>} : vector<30x256xf32>, vector<256x240xf32>, vector<30x240xf32> -> vector<30x240xf32>
    %c1_33 = arith.constant 1 : index
    %c0_34 = arith.constant 0 : index
    %35 = vector.load %arg16[%c1_33, %c0_34] : memref<32x256xf32, #tpu.memory_space<vmem>>, vector<30x256xf32>
    %c1_35 = arith.constant 1 : index
    %c0_36 = arith.constant 0 : index
    %c0_37 = arith.constant 0 : index
    %36 = vector.load %arg4[%c1_35, %c0_36, %c0_37] : memref<3x256x240xbf16, #tpu.memory_space<vmem>>, vector<1x256x240xbf16>
    %37 = vector.shape_cast %36 : vector<1x256x240xbf16> to vector<256x240xbf16>
    %38 = arith.extf %37 : vector<256x240xbf16> to vector<256x240xf32>
    %cst_38 = arith.constant dense<0.000000e+00> : vector<30x240xf32>
    %39 = tpu.matmul %35, %38, %cst_38 {dimension_numbers = #tpu.dot_dimension_numbers<[1], [0], [0], [1], [0, 0, 1, 1], [], []>} : vector<30x256xf32>, vector<256x240xf32>, vector<30x240xf32> -> vector<30x240xf32>
    %40 = arith.addf %34, %39 : vector<30x240xf32>
    %c2_39 = arith.constant 2 : index
    %c0_40 = arith.constant 0 : index
    %41 = vector.load %arg16[%c2_39, %c0_40] : memref<32x256xf32, #tpu.memory_space<vmem>>, vector<30x256xf32>
    %c2_41 = arith.constant 2 : index
    %c0_42 = arith.constant 0 : index
    %c0_43 = arith.constant 0 : index
    %42 = vector.load %arg4[%c2_41, %c0_42, %c0_43] : memref<3x256x240xbf16, #tpu.memory_space<vmem>>, vector<1x256x240xbf16>
    %43 = vector.shape_cast %42 : vector<1x256x240xbf16> to vector<256x240xbf16>
    %44 = arith.extf %43 : vector<256x240xbf16> to vector<256x240xf32>
    %cst_44 = arith.constant dense<0.000000e+00> : vector<30x240xf32>
    %45 = tpu.matmul %41, %44, %cst_44 {dimension_numbers = #tpu.dot_dimension_numbers<[1], [0], [0], [1], [0, 0, 1, 1], [], []>} : vector<30x256xf32>, vector<256x240xf32>, vector<30x240xf32> -> vector<30x240xf32>
    %46 = arith.addf %40, %45 : vector<30x240xf32>
    %c0_45 = arith.constant 0 : index
    %c0_46 = arith.constant 0 : index
    %47 = vector.load %arg5[%c0_45, %c0_46] : memref<1x240xf32, #tpu.memory_space<vmem>>, vector<1x240xf32>
    %48 = vector.broadcast %47 : vector<1x240xf32> to vector<30x240xf32>
    %49 = arith.addf %46, %48 : vector<30x240xf32>
    %cst_47 = arith.constant 0.000000e+00 : f32
    %50 = vector.broadcast %cst_47 : f32 to vector<30x240xf32>
    %51 = arith.maximumf %49, %50 : vector<30x240xf32>
    %c0_48 = arith.constant 0 : index
    %c0_49 = arith.constant 0 : index
    %52 = vector.load %arg17[%c0_48, %c0_49] : memref<30x240xf32, #tpu.memory_space<vmem>>, vector<30x240xf32>
    tpu.vector_store %arg17[%c0_48, %c0_49], %51 {strides = array<i32>} : memref<30x240xf32, #tpu.memory_space<vmem>>, vector<30x240xf32>,
    %cst_50 = arith.constant 0.000000e+00 : f32
    %53 = vector.broadcast %cst_50 : f32 to vector<17x120xf32>
    %c0_51 = arith.constant 0 : index
    %c0_52 = arith.constant 0 : index
    %54 = vector.load %arg19[%c0_51, %c0_52] : memref<17x120xf32, #tpu.memory_space<vmem>>, vector<17x120xf32>
    tpu.vector_store %arg19[%c0_51, %c0_52], %53 {strides = array<i32>} : memref<17x120xf32, #tpu.memory_space<vmem>>, vector<17x120xf32>,
    %c0_53 = arith.constant 0 : index
    %c0_54 = arith.constant 0 : index
    %55 = vector.load %arg17[%c0_53, %c0_54] : memref<30x240xf32, #tpu.memory_space<vmem>>, vector<1x240xf32>
    %c1_55 = arith.constant 1 : index
    %c0_56 = arith.constant 0 : index
    %56 = vector.load %arg17[%c1_55, %c0_56] : memref<30x240xf32, #tpu.memory_space<vmem>>, vector<1x240xf32>
    %57 = arith.maximumf %55, %56 : vector<1x240xf32>
    %c0_57 = arith.constant 0 : index
    %c0_58 = arith.constant 0 : index
    %58 = vector.load %arg18[%c0_57, %c0_58] : memref<15x240xf32, #tpu.memory_space<vmem>>, vector<1x240xf32>
    tpu.vector_store %arg18[%c0_57, %c0_58], %57 {strides = array<i32>} : memref<15x240xf32, #tpu.memory_space<vmem>>, vector<1x240xf32>,
    %c2_59 = arith.constant 2 : index
    %c0_60 = arith.constant 0 : index
    %59 = vector.load %arg17[%c2_59, %c0_60] : memref<30x240xf32, #tpu.memory_space<vmem>>, vector<1x240xf32>
    %c3 = arith.constant 3 : index
    %c0_61 = arith.constant 0 : index
    %60 = vector.load %arg17[%c3, %c0_61] : memref<30x240xf32, #tpu.memory_space<vmem>>, vector<1x240xf32>
    %61 = arith.maximumf %59, %60 : vector<1x240xf32>
    %c1_62 = arith.constant 1 : index
    %c0_63 = arith.constant 0 : index
    %62 = vector.load %arg18[%c1_62, %c0_63] : memref<15x240xf32, #tpu.memory_space<vmem>>, vector<1x240xf32>
    tpu.vector_store %arg18[%c1_62, %c0_63], %61 {strides = array<i32>} : memref<15x240xf32, #tpu.memory_space<vmem>>, vector<1x240xf32>,
    %c4 = arith.constant 4 : index
    %c0_64 = arith.constant 0 : index
    %63 = vector.load %arg17[%c4, %c0_64] : memref<30x240xf32, #tpu.memory_space<vmem>>, vector<1x240xf32>
    %c5 = arith.constant 5 : index
    %c0_65 = arith.constant 0 : index
    %64 = vector.load %arg17[%c5, %c0_65] : memref<30x240xf32, #tpu.memory_space<vmem>>, vector<1x240xf32>
    %65 = arith.maximumf %63, %64 : vector<1x240xf32>
    %c2_66 = arith.constant 2 : index
    %c0_67 = arith.constant 0 : index
    %66 = vector.load %arg18[%c2_66, %c0_67] : memref<15x240xf32, #tpu.memory_space<vmem>>, vector<1x240xf32>
    tpu.vector_store %arg18[%c2_66, %c0_67], %65 {strides = array<i32>} : memref<15x240xf32, #tpu.memory_space<vmem>>, vector<1x240xf32>,
    %c6 = arith.constant 6 : index
    %c0_68 = arith.constant 0 : index
    %67 = vector.load %arg17[%c6, %c0_68] : memref<30x240xf32, #tpu.memory_space<vmem>>, vector<1x240xf32>
    %c7 = arith.constant 7 : index
    %c0_69 = arith.constant 0 : index
    %68 = vector.load %arg17[%c7, %c0_69] : memref<30x240xf32, #tpu.memory_space<vmem>>, vector<1x240xf32>
    %69 = arith.maximumf %67, %68 : vector<1x240xf32>
    %c3_70 = arith.constant 3 : index
    %c0_71 = arith.constant 0 : index
    %70 = vector.load %arg18[%c3_70, %c0_71] : memref<15x240xf32, #tpu.memory_space<vmem>>, vector<1x240xf32>
    tpu.vector_store %arg18[%c3_70, %c0_71], %69 {strides = array<i32>} : memref<15x240xf32, #tpu.memory_space<vmem>>, vector<1x240xf32>,
    %c8 = arith.constant 8 : index
    %c0_72 = arith.constant 0 : index
    %71 = vector.load %arg17[%c8, %c0_72] : memref<30x240xf32, #tpu.memory_space<vmem>>, vector<1x240xf32>
    %c9 = arith.constant 9 : index
    %c0_73 = arith.constant 0 : index
    %72 = vector.load %arg17[%c9, %c0_73] : memref<30x240xf32, #tpu.memory_space<vmem>>, vector<1x240xf32>
    %73 = arith.maximumf %71, %72 : vector<1x240xf32>
    %c4_74 = arith.constant 4 : index
    %c0_75 = arith.constant 0 : index
    %74 = vector.load %arg18[%c4_74, %c0_75] : memref<15x240xf32, #tpu.memory_space<vmem>>, vector<1x240xf32>
    tpu.vector_store %arg18[%c4_74, %c0_75], %73 {strides = array<i32>} : memref<15x240xf32, #tpu.memory_space<vmem>>, vector<1x240xf32>,
    %c10 = arith.constant 10 : index
    %c0_76 = arith.constant 0 : index
    %75 = vector.load %arg17[%c10, %c0_76] : memref<30x240xf32, #tpu.memory_space<vmem>>, vector<1x240xf32>
    %c11 = arith.constant 11 : index
    %c0_77 = arith.constant 0 : index
    %76 = vector.load %arg17[%c11, %c0_77] : memref<30x240xf32, #tpu.memory_space<vmem>>, vector<1x240xf32>
    %77 = arith.maximumf %75, %76 : vector<1x240xf32>
    %c5_78 = arith.constant 5 : index
    %c0_79 = arith.constant 0 : index
    %78 = vector.load %arg18[%c5_78, %c0_79] : memref<15x240xf32, #tpu.memory_space<vmem>>, vector<1x240xf32>
    tpu.vector_store %arg18[%c5_78, %c0_79], %77 {strides = array<i32>} : memref<15x240xf32, #tpu.memory_space<vmem>>, vector<1x240xf32>,
    %c12 = arith.constant 12 : index
    %c0_80 = arith.constant 0 : index
    %79 = vector.load %arg17[%c12, %c0_80] : memref<30x240xf32, #tpu.memory_space<vmem>>, vector<1x240xf32>
    %c13 = arith.constant 13 : index
    %c0_81 = arith.constant 0 : index
    %80 = vector.load %arg17[%c13, %c0_81] : memref<30x240xf32, #tpu.memory_space<vmem>>, vector<1x240xf32>
    %81 = arith.maximumf %79, %80 : vector<1x240xf32>
    %c6_82 = arith.constant 6 : index
    %c0_83 = arith.constant 0 : index
    %82 = vector.load %arg18[%c6_82, %c0_83] : memref<15x240xf32, #tpu.memory_space<vmem>>, vector<1x240xf32>
    tpu.vector_store %arg18[%c6_82, %c0_83], %81 {strides = array<i32>} : memref<15x240xf32, #tpu.memory_space<vmem>>, vector<1x240xf32>,
    %c14 = arith.constant 14 : index
    %c0_84 = arith.constant 0 : index
    %83 = vector.load %arg17[%c14, %c0_84] : memref<30x240xf32, #tpu.memory_space<vmem>>, vector<1x240xf32>
    %c15 = arith.constant 15 : index
    %c0_85 = arith.constant 0 : index
    %84 = vector.load %arg17[%c15, %c0_85] : memref<30x240xf32, #tpu.memory_space<vmem>>, vector<1x240xf32>
    %85 = arith.maximumf %83, %84 : vector<1x240xf32>
    %c7_86 = arith.constant 7 : index
    %c0_87 = arith.constant 0 : index
    %86 = vector.load %arg18[%c7_86, %c0_87] : memref<15x240xf32, #tpu.memory_space<vmem>>, vector<1x240xf32>
    tpu.vector_store %arg18[%c7_86, %c0_87], %85 {strides = array<i32>} : memref<15x240xf32, #tpu.memory_space<vmem>>, vector<1x240xf32>,
    %c16 = arith.constant 16 : index
    %c0_88 = arith.constant 0 : index
    %87 = vector.load %arg17[%c16, %c0_88] : memref<30x240xf32, #tpu.memory_space<vmem>>, vector<1x240xf32>
    %c17 = arith.constant 17 : index
    %c0_89 = arith.constant 0 : index
    %88 = vector.load %arg17[%c17, %c0_89] : memref<30x240xf32, #tpu.memory_space<vmem>>, vector<1x240xf32>
    %89 = arith.maximumf %87, %88 : vector<1x240xf32>
    %c8_90 = arith.constant 8 : index
    %c0_91 = arith.constant 0 : index
    %90 = vector.load %arg18[%c8_90, %c0_91] : memref<15x240xf32, #tpu.memory_space<vmem>>, vector<1x240xf32>
    tpu.vector_store %arg18[%c8_90, %c0_91], %89 {strides = array<i32>} : memref<15x240xf32, #tpu.memory_space<vmem>>, vector<1x240xf32>,
    %c18 = arith.constant 18 : index
    %c0_92 = arith.constant 0 : index
    %91 = vector.load %arg17[%c18, %c0_92] : memref<30x240xf32, #tpu.memory_space<vmem>>, vector<1x240xf32>
    %c19 = arith.constant 19 : index
    %c0_93 = arith.constant 0 : index
    %92 = vector.load %arg17[%c19, %c0_93] : memref<30x240xf32, #tpu.memory_space<vmem>>, vector<1x240xf32>
    %93 = arith.maximumf %91, %92 : vector<1x240xf32>
    %c9_94 = arith.constant 9 : index
    %c0_95 = arith.constant 0 : index
    %94 = vector.load %arg18[%c9_94, %c0_95] : memref<15x240xf32, #tpu.memory_space<vmem>>, vector<1x240xf32>
    tpu.vector_store %arg18[%c9_94, %c0_95], %93 {strides = array<i32>} : memref<15x240xf32, #tpu.memory_space<vmem>>, vector<1x240xf32>,
    %c20 = arith.constant 20 : index
    %c0_96 = arith.constant 0 : index
    %95 = vector.load %arg17[%c20, %c0_96] : memref<30x240xf32, #tpu.memory_space<vmem>>, vector<1x240xf32>
    %c21 = arith.constant 21 : index
    %c0_97 = arith.constant 0 : index
    %96 = vector.load %arg17[%c21, %c0_97] : memref<30x240xf32, #tpu.memory_space<vmem>>, vector<1x240xf32>
    %97 = arith.maximumf %95, %96 : vector<1x240xf32>
    %c10_98 = arith.constant 10 : index
    %c0_99 = arith.constant 0 : index
    %98 = vector.load %arg18[%c10_98, %c0_99] : memref<15x240xf32, #tpu.memory_space<vmem>>, vector<1x240xf32>
    tpu.vector_store %arg18[%c10_98, %c0_99], %97 {strides = array<i32>} : memref<15x240xf32, #tpu.memory_space<vmem>>, vector<1x240xf32>,
    %c22 = arith.constant 22 : index
    %c0_100 = arith.constant 0 : index
    %99 = vector.load %arg17[%c22, %c0_100] : memref<30x240xf32, #tpu.memory_space<vmem>>, vector<1x240xf32>
    %c23 = arith.constant 23 : index
    %c0_101 = arith.constant 0 : index
    %100 = vector.load %arg17[%c23, %c0_101] : memref<30x240xf32, #tpu.memory_space<vmem>>, vector<1x240xf32>
    %101 = arith.maximumf %99, %100 : vector<1x240xf32>
    %c11_102 = arith.constant 11 : index
    %c0_103 = arith.constant 0 : index
    %102 = vector.load %arg18[%c11_102, %c0_103] : memref<15x240xf32, #tpu.memory_space<vmem>>, vector<1x240xf32>
    tpu.vector_store %arg18[%c11_102, %c0_103], %101 {strides = array<i32>} : memref<15x240xf32, #tpu.memory_space<vmem>>, vector<1x240xf32>,
    %c24 = arith.constant 24 : index
    %c0_104 = arith.constant 0 : index
    %103 = vector.load %arg17[%c24, %c0_104] : memref<30x240xf32, #tpu.memory_space<vmem>>, vector<1x240xf32>
    %c25 = arith.constant 25 : index
    %c0_105 = arith.constant 0 : index
    %104 = vector.load %arg17[%c25, %c0_105] : memref<30x240xf32, #tpu.memory_space<vmem>>, vector<1x240xf32>
    %105 = arith.maximumf %103, %104 : vector<1x240xf32>
    %c12_106 = arith.constant 12 : index
    %c0_107 = arith.constant 0 : index
    %106 = vector.load %arg18[%c12_106, %c0_107] : memref<15x240xf32, #tpu.memory_space<vmem>>, vector<1x240xf32>
    tpu.vector_store %arg18[%c12_106, %c0_107], %105 {strides = array<i32>} : memref<15x240xf32, #tpu.memory_space<vmem>>, vector<1x240xf32>,
    %c26 = arith.constant 26 : index
    %c0_108 = arith.constant 0 : index
    %107 = vector.load %arg17[%c26, %c0_108] : memref<30x240xf32, #tpu.memory_space<vmem>>, vector<1x240xf32>
    %c27 = arith.constant 27 : index
    %c0_109 = arith.constant 0 : index
    %108 = vector.load %arg17[%c27, %c0_109] : memref<30x240xf32, #tpu.memory_space<vmem>>, vector<1x240xf32>
    %109 = arith.maximumf %107, %108 : vector<1x240xf32>
    %c13_110 = arith.constant 13 : index
    %c0_111 = arith.constant 0 : index
    %110 = vector.load %arg18[%c13_110, %c0_111] : memref<15x240xf32, #tpu.memory_space<vmem>>, vector<1x240xf32>
    tpu.vector_store %arg18[%c13_110, %c0_111], %109 {strides = array<i32>} : memref<15x240xf32, #tpu.memory_space<vmem>>, vector<1x240xf32>,
    %c28 = arith.constant 28 : index
    %c0_112 = arith.constant 0 : index
    %111 = vector.load %arg17[%c28, %c0_112] : memref<30x240xf32, #tpu.memory_space<vmem>>, vector<1x240xf32>
    %c29 = arith.constant 29 : index
    %c0_113 = arith.constant 0 : index
    %112 = vector.load %arg17[%c29, %c0_113] : memref<30x240xf32, #tpu.memory_space<vmem>>, vector<1x240xf32>
    %113 = arith.maximumf %111, %112 : vector<1x240xf32>
    %c14_114 = arith.constant 14 : index
    %c0_115 = arith.constant 0 : index
    %114 = vector.load %arg18[%c14_114, %c0_115] : memref<15x240xf32, #tpu.memory_space<vmem>>, vector<1x240xf32>
    tpu.vector_store %arg18[%c14_114, %c0_115], %113 {strides = array<i32>} : memref<15x240xf32, #tpu.memory_space<vmem>>, vector<1x240xf32>,
    %c0_116 = arith.constant 0 : index
    %c0_117 = arith.constant 0 : index
    %115 = vector.load %arg18[%c0_116, %c0_117] : memref<15x240xf32, #tpu.memory_space<vmem>>, vector<15x8xf32>
    %c0_118 = arith.constant 0 : index
    %c8_119 = arith.constant 8 : index
    %116 = vector.load %arg18[%c0_118, %c8_119] : memref<15x240xf32, #tpu.memory_space<vmem>>, vector<15x8xf32>
    %117 = arith.maximumf %115, %116 : vector<15x8xf32>
    %c1_120 = arith.constant 1 : index
    %c0_121 = arith.constant 0 : index
    %118 = vector.load %arg19[%c1_120, %c0_121] : memref<17x120xf32, #tpu.memory_space<vmem>>, vector<15x8xf32>
    tpu.vector_store %arg19[%c1_120, %c0_121], %117 {strides = array<i32>} : memref<17x120xf32, #tpu.memory_space<vmem>>, vector<15x8xf32>,
    %c0_122 = arith.constant 0 : index
    %c16_123 = arith.constant 16 : index
    %119 = vector.load %arg18[%c0_122, %c16_123] : memref<15x240xf32, #tpu.memory_space<vmem>>, vector<15x8xf32>
    %c0_124 = arith.constant 0 : index
    %c24_125 = arith.constant 24 : index
    %120 = vector.load %arg18[%c0_124, %c24_125] : memref<15x240xf32, #tpu.memory_space<vmem>>, vector<15x8xf32>
    %121 = arith.maximumf %119, %120 : vector<15x8xf32>
    %c1_126 = arith.constant 1 : index
    %c8_127 = arith.constant 8 : index
    %122 = vector.load %arg19[%c1_126, %c8_127] : memref<17x120xf32, #tpu.memory_space<vmem>>, vector<15x8xf32>
    tpu.vector_store %arg19[%c1_126, %c8_127], %121 {strides = array<i32>} : memref<17x120xf32, #tpu.memory_space<vmem>>, vector<15x8xf32>,
    %c0_128 = arith.constant 0 : index
    %c32 = arith.constant 32 : index
    %123 = vector.load %arg18[%c0_128, %c32] : memref<15x240xf32, #tpu.memory_space<vmem>>, vector<15x8xf32>
    %c0_129 = arith.constant 0 : index
    %c40 = arith.constant 40 : index
    %124 = vector.load %arg18[%c0_129, %c40] : memref<15x240xf32, #tpu.memory_space<vmem>>, vector<15x8xf32>
    %125 = arith.maximumf %123, %124 : vector<15x8xf32>
    %c1_130 = arith.constant 1 : index
    %c16_131 = arith.constant 16 : index
    %126 = vector.load %arg19[%c1_130, %c16_131] : memref<17x120xf32, #tpu.memory_space<vmem>>, vector<15x8xf32>
    tpu.vector_store %arg19[%c1_130, %c16_131], %125 {strides = array<i32>} : memref<17x120xf32, #tpu.memory_space<vmem>>, vector<15x8xf32>,
    %c0_132 = arith.constant 0 : index
    %c48 = arith.constant 48 : index
    %127 = vector.load %arg18[%c0_132, %c48] : memref<15x240xf32, #tpu.memory_space<vmem>>, vector<15x8xf32>
    %c0_133 = arith.constant 0 : index
    %c56 = arith.constant 56 : index
    %128 = vector.load %arg18[%c0_133, %c56] : memref<15x240xf32, #tpu.memory_space<vmem>>, vector<15x8xf32>
    %129 = arith.maximumf %127, %128 : vector<15x8xf32>
    %c1_134 = arith.constant 1 : index
    %c24_135 = arith.constant 24 : index
    %130 = vector.load %arg19[%c1_134, %c24_135] : memref<17x120xf32, #tpu.memory_space<vmem>>, vector<15x8xf32>
    tpu.vector_store %arg19[%c1_134, %c24_135], %129 {strides = array<i32>} : memref<17x120xf32, #tpu.memory_space<vmem>>, vector<15x8xf32>,
    %c0_136 = arith.constant 0 : index
    %c64 = arith.constant 64 : index
    %131 = vector.load %arg18[%c0_136, %c64] : memref<15x240xf32, #tpu.memory_space<vmem>>, vector<15x8xf32>
    %c0_137 = arith.constant 0 : index
    %c72 = arith.constant 72 : index
    %132 = vector.load %arg18[%c0_137, %c72] : memref<15x240xf32, #tpu.memory_space<vmem>>, vector<15x8xf32>
    %133 = arith.maximumf %131, %132 : vector<15x8xf32>
    %c1_138 = arith.constant 1 : index
    %c32_139 = arith.constant 32 : index
    %134 = vector.load %arg19[%c1_138, %c32_139] : memref<17x120xf32, #tpu.memory_space<vmem>>, vector<15x8xf32>
    tpu.vector_store %arg19[%c1_138, %c32_139], %133 {strides = array<i32>} : memref<17x120xf32, #tpu.memory_space<vmem>>, vector<15x8xf32>,
    %c0_140 = arith.constant 0 : index
    %c80 = arith.constant 80 : index
    %135 = vector.load %arg18[%c0_140, %c80] : memref<15x240xf32, #tpu.memory_space<vmem>>, vector<15x8xf32>
    %c0_141 = arith.constant 0 : index
    %c88 = arith.constant 88 : index
    %136 = vector.load %arg18[%c0_141, %c88] : memref<15x240xf32, #tpu.memory_space<vmem>>, vector<15x8xf32>
    %137 = arith.maximumf %135, %136 : vector<15x8xf32>
    %c1_142 = arith.constant 1 : index
    %c40_143 = arith.constant 40 : index
    %138 = vector.load %arg19[%c1_142, %c40_143] : memref<17x120xf32, #tpu.memory_space<vmem>>, vector<15x8xf32>
    tpu.vector_store %arg19[%c1_142, %c40_143], %137 {strides = array<i32>} : memref<17x120xf32, #tpu.memory_space<vmem>>, vector<15x8xf32>,
    %c0_144 = arith.constant 0 : index
    %c96 = arith.constant 96 : index
    %139 = vector.load %arg18[%c0_144, %c96] : memref<15x240xf32, #tpu.memory_space<vmem>>, vector<15x8xf32>
    %c0_145 = arith.constant 0 : index
    %c104 = arith.constant 104 : index
    %140 = vector.load %arg18[%c0_145, %c104] : memref<15x240xf32, #tpu.memory_space<vmem>>, vector<15x8xf32>
    %141 = arith.maximumf %139, %140 : vector<15x8xf32>
    %c1_146 = arith.constant 1 : index
    %c48_147 = arith.constant 48 : index
    %142 = vector.load %arg19[%c1_146, %c48_147] : memref<17x120xf32, #tpu.memory_space<vmem>>, vector<15x8xf32>
    tpu.vector_store %arg19[%c1_146, %c48_147], %141 {strides = array<i32>} : memref<17x120xf32, #tpu.memory_space<vmem>>, vector<15x8xf32>,
    %c0_148 = arith.constant 0 : index
    %c112 = arith.constant 112 : index
    %143 = vector.load %arg18[%c0_148, %c112] : memref<15x240xf32, #tpu.memory_space<vmem>>, vector<15x8xf32>
    %c0_149 = arith.constant 0 : index
    %c120 = arith.constant 120 : index
    %144 = vector.load %arg18[%c0_149, %c120] : memref<15x240xf32, #tpu.memory_space<vmem>>, vector<15x8xf32>
    %145 = arith.maximumf %143, %144 : vector<15x8xf32>
    %c1_150 = arith.constant 1 : index
    %c56_151 = arith.constant 56 : index
    %146 = vector.load %arg19[%c1_150, %c56_151] : memref<17x120xf32, #tpu.memory_space<vmem>>, vector<15x8xf32>
    tpu.vector_store %arg19[%c1_150, %c56_151], %145 {strides = array<i32>} : memref<17x120xf32, #tpu.memory_space<vmem>>, vector<15x8xf32>,
    %c0_152 = arith.constant 0 : index
    %c128 = arith.constant 128 : index
    %147 = vector.load %arg18[%c0_152, %c128] : memref<15x240xf32, #tpu.memory_space<vmem>>, vector<15x8xf32>
    %c0_153 = arith.constant 0 : index
    %c136 = arith.constant 136 : index
    %148 = vector.load %arg18[%c0_153, %c136] : memref<15x240xf32, #tpu.memory_space<vmem>>, vector<15x8xf32>
    %149 = arith.maximumf %147, %148 : vector<15x8xf32>
    %c1_154 = arith.constant 1 : index
    %c64_155 = arith.constant 64 : index
    %150 = vector.load %arg19[%c1_154, %c64_155] : memref<17x120xf32, #tpu.memory_space<vmem>>, vector<15x8xf32>
    tpu.vector_store %arg19[%c1_154, %c64_155], %149 {strides = array<i32>} : memref<17x120xf32, #tpu.memory_space<vmem>>, vector<15x8xf32>,
    %c0_156 = arith.constant 0 : index
    %c144 = arith.constant 144 : index
    %151 = vector.load %arg18[%c0_156, %c144] : memref<15x240xf32, #tpu.memory_space<vmem>>, vector<15x8xf32>
    %c0_157 = arith.constant 0 : index
    %c152 = arith.constant 152 : index
    %152 = vector.load %arg18[%c0_157, %c152] : memref<15x240xf32, #tpu.memory_space<vmem>>, vector<15x8xf32>
    %153 = arith.maximumf %151, %152 : vector<15x8xf32>
    %c1_158 = arith.constant 1 : index
    %c72_159 = arith.constant 72 : index
    %154 = vector.load %arg19[%c1_158, %c72_159] : memref<17x120xf32, #tpu.memory_space<vmem>>, vector<15x8xf32>
    tpu.vector_store %arg19[%c1_158, %c72_159], %153 {strides = array<i32>} : memref<17x120xf32, #tpu.memory_space<vmem>>, vector<15x8xf32>,
    %c0_160 = arith.constant 0 : index
    %c160 = arith.constant 160 : index
    %155 = vector.load %arg18[%c0_160, %c160] : memref<15x240xf32, #tpu.memory_space<vmem>>, vector<15x8xf32>
    %c0_161 = arith.constant 0 : index
    %c168 = arith.constant 168 : index
    %156 = vector.load %arg18[%c0_161, %c168] : memref<15x240xf32, #tpu.memory_space<vmem>>, vector<15x8xf32>
    %157 = arith.maximumf %155, %156 : vector<15x8xf32>
    %c1_162 = arith.constant 1 : index
    %c80_163 = arith.constant 80 : index
    %158 = vector.load %arg19[%c1_162, %c80_163] : memref<17x120xf32, #tpu.memory_space<vmem>>, vector<15x8xf32>
    tpu.vector_store %arg19[%c1_162, %c80_163], %157 {strides = array<i32>} : memref<17x120xf32, #tpu.memory_space<vmem>>, vector<15x8xf32>,
    %c0_164 = arith.constant 0 : index
    %c176 = arith.constant 176 : index
    %159 = vector.load %arg18[%c0_164, %c176] : memref<15x240xf32, #tpu.memory_space<vmem>>, vector<15x8xf32>
    %c0_165 = arith.constant 0 : index
    %c184 = arith.constant 184 : index
    %160 = vector.load %arg18[%c0_165, %c184] : memref<15x240xf32, #tpu.memory_space<vmem>>, vector<15x8xf32>
    %161 = arith.maximumf %159, %160 : vector<15x8xf32>
    %c1_166 = arith.constant 1 : index
    %c88_167 = arith.constant 88 : index
    %162 = vector.load %arg19[%c1_166, %c88_167] : memref<17x120xf32, #tpu.memory_space<vmem>>, vector<15x8xf32>
    tpu.vector_store %arg19[%c1_166, %c88_167], %161 {strides = array<i32>} : memref<17x120xf32, #tpu.memory_space<vmem>>, vector<15x8xf32>,
    %c0_168 = arith.constant 0 : index
    %c192 = arith.constant 192 : index
    %163 = vector.load %arg18[%c0_168, %c192] : memref<15x240xf32, #tpu.memory_space<vmem>>, vector<15x8xf32>
    %c0_169 = arith.constant 0 : index
    %c200 = arith.constant 200 : index
    %164 = vector.load %arg18[%c0_169, %c200] : memref<15x240xf32, #tpu.memory_space<vmem>>, vector<15x8xf32>
    %165 = arith.maximumf %163, %164 : vector<15x8xf32>
    %c1_170 = arith.constant 1 : index
    %c96_171 = arith.constant 96 : index
    %166 = vector.load %arg19[%c1_170, %c96_171] : memref<17x120xf32, #tpu.memory_space<vmem>>, vector<15x8xf32>
    tpu.vector_store %arg19[%c1_170, %c96_171], %165 {strides = array<i32>} : memref<17x120xf32, #tpu.memory_space<vmem>>, vector<15x8xf32>,
    %c0_172 = arith.constant 0 : index
    %c208 = arith.constant 208 : index
    %167 = vector.load %arg18[%c0_172, %c208] : memref<15x240xf32, #tpu.memory_space<vmem>>, vector<15x8xf32>
    %c0_173 = arith.constant 0 : index
    %c216 = arith.constant 216 : index
    %168 = vector.load %arg18[%c0_173, %c216] : memref<15x240xf32, #tpu.memory_space<vmem>>, vector<15x8xf32>
    %169 = arith.maximumf %167, %168 : vector<15x8xf32>
    %c1_174 = arith.constant 1 : index
    %c104_175 = arith.constant 104 : index
    %170 = vector.load %arg19[%c1_174, %c104_175] : memref<17x120xf32, #tpu.memory_space<vmem>>, vector<15x8xf32>
    tpu.vector_store %arg19[%c1_174, %c104_175], %169 {strides = array<i32>} : memref<17x120xf32, #tpu.memory_space<vmem>>, vector<15x8xf32>,
    %c0_176 = arith.constant 0 : index
    %c224 = arith.constant 224 : index
    %171 = vector.load %arg18[%c0_176, %c224] : memref<15x240xf32, #tpu.memory_space<vmem>>, vector<15x8xf32>
    %c0_177 = arith.constant 0 : index
    %c232 = arith.constant 232 : index
    %172 = vector.load %arg18[%c0_177, %c232] : memref<15x240xf32, #tpu.memory_space<vmem>>, vector<15x8xf32>
    %173 = arith.maximumf %171, %172 : vector<15x8xf32>
    %c1_178 = arith.constant 1 : index
    %c112_179 = arith.constant 112 : index
    %174 = vector.load %arg19[%c1_178, %c112_179] : memref<17x120xf32, #tpu.memory_space<vmem>>, vector<15x8xf32>
    tpu.vector_store %arg19[%c1_178, %c112_179], %173 {strides = array<i32>} : memref<17x120xf32, #tpu.memory_space<vmem>>, vector<15x8xf32>,
    %c0_180 = arith.constant 0 : index
    %c0_181 = arith.constant 0 : index
    %175 = vector.load %arg19[%c0_180, %c0_181] : memref<17x120xf32, #tpu.memory_space<vmem>>, vector<15x120xf32>
    %c0_182 = arith.constant 0 : index
    %c0_183 = arith.constant 0 : index
    %c0_184 = arith.constant 0 : index
    %176 = vector.load %arg6[%c0_182, %c0_183, %c0_184] : memref<3x120x240xbf16, #tpu.memory_space<vmem>>, vector<1x120x240xbf16>
    %177 = vector.shape_cast %176 : vector<1x120x240xbf16> to vector<120x240xbf16>
    %178 = arith.extf %177 : vector<120x240xbf16> to vector<120x240xf32>
    %cst_185 = arith.constant dense<0.000000e+00> : vector<15x240xf32>
    %179 = tpu.matmul %175, %178, %cst_185 {dimension_numbers = #tpu.dot_dimension_numbers<[1], [0], [0], [1], [0, 0, 1, 1], [], []>} : vector<15x120xf32>, vector<120x240xf32>, vector<15x240xf32> -> vector<15x240xf32>
    %c1_186 = arith.constant 1 : index
    %c0_187 = arith.constant 0 : index
    %180 = vector.load %arg19[%c1_186, %c0_187] : memref<17x120xf32, #tpu.memory_space<vmem>>, vector<15x120xf32>
    %c1_188 = arith.constant 1 : index
    %c0_189 = arith.constant 0 : index
    %c0_190 = arith.constant 0 : index
    %181 = vector.load %arg6[%c1_188, %c0_189, %c0_190] : memref<3x120x240xbf16, #tpu.memory_space<vmem>>, vector<1x120x240xbf16>
    %182 = vector.shape_cast %181 : vector<1x120x240xbf16> to vector<120x240xbf16>
    %183 = arith.extf %182 : vector<120x240xbf16> to vector<120x240xf32>
    %cst_191 = arith.constant dense<0.000000e+00> : vector<15x240xf32>
    %184 = tpu.matmul %180, %183, %cst_191 {dimension_numbers = #tpu.dot_dimension_numbers<[1], [0], [0], [1], [0, 0, 1, 1], [], []>} : vector<15x120xf32>, vector<120x240xf32>, vector<15x240xf32> -> vector<15x240xf32>
    %185 = arith.addf %179, %184 : vector<15x240xf32>
    %c2_192 = arith.constant 2 : index
    %c0_193 = arith.constant 0 : index
    %186 = vector.load %arg19[%c2_192, %c0_193] : memref<17x120xf32, #tpu.memory_space<vmem>>, vector<15x120xf32>
    %c2_194 = arith.constant 2 : index
    %c0_195 = arith.constant 0 : index
    %c0_196 = arith.constant 0 : index
    %187 = vector.load %arg6[%c2_194, %c0_195, %c0_196] : memref<3x120x240xbf16, #tpu.memory_space<vmem>>, vector<1x120x240xbf16>
    %188 = vector.shape_cast %187 : vector<1x120x240xbf16> to vector<120x240xbf16>
    %189 = arith.extf %188 : vector<120x240xbf16> to vector<120x240xf32>
    %cst_197 = arith.constant dense<0.000000e+00> : vector<15x240xf32>
    %190 = tpu.matmul %186, %189, %cst_197 {dimension_numbers = #tpu.dot_dimension_numbers<[1], [0], [0], [1], [0, 0, 1, 1], [], []>} : vector<15x120xf32>, vector<120x240xf32>, vector<15x240xf32> -> vector<15x240xf32>
    %191 = arith.addf %185, %190 : vector<15x240xf32>
    %c0_198 = arith.constant 0 : index
    %c0_199 = arith.constant 0 : index
    %192 = vector.load %arg7[%c0_198, %c0_199] : memref<1x240xf32, #tpu.memory_space<vmem>>, vector<1x240xf32>
    %193 = vector.broadcast %192 : vector<1x240xf32> to vector<15x240xf32>
    %194 = arith.addf %191, %193 : vector<15x240xf32>
    %cst_200 = arith.constant 0.000000e+00 : f32
    %195 = vector.broadcast %cst_200 : f32 to vector<15x240xf32>
    %196 = arith.maximumf %194, %195 : vector<15x240xf32>
    %c0_201 = arith.constant 0 : index
    %c0_202 = arith.constant 0 : index
    %197 = vector.load %arg20[%c0_201, %c0_202] : memref<15x240xf32, #tpu.memory_space<vmem>>, vector<15x240xf32>
    tpu.vector_store %arg20[%c0_201, %c0_202], %196 {strides = array<i32>} : memref<15x240xf32, #tpu.memory_space<vmem>>, vector<15x240xf32>,
    %c0_203 = arith.constant 0 : index
    %c0_204 = arith.constant 0 : index
    %198 = vector.load %arg20[%c0_203, %c0_204] : memref<15x240xf32, #tpu.memory_space<vmem>>, vector<13x240xf32>
    %c0_205 = arith.constant 0 : index
    %c0_206 = arith.constant 0 : index
    %c0_207 = arith.constant 0 : index
    %199 = vector.load %arg8[%c0_205, %c0_206, %c0_207] : memref<3x240x208xbf16, #tpu.memory_space<vmem>>, vector<1x240x208xbf16>
    %200 = vector.shape_cast %199 : vector<1x240x208xbf16> to vector<240x208xbf16>
    %201 = arith.extf %200 : vector<240x208xbf16> to vector<240x208xf32>
    %cst_208 = arith.constant dense<0.000000e+00> : vector<13x208xf32>
    %202 = tpu.matmul %198, %201, %cst_208 {dimension_numbers = #tpu.dot_dimension_numbers<[1], [0], [0], [1], [0, 0, 1, 1], [], []>} : vector<13x240xf32>, vector<240x208xf32>, vector<13x208xf32> -> vector<13x208xf32>
    %c1_209 = arith.constant 1 : index
    %c0_210 = arith.constant 0 : index
    %203 = vector.load %arg20[%c1_209, %c0_210] : memref<15x240xf32, #tpu.memory_space<vmem>>, vector<13x240xf32>
    %c1_211 = arith.constant 1 : index
    %c0_212 = arith.constant 0 : index
    %c0_213 = arith.constant 0 : index
    %204 = vector.load %arg8[%c1_211, %c0_212, %c0_213] : memref<3x240x208xbf16, #tpu.memory_space<vmem>>, vector<1x240x208xbf16>
    %205 = vector.shape_cast %204 : vector<1x240x208xbf16> to vector<240x208xbf16>
    %206 = arith.extf %205 : vector<240x208xbf16> to vector<240x208xf32>
    %cst_214 = arith.constant dense<0.000000e+00> : vector<13x208xf32>
    %207 = tpu.matmul %203, %206, %cst_214 {dimension_numbers = #tpu.dot_dimension_numbers<[1], [0], [0], [1], [0, 0, 1, 1], [], []>} : vector<13x240xf32>, vector<240x208xf32>, vector<13x208xf32> -> vector<13x208xf32>
    %208 = arith.addf %202, %207 : vector<13x208xf32>
    %c2_215 = arith.constant 2 : index
    %c0_216 = arith.constant 0 : index
    %209 = vector.load %arg20[%c2_215, %c0_216] : memref<15x240xf32, #tpu.memory_space<vmem>>, vector<13x240xf32>
    %c2_217 = arith.constant 2 : index
    %c0_218 = arith.constant 0 : index
    %c0_219 = arith.constant 0 : index
    %210 = vector.load %arg8[%c2_217, %c0_218, %c0_219] : memref<3x240x208xbf16, #tpu.memory_space<vmem>>, vector<1x240x208xbf16>
    %211 = vector.shape_cast %210 : vector<1x240x208xbf16> to vector<240x208xbf16>
    %212 = arith.extf %211 : vector<240x208xbf16> to vector<240x208xf32>
    %cst_220 = arith.constant dense<0.000000e+00> : vector<13x208xf32>
    %213 = tpu.matmul %209, %212, %cst_220 {dimension_numbers = #tpu.dot_dimension_numbers<[1], [0], [0], [1], [0, 0, 1, 1], [], []>} : vector<13x240xf32>, vector<240x208xf32>, vector<13x208xf32> -> vector<13x208xf32>
    %214 = arith.addf %208, %213 : vector<13x208xf32>
    %c0_221 = arith.constant 0 : index
    %c0_222 = arith.constant 0 : index
    %215 = vector.load %arg9[%c0_221, %c0_222] : memref<1x208xf32, #tpu.memory_space<vmem>>, vector<1x208xf32>
    %216 = vector.broadcast %215 : vector<1x208xf32> to vector<13x208xf32>
    %217 = arith.addf %214, %216 : vector<13x208xf32>
    %cst_223 = arith.constant 0.000000e+00 : f32
    %218 = vector.broadcast %cst_223 : f32 to vector<13x208xf32>
    %219 = arith.maximumf %217, %218 : vector<13x208xf32>
    %c0_224 = arith.constant 0 : index
    %c0_225 = arith.constant 0 : index
    %220 = vector.load %arg21[%c0_224, %c0_225] : memref<13x208xf32, #tpu.memory_space<vmem>>, vector<13x208xf32>
    tpu.vector_store %arg21[%c0_224, %c0_225], %219 {strides = array<i32>} : memref<13x208xf32, #tpu.memory_space<vmem>>, vector<13x208xf32>,
    %c0_226 = arith.constant 0 : index
    %c0_227 = arith.constant 0 : index
    %221 = vector.load %arg21[%c0_226, %c0_227] : memref<13x208xf32, #tpu.memory_space<vmem>>, vector<1x208xf32>
    %c1_228 = arith.constant 1 : index
    %c0_229 = arith.constant 0 : index
    %222 = vector.load %arg21[%c1_228, %c0_229] : memref<13x208xf32, #tpu.memory_space<vmem>>, vector<1x208xf32>
    %223 = arith.maximumf %221, %222 : vector<1x208xf32>
    %c0_230 = arith.constant 0 : index
    %c0_231 = arith.constant 0 : index
    %224 = vector.load %arg22[%c0_230, %c0_231] : memref<6x208xf32, #tpu.memory_space<vmem>>, vector<1x208xf32>
    tpu.vector_store %arg22[%c0_230, %c0_231], %223 {strides = array<i32>} : memref<6x208xf32, #tpu.memory_space<vmem>>, vector<1x208xf32>,
    %c2_232 = arith.constant 2 : index
    %c0_233 = arith.constant 0 : index
    %225 = vector.load %arg21[%c2_232, %c0_233] : memref<13x208xf32, #tpu.memory_space<vmem>>, vector<1x208xf32>
    %c3_234 = arith.constant 3 : index
    %c0_235 = arith.constant 0 : index
    %226 = vector.load %arg21[%c3_234, %c0_235] : memref<13x208xf32, #tpu.memory_space<vmem>>, vector<1x208xf32>
    %227 = arith.maximumf %225, %226 : vector<1x208xf32>
    %c1_236 = arith.constant 1 : index
    %c0_237 = arith.constant 0 : index
    %228 = vector.load %arg22[%c1_236, %c0_237] : memref<6x208xf32, #tpu.memory_space<vmem>>, vector<1x208xf32>
    tpu.vector_store %arg22[%c1_236, %c0_237], %227 {strides = array<i32>} : memref<6x208xf32, #tpu.memory_space<vmem>>, vector<1x208xf32>,
    %c4_238 = arith.constant 4 : index
    %c0_239 = arith.constant 0 : index
    %229 = vector.load %arg21[%c4_238, %c0_239] : memref<13x208xf32, #tpu.memory_space<vmem>>, vector<1x208xf32>
    %c5_240 = arith.constant 5 : index
    %c0_241 = arith.constant 0 : index
    %230 = vector.load %arg21[%c5_240, %c0_241] : memref<13x208xf32, #tpu.memory_space<vmem>>, vector<1x208xf32>
    %231 = arith.maximumf %229, %230 : vector<1x208xf32>
    %c2_242 = arith.constant 2 : index
    %c0_243 = arith.constant 0 : index
    %232 = vector.load %arg22[%c2_242, %c0_243] : memref<6x208xf32, #tpu.memory_space<vmem>>, vector<1x208xf32>
    tpu.vector_store %arg22[%c2_242, %c0_243], %231 {strides = array<i32>} : memref<6x208xf32, #tpu.memory_space<vmem>>, vector<1x208xf32>,
    %c6_244 = arith.constant 6 : index
    %c0_245 = arith.constant 0 : index
    %233 = vector.load %arg21[%c6_244, %c0_245] : memref<13x208xf32, #tpu.memory_space<vmem>>, vector<1x208xf32>
    %c7_246 = arith.constant 7 : index
    %c0_247 = arith.constant 0 : index
    %234 = vector.load %arg21[%c7_246, %c0_247] : memref<13x208xf32, #tpu.memory_space<vmem>>, vector<1x208xf32>
    %235 = arith.maximumf %233, %234 : vector<1x208xf32>
    %c3_248 = arith.constant 3 : index
    %c0_249 = arith.constant 0 : index
    %236 = vector.load %arg22[%c3_248, %c0_249] : memref<6x208xf32, #tpu.memory_space<vmem>>, vector<1x208xf32>
    tpu.vector_store %arg22[%c3_248, %c0_249], %235 {strides = array<i32>} : memref<6x208xf32, #tpu.memory_space<vmem>>, vector<1x208xf32>,
    %c8_250 = arith.constant 8 : index
    %c0_251 = arith.constant 0 : index
    %237 = vector.load %arg21[%c8_250, %c0_251] : memref<13x208xf32, #tpu.memory_space<vmem>>, vector<1x208xf32>
    %c9_252 = arith.constant 9 : index
    %c0_253 = arith.constant 0 : index
    %238 = vector.load %arg21[%c9_252, %c0_253] : memref<13x208xf32, #tpu.memory_space<vmem>>, vector<1x208xf32>
    %239 = arith.maximumf %237, %238 : vector<1x208xf32>
    %c4_254 = arith.constant 4 : index
    %c0_255 = arith.constant 0 : index
    %240 = vector.load %arg22[%c4_254, %c0_255] : memref<6x208xf32, #tpu.memory_space<vmem>>, vector<1x208xf32>
    tpu.vector_store %arg22[%c4_254, %c0_255], %239 {strides = array<i32>} : memref<6x208xf32, #tpu.memory_space<vmem>>, vector<1x208xf32>,
    %c10_256 = arith.constant 10 : index
    %c0_257 = arith.constant 0 : index
    %241 = vector.load %arg21[%c10_256, %c0_257] : memref<13x208xf32, #tpu.memory_space<vmem>>, vector<1x208xf32>
    %c11_258 = arith.constant 11 : index
    %c0_259 = arith.constant 0 : index
    %242 = vector.load %arg21[%c11_258, %c0_259] : memref<13x208xf32, #tpu.memory_space<vmem>>, vector<1x208xf32>
    %243 = arith.maximumf %241, %242 : vector<1x208xf32>
    %c5_260 = arith.constant 5 : index
    %c0_261 = arith.constant 0 : index
    %244 = vector.load %arg22[%c5_260, %c0_261] : memref<6x208xf32, #tpu.memory_space<vmem>>, vector<1x208xf32>
    tpu.vector_store %arg22[%c5_260, %c0_261], %243 {strides = array<i32>} : memref<6x208xf32, #tpu.memory_space<vmem>>, vector<1x208xf32>,
    %c0_262 = arith.constant 0 : index
    %c0_263 = arith.constant 0 : index
    %245 = vector.load %arg22[%c0_262, %c0_263] : memref<6x208xf32, #tpu.memory_space<vmem>>, vector<6x16xf32>
    %c0_264 = arith.constant 0 : index
    %c16_265 = arith.constant 16 : index
    %246 = vector.load %arg22[%c0_264, %c16_265] : memref<6x208xf32, #tpu.memory_space<vmem>>, vector<6x16xf32>
    %247 = arith.maximumf %245, %246 : vector<6x16xf32>
    %c0_266 = arith.constant 0 : index
    %c0_267 = arith.constant 0 : index
    %248 = vector.load %arg23[%c0_266, %c0_267] : memref<6x96xf32, #tpu.memory_space<vmem>>, vector<6x16xf32>
    tpu.vector_store %arg23[%c0_266, %c0_267], %247 {strides = array<i32>} : memref<6x96xf32, #tpu.memory_space<vmem>>, vector<6x16xf32>,
    %c0_268 = arith.constant 0 : index
    %c32_269 = arith.constant 32 : index
    %249 = vector.load %arg22[%c0_268, %c32_269] : memref<6x208xf32, #tpu.memory_space<vmem>>, vector<6x16xf32>
    %c0_270 = arith.constant 0 : index
    %c48_271 = arith.constant 48 : index
    %250 = vector.load %arg22[%c0_270, %c48_271] : memref<6x208xf32, #tpu.memory_space<vmem>>, vector<6x16xf32>
    %251 = arith.maximumf %249, %250 : vector<6x16xf32>
    %c0_272 = arith.constant 0 : index
    %c16_273 = arith.constant 16 : index
    %252 = vector.load %arg23[%c0_272, %c16_273] : memref<6x96xf32, #tpu.memory_space<vmem>>, vector<6x16xf32>
    tpu.vector_store %arg23[%c0_272, %c16_273], %251 {strides = array<i32>} : memref<6x96xf32, #tpu.memory_space<vmem>>, vector<6x16xf32>,
    %c0_274 = arith.constant 0 : index
    %c64_275 = arith.constant 64 : index
    %253 = vector.load %arg22[%c0_274, %c64_275] : memref<6x208xf32, #tpu.memory_space<vmem>>, vector<6x16xf32>
    %c0_276 = arith.constant 0 : index
    %c80_277 = arith.constant 80 : index
    %254 = vector.load %arg22[%c0_276, %c80_277] : memref<6x208xf32, #tpu.memory_space<vmem>>, vector<6x16xf32>
    %255 = arith.maximumf %253, %254 : vector<6x16xf32>
    %c0_278 = arith.constant 0 : index
    %c32_279 = arith.constant 32 : index
    %256 = vector.load %arg23[%c0_278, %c32_279] : memref<6x96xf32, #tpu.memory_space<vmem>>, vector<6x16xf32>
    tpu.vector_store %arg23[%c0_278, %c32_279], %255 {strides = array<i32>} : memref<6x96xf32, #tpu.memory_space<vmem>>, vector<6x16xf32>,
    %c0_280 = arith.constant 0 : index
    %c96_281 = arith.constant 96 : index
    %257 = vector.load %arg22[%c0_280, %c96_281] : memref<6x208xf32, #tpu.memory_space<vmem>>, vector<6x16xf32>
    %c0_282 = arith.constant 0 : index
    %c112_283 = arith.constant 112 : index
    %258 = vector.load %arg22[%c0_282, %c112_283] : memref<6x208xf32, #tpu.memory_space<vmem>>, vector<6x16xf32>
    %259 = arith.maximumf %257, %258 : vector<6x16xf32>
    %c0_284 = arith.constant 0 : index
    %c48_285 = arith.constant 48 : index
    %260 = vector.load %arg23[%c0_284, %c48_285] : memref<6x96xf32, #tpu.memory_space<vmem>>, vector<6x16xf32>
    tpu.vector_store %arg23[%c0_284, %c48_285], %259 {strides = array<i32>} : memref<6x96xf32, #tpu.memory_space<vmem>>, vector<6x16xf32>,
    %c0_286 = arith.constant 0 : index
    %c128_287 = arith.constant 128 : index
    %261 = vector.load %arg22[%c0_286, %c128_287] : memref<6x208xf32, #tpu.memory_space<vmem>>, vector<6x16xf32>
    %c0_288 = arith.constant 0 : index
    %c144_289 = arith.constant 144 : index
    %262 = vector.load %arg22[%c0_288, %c144_289] : memref<6x208xf32, #tpu.memory_space<vmem>>, vector<6x16xf32>
    %263 = arith.maximumf %261, %262 : vector<6x16xf32>
    %c0_290 = arith.constant 0 : index
    %c64_291 = arith.constant 64 : index
    %264 = vector.load %arg23[%c0_290, %c64_291] : memref<6x96xf32, #tpu.memory_space<vmem>>, vector<6x16xf32>
    tpu.vector_store %arg23[%c0_290, %c64_291], %263 {strides = array<i32>} : memref<6x96xf32, #tpu.memory_space<vmem>>, vector<6x16xf32>,
    %c0_292 = arith.constant 0 : index
    %c160_293 = arith.constant 160 : index
    %265 = vector.load %arg22[%c0_292, %c160_293] : memref<6x208xf32, #tpu.memory_space<vmem>>, vector<6x16xf32>
    %c0_294 = arith.constant 0 : index
    %c176_295 = arith.constant 176 : index
    %266 = vector.load %arg22[%c0_294, %c176_295] : memref<6x208xf32, #tpu.memory_space<vmem>>, vector<6x16xf32>
    %267 = arith.maximumf %265, %266 : vector<6x16xf32>
    %c0_296 = arith.constant 0 : index
    %c80_297 = arith.constant 80 : index
    %268 = vector.load %arg23[%c0_296, %c80_297] : memref<6x96xf32, #tpu.memory_space<vmem>>, vector<6x16xf32>
    tpu.vector_store %arg23[%c0_296, %c80_297], %267 {strides = array<i32>} : memref<6x96xf32, #tpu.memory_space<vmem>>, vector<6x16xf32>,
    %c0_i32_298 = arith.constant 0 : i32
    %269 = tpu.memref_slice %arg25[%c0_i32_298] : memref<1x!tpu.dma_semaphore, #tpu.memory_space<semaphore_mem>> -> memref<1x!tpu.dma_semaphore, #tpu.memory_space<semaphore_mem>>
    %270 = tpu.memref_squeeze %269 : memref<1x!tpu.dma_semaphore, #tpu.memory_space<semaphore_mem>> -> memref<!tpu.dma_semaphore, #tpu.memory_space<semaphore_mem>>
    tpu.wait_dma2 semaphore(%270 : memref<!tpu.dma_semaphore, #tpu.memory_space<semaphore_mem>>) src(%arg10 : memref<576x512xbf16, #tpu.memory_space<any>>) dst(%arg24 : memref<576x512xbf16, #tpu.memory_space<vmem>>)
    %c0_299 = arith.constant 0 : index
    %c0_300 = arith.constant 0 : index
    %271 = vector.load %arg11[%c0_299, %c0_300] : memref<1x512xf32, #tpu.memory_space<vmem>>, vector<1x512xf32>
    %c0_301 = arith.constant 0 : index
    %c0_302 = arith.constant 0 : index
    %272 = vector.load %arg23[%c0_301, %c0_302] : memref<6x96xf32, #tpu.memory_space<vmem>>, vector<1x96xf32>
    %c0_303 = arith.constant 0 : index
    %c0_304 = arith.constant 0 : index
    %273 = vector.load %arg24[%c0_303, %c0_304] : memref<576x512xbf16, #tpu.memory_space<vmem>>, vector<96x512xbf16>
    %274 = arith.extf %273 : vector<96x512xbf16> to vector<96x512xf32>
    %cst_305 = arith.constant dense<0.000000e+00> : vector<1x512xf32>
    %275 = tpu.matmul %272, %274, %cst_305 {dimension_numbers = #tpu.dot_dimension_numbers<[1], [0], [0], [1], [0, 0, 1, 1], [], []>} : vector<1x96xf32>, vector<96x512xf32>, vector<1x512xf32> -> vector<1x512xf32>
    %276 = arith.addf %271, %275 : vector<1x512xf32>
    %c1_306 = arith.constant 1 : index
    %c0_307 = arith.constant 0 : index
    %277 = vector.load %arg23[%c1_306, %c0_307] : memref<6x96xf32, #tpu.memory_space<vmem>>, vector<1x96xf32>
    %c96_308 = arith.constant 96 : index
    %c0_309 = arith.constant 0 : index
    %278 = vector.load %arg24[%c96_308, %c0_309] : memref<576x512xbf16, #tpu.memory_space<vmem>>, vector<96x512xbf16>
    %279 = arith.extf %278 : vector<96x512xbf16> to vector<96x512xf32>
    %cst_310 = arith.constant dense<0.000000e+00> : vector<1x512xf32>
    %280 = tpu.matmul %277, %279, %cst_310 {dimension_numbers = #tpu.dot_dimension_numbers<[1], [0], [0], [1], [0, 0, 1, 1], [], []>} : vector<1x96xf32>, vector<96x512xf32>, vector<1x512xf32> -> vector<1x512xf32>
    %281 = arith.addf %276, %280 : vector<1x512xf32>
    %c2_311 = arith.constant 2 : index
    %c0_312 = arith.constant 0 : index
    %282 = vector.load %arg23[%c2_311, %c0_312] : memref<6x96xf32, #tpu.memory_space<vmem>>, vector<1x96xf32>
    %c192_313 = arith.constant 192 : index
    %c0_314 = arith.constant 0 : index
    %283 = vector.load %arg24[%c192_313, %c0_314] : memref<576x512xbf16, #tpu.memory_space<vmem>>, vector<96x512xbf16>
    %284 = arith.extf %283 : vector<96x512xbf16> to vector<96x512xf32>
    %cst_315 = arith.constant dense<0.000000e+00> : vector<1x512xf32>
    %285 = tpu.matmul %282, %284, %cst_315 {dimension_numbers = #tpu.dot_dimension_numbers<[1], [0], [0], [1], [0, 0, 1, 1], [], []>} : vector<1x96xf32>, vector<96x512xf32>, vector<1x512xf32> -> vector<1x512xf32>
    %286 = arith.addf %281, %285 : vector<1x512xf32>
    %c3_316 = arith.constant 3 : index
    %c0_317 = arith.constant 0 : index
    %287 = vector.load %arg23[%c3_316, %c0_317] : memref<6x96xf32, #tpu.memory_space<vmem>>, vector<1x96xf32>
    %c288 = arith.constant 288 : index
    %c0_318 = arith.constant 0 : index
    %288 = vector.load %arg24[%c288, %c0_318] : memref<576x512xbf16, #tpu.memory_space<vmem>>, vector<96x512xbf16>
    %289 = arith.extf %288 : vector<96x512xbf16> to vector<96x512xf32>
    %cst_319 = arith.constant dense<0.000000e+00> : vector<1x512xf32>
    %290 = tpu.matmul %287, %289, %cst_319 {dimension_numbers = #tpu.dot_dimension_numbers<[1], [0], [0], [1], [0, 0, 1, 1], [], []>} : vector<1x96xf32>, vector<96x512xf32>, vector<1x512xf32> -> vector<1x512xf32>
    %291 = arith.addf %286, %290 : vector<1x512xf32>
    %c4_320 = arith.constant 4 : index
    %c0_321 = arith.constant 0 : index
    %292 = vector.load %arg23[%c4_320, %c0_321] : memref<6x96xf32, #tpu.memory_space<vmem>>, vector<1x96xf32>
    %c384 = arith.constant 384 : index
    %c0_322 = arith.constant 0 : index
    %293 = vector.load %arg24[%c384, %c0_322] : memref<576x512xbf16, #tpu.memory_space<vmem>>, vector<96x512xbf16>
    %294 = arith.extf %293 : vector<96x512xbf16> to vector<96x512xf32>
    %cst_323 = arith.constant dense<0.000000e+00> : vector<1x512xf32>
    %295 = tpu.matmul %292, %294, %cst_323 {dimension_numbers = #tpu.dot_dimension_numbers<[1], [0], [0], [1], [0, 0, 1, 1], [], []>} : vector<1x96xf32>, vector<96x512xf32>, vector<1x512xf32> -> vector<1x512xf32>
    %296 = arith.addf %291, %295 : vector<1x512xf32>
    %c5_324 = arith.constant 5 : index
    %c0_325 = arith.constant 0 : index
    %297 = vector.load %arg23[%c5_324, %c0_325] : memref<6x96xf32, #tpu.memory_space<vmem>>, vector<1x96xf32>
    %c480 = arith.constant 480 : index
    %c0_326 = arith.constant 0 : index
    %298 = vector.load %arg24[%c480, %c0_326] : memref<576x512xbf16, #tpu.memory_space<vmem>>, vector<96x512xbf16>
    %299 = arith.extf %298 : vector<96x512xbf16> to vector<96x512xf32>
    %cst_327 = arith.constant dense<0.000000e+00> : vector<1x512xf32>
    %300 = tpu.matmul %297, %299, %cst_327 {dimension_numbers = #tpu.dot_dimension_numbers<[1], [0], [0], [1], [0, 0, 1, 1], [], []>} : vector<1x96xf32>, vector<96x512xf32>, vector<1x512xf32> -> vector<1x512xf32>
    %301 = arith.addf %296, %300 : vector<1x512xf32>
    %cst_328 = arith.constant 0.000000e+00 : f32
    %302 = vector.broadcast %cst_328 : f32 to vector<1x512xf32>
    %303 = arith.maximumf %301, %302 : vector<1x512xf32>
    %c0_329 = arith.constant 0 : index
    %c0_330 = arith.constant 0 : index
    %304 = vector.load %arg12[%c0_329, %c0_330] : memref<512x10xbf16, #tpu.memory_space<vmem>>, vector<512x10xbf16>
    %305 = arith.extf %304 : vector<512x10xbf16> to vector<512x10xf32>
    %cst_331 = arith.constant dense<0.000000e+00> : vector<1x10xf32>
    %306 = tpu.matmul %303, %305, %cst_331 {dimension_numbers = #tpu.dot_dimension_numbers<[1], [0], [0], [1], [0, 0, 1, 1], [], []>} : vector<1x512xf32>, vector<512x10xf32>, vector<1x10xf32> -> vector<1x10xf32>
    %c0_332 = arith.constant 0 : index
    %c0_333 = arith.constant 0 : index
    %307 = vector.load %arg13[%c0_332, %c0_333] : memref<1x10xf32, #tpu.memory_space<vmem>>, vector<1x10xf32>
    %308 = arith.addf %306, %307 : vector<1x10xf32>
    %c0_334 = arith.constant 0 : index
    %c0_335 = arith.constant 0 : index
    %c0_336 = arith.constant 0 : index
    %309 = vector.load %arg14[%c0_334, %c0_335, %c0_336] : memref<1x1x10xf32, #tpu.memory_space<vmem>>, vector<1x1x10xf32>
    %310 = vector.shape_cast %309 : vector<1x1x10xf32> to vector<1x10xf32>
    %311 = vector.shape_cast %308 : vector<1x10xf32> to vector<1x1x10xf32>
    tpu.vector_store %arg14[%c0_334, %c0_335, %c0_336], %311 {strides = array<i32>} : memref<1x1x10xf32, #tpu.memory_space<vmem>>, vector<1x1x10xf32>,
    return
  }
  func.func @transform_0(%arg0: i32) -> (i32, i32, i32) {
    %c0_i32 = arith.constant 0 : i32
    %c0_i32_0 = arith.constant 0 : i32
    %c0_i32_1 = arith.constant 0 : i32
    return %arg0, %c0_i32, %c0_i32_0 : i32, i32, i32
  }
  func.func @transform_1(%arg0: i32) -> (i32, i32, i32) {
    %c0_i32 = arith.constant 0 : i32
    %c0_i32_0 = arith.constant 0 : i32
    %c0_i32_1 = arith.constant 0 : i32
    %c0_i32_2 = arith.constant 0 : i32
    return %c0_i32, %c0_i32_0, %c0_i32_1 : i32, i32, i32
  }
  func.func @transform_2(%arg0: i32) -> (i32, i32) {
    %c0_i32 = arith.constant 0 : i32
    %c0_i32_0 = arith.constant 0 : i32
    %c0_i32_1 = arith.constant 0 : i32
    return %c0_i32, %c0_i32_0 : i32, i32
  }
  func.func @transform_3(%arg0: i32) -> (i32, i32, i32) {
    %c0_i32 = arith.constant 0 : i32
    %c0_i32_0 = arith.constant 0 : i32
    %c0_i32_1 = arith.constant 0 : i32
    %c0_i32_2 = arith.constant 0 : i32
    return %c0_i32, %c0_i32_0, %c0_i32_1 : i32, i32, i32
  }
  func.func @transform_4(%arg0: i32) -> (i32, i32) {
    %c0_i32 = arith.constant 0 : i32
    %c0_i32_0 = arith.constant 0 : i32
    %c0_i32_1 = arith.constant 0 : i32
    return %c0_i32, %c0_i32_0 : i32, i32
  }
  func.func @transform_5(%arg0: i32) -> (i32, i32, i32) {
    %c0_i32 = arith.constant 0 : i32
    %c0_i32_0 = arith.constant 0 : i32
    %c0_i32_1 = arith.constant 0 : i32
    %c0_i32_2 = arith.constant 0 : i32
    return %c0_i32, %c0_i32_0, %c0_i32_1 : i32, i32, i32
  }
  func.func @transform_6(%arg0: i32) -> (i32, i32) {
    %c0_i32 = arith.constant 0 : i32
    %c0_i32_0 = arith.constant 0 : i32
    %c0_i32_1 = arith.constant 0 : i32
    return %c0_i32, %c0_i32_0 : i32, i32
  }
  func.func @transform_7(%arg0: i32) -> (i32, i32, i32) {
    %c0_i32 = arith.constant 0 : i32
    %c0_i32_0 = arith.constant 0 : i32
    %c0_i32_1 = arith.constant 0 : i32
    %c0_i32_2 = arith.constant 0 : i32
    return %c0_i32, %c0_i32_0, %c0_i32_1 : i32, i32, i32
  }
  func.func @transform_8(%arg0: i32) -> (i32, i32) {
    %c0_i32 = arith.constant 0 : i32
    %c0_i32_0 = arith.constant 0 : i32
    %c0_i32_1 = arith.constant 0 : i32
    return %c0_i32, %c0_i32_0 : i32, i32
  }
  func.func @transform_10(%arg0: i32) -> (i32, i32) {
    %c0_i32 = arith.constant 0 : i32
    %c0_i32_0 = arith.constant 0 : i32
    %c0_i32_1 = arith.constant 0 : i32
    return %c0_i32, %c0_i32_0 : i32, i32
  }
  func.func @transform_11(%arg0: i32) -> (i32, i32) {
    %c0_i32 = arith.constant 0 : i32
    %c0_i32_0 = arith.constant 0 : i32
    %c0_i32_1 = arith.constant 0 : i32
    return %c0_i32, %c0_i32_0 : i32, i32
  }
  func.func @transform_12(%arg0: i32) -> (i32, i32) {
    %c0_i32 = arith.constant 0 : i32
    %c0_i32_0 = arith.constant 0 : i32
    %c0_i32_1 = arith.constant 0 : i32
    return %c0_i32, %c0_i32_0 : i32, i32
  }
  func.func @transform_13(%arg0: i32) -> (i32, i32, i32) {
    %c0_i32 = arith.constant 0 : i32
    %c0_i32_0 = arith.constant 0 : i32
    %c0_i32_1 = arith.constant 0 : i32
    return %arg0, %c0_i32, %c0_i32_0 : i32, i32, i32
  }
}

</mosaic_0001>

<llo_original>
// kernel: cifarnet_forward.1
$region0: #{cifarnet_forward.1}
  #allocation0 [shape = 'u32[]', space=smem, size = 0x4, offset = 0x4, fixed_abs, tag = 'smem constant byte address 0x4 - core index']
  #allocation1 [shape = 'u32[72,128]{1,0:T(1,128)}', space=vmem, size = 0x9000, scoped, tag = 'internal scratch']
  #allocation2 [shape = 'f32[34,96]{1,0:T(8,128)}', space=vmem, size = 0x5000, scoped, tag = 'scratch operand']
  #allocation3 [shape = 'f32[32,256]{1,0:T(8,128)}', space=vmem, size = 0x8000, scoped, tag = 'scratch operand']
  #allocation4 [shape = 'f32[30,240]{1,0:T(8,128)}', space=vmem, size = 0x8000, scoped, tag = 'scratch operand']
  #allocation5 [shape = 'f32[15,240]{1,0:T(8,128)}', space=vmem, size = 0x4000, scoped, tag = 'scratch operand']
  #allocation6 [shape = 'f32[17,120]{1,0:T(8,128)}', space=vmem, size = 0x3000, scoped, tag = 'scratch operand']
  #allocation7 [shape = 'f32[15,240]{1,0:T(8,128)}', space=vmem, size = 0x4000, scoped, tag = 'scratch operand']
  #allocation8 [shape = 'f32[13,208]{1,0:T(8,128)}', space=vmem, size = 0x4000, scoped, tag = 'scratch operand']
  #allocation9 [shape = 'f32[6,208]{1,0:T(8,128)}', space=vmem, size = 0x2000, scoped, tag = 'scratch operand']
  #allocation10 [shape = 'f32[6,96]{1,0:T(8,128)}', space=vmem, size = 0x1000, scoped, tag = 'scratch operand']
  #allocation11 [shape = 'bf16[576,512]{1,0:T(8,128)(2,1)}', space=vmem, size = 0x90000, scoped, tag = 'scratch operand']
  #allocation12 [shape = 's32[1]{0}', space=sflag, size = 0x4, scoped, tag = 'scratch operand']
  #allocation15 [shape = 's32[]', space=sflag, size = 0x4, offset = 0, fixed_abs, tag = 'sflag constant byte address 0x0 - dummy sync flag']
  %s0 = inlined_call_operand.vmem [shape: f32[2,32,96], index: 0, kind: input, shape index: {}]
  %s1 = inlined_call_operand.vmem [shape: bf16[3,96,256], index: 1, kind: input, shape index: {}]
  %s2 = inlined_call_operand.vmem [shape: f32[1,256], index: 2, kind: input, shape index: {}]
  %s3 = inlined_call_operand.vmem [shape: bf16[3,256,240], index: 3, kind: input, shape index: {}]
  %s4 = inlined_call_operand.vmem [shape: f32[1,240], index: 4, kind: input, shape index: {}]
  %s5 = inlined_call_operand.vmem [shape: bf16[3,120,240], index: 5, kind: input, shape index: {}]
  %s6 = inlined_call_operand.vmem [shape: f32[1,240], index: 6, kind: input, shape index: {}]
  %s7 = inlined_call_operand.vmem [shape: bf16[3,240,208], index: 7, kind: input, shape index: {}]
  %s8 = inlined_call_operand.vmem [shape: f32[1,208], index: 8, kind: input, shape index: {}]
  %s9 = inlined_call_operand.vmem [shape: bf16[576,512], index: 9, kind: input, shape index: {}]
  %s10 = inlined_call_operand.vmem [shape: f32[1,512], index: 10, kind: input, shape index: {}]
  %s11 = inlined_call_operand.vmem [shape: bf16[512,10], index: 11, kind: input, shape index: {}]
  %s12 = inlined_call_operand.vmem [shape: f32[1,10], index: 12, kind: input, shape index: {}]
  %s13 = inlined_call_operand.hbm [shape: f32[2,1,10], index: 13, kind: output, shape index: {}]
  %s14 = sld [smem:[#allocation0]]
  $region100: #{cifarnet_forward.1} parent=0
    _
  %s16 = ssub.s32 1, %s14
  %s17 = scalar_select 0, %s16, %s14
  $region1: #{cifarnet_forward.1} parent=0
    #allocation13 [shape = 'u8[1024]{0}', space=vmem, size = 0x400, scoped, tag = 'output window, operand 0']
    #allocation14 [shape = 's32[2]{0}', space=sflag, size = 0x8, scoped, tag = 'scoped memory for cifarnet_forward.1']
    %18 = vsyncpa [#allocation14], 0
    %s19 = scalar_lea.sflag [#allocation14], 1
    %20 = vsyncpa %s19, 0
    loop: start=0, step=1, limit=4
    $region2: #{cifarnet_forward.1} parent=1 // loop_pre_header
      _
    $region3: #{cifarnet_forward.1} parent=1 // loop_header
      %s22 = sphi 0, %s26
      %p23 = scmp.ge.s32.totalorder %s22, 4
      %s32 = sphi 0, %s34
      %s35 = sphi 0, %s32
      %s36 = sphi 0, %s35
      %s52 = sphi 0, %s36
      %s56 = sphi 0, %s56
      %s58 = sphi 0, %s56
      %s59 = sphi 0, %s58
      %s73 = sphi 0, %s59
      %s77 = sphi 0, %s77
      %s79 = sphi 0, %s77
      %s80 = sphi 0, %s79
      %s94 = sphi 0, %s80
      %s98 = sphi 0, %s98
      %s100 = sphi 0, %s98
      %s101 = sphi 0, %s100
      %s115 = sphi 0, %s101
      %s119 = sphi 0, %s119
      %s121 = sphi 0, %s119
      %s122 = sphi 0, %s121
      %s136 = sphi 0, %s122
      %s140 = sphi 0, %s140
      %s142 = sphi 0, %s140
      %s143 = sphi 0, %s142
      %s157 = sphi 0, %s143
      %s161 = sphi 0, %s161
      %s163 = sphi 0, %s161
      %s164 = sphi 0, %s163
      %s178 = sphi 0, %s164
      %s182 = sphi 0, %s182
      %s184 = sphi 0, %s182
      %s185 = sphi 0, %s184
      %s199 = sphi 0, %s185
      %s203 = sphi 0, %s203
      %s205 = sphi 0, %s203
      %s206 = sphi 0, %s205
      %s220 = sphi 0, %s206
      %s224 = sphi 0, %s224
      %s226 = sphi 0, %s224
      %s227 = sphi 0, %s226
      %s241 = sphi 0, %s227
      %s245 = sphi 0, %s245
      %s247 = sphi 0, %s245
      %s248 = sphi 0, %s247
      %s262 = sphi 0, %s248
      %s266 = sphi 0, %s266
      %s268 = sphi 0, %s266
      %s269 = sphi 0, %s268
      %s283 = sphi 0, %s269
      %s289 = sphi 0, %s291
      %s292 = sphi 0, %s289
      %s293 = sphi 0, %s292
      %s309 = sphi 0, %s293
    $region4: #{cifarnet_forward.1} parent=1 // loop_header_branch
      %25 = sbr.rel (%p23) target = $region8
    $region5: #{cifarnet_forward.1} parent=1 // loop_body
      %s27 = ssub.s32 %s22, 1
      %s28 = ssub.s32 %s22, 2
      %s29 = sadd.s32 %s22, 1
      %s30 = ssub.s32 %s22, %s29
      %p31 = scmp.eq.s32.totalorder %s30, 0
      %s33 = sadd.s32 %s32, 1
      %s34 = scalar_select %p31, %s32, %s33
      %p37 = pneg %p31
      %p38 = scmp.eq.s32.totalorder %s22, 1
      %p39 = por %p37, %p38
      %p40 = scmp.ne.s32.totalorder %s32, %s35
      %p41 = scmp.eq.s32.totalorder %s22, 0
      %p42 = por %p40, %p41
      %p43 = scmp.ne.s32.totalorder %s32, %s35
      %p44 = scmp.eq.s32.totalorder %s27, 1
      %p45 = por %p43, %p44
      %p46 = scmp.ne.s32.totalorder %s35, %s36
      %p47 = scmp.eq.s32.totalorder %s27, 0
      %p48 = por %p46, %p47
      %p49 = scmp.ne.s32.totalorder %s35, %s36
      %p50 = scmp.eq.s32.totalorder %s28, 1
      %p51 = por %p49, %p50
      %p53 = scmp.ne.s32.totalorder %s36, %s52
      %p54 = scmp.eq.s32.totalorder %s28, 0
      %p55 = por %p53, %p54
      %s57 = sadd.s32 %s56, 1
      %p60 = scmp.eq.s32.totalorder %s22, 1
      %p61 = scmp.ne.s32.totalorder %s56, %s58
      %p62 = scmp.eq.s32.totalorder %s22, 0
      %p63 = por %p61, %p62
      %p64 = scmp.ne.s32.totalorder %s56, %s58
      %p65 = scmp.eq.s32.totalorder %s27, 1
      %p66 = por %p64, %p65
      %p67 = scmp.ne.s32.totalorder %s58, %s59
      %p68 = scmp.eq.s32.totalorder %s27, 0
      %p69 = por %p67, %p68
      %p70 = scmp.ne.s32.totalorder %s58, %s59
      %p71 = scmp.eq.s32.totalorder %s28, 1
      %p72 = por %p70, %p71
      %p74 = scmp.ne.s32.totalorder %s59, %s73
      %p75 = scmp.eq.s32.totalorder %s28, 0
      %p76 = por %p74, %p75
      %s78 = sadd.s32 %s77, 1
      %p81 = scmp.eq.s32.totalorder %s22, 1
      %p82 = scmp.ne.s32.totalorder %s77, %s79
      %p83 = scmp.eq.s32.totalorder %s22, 0
      %p84 = por %p82, %p83
      %p85 = scmp.ne.s32.totalorder %s77, %s79
      %p86 = scmp.eq.s32.totalorder %s27, 1
      %p87 = por %p85, %p86
      %p88 = scmp.ne.s32.totalorder %s79, %s80
      %p89 = scmp.eq.s32.totalorder %s27, 0
      %p90 = por %p88, %p89
      %p91 = scmp.ne.s32.totalorder %s79, %s80
      %p92 = scmp.eq.s32.totalorder %s28, 1
      %p93 = por %p91, %p92
      %p95 = scmp.ne.s32.totalorder %s80, %s94
      %p96 = scmp.eq.s32.totalorder %s28, 0
      %p97 = por %p95, %p96
      %s99 = sadd.s32 %s98, 1
      %p102 = scmp.eq.s32.totalorder %s22, 1
      %p103 = scmp.ne.s32.totalorder %s98, %s100
      %p104 = scmp.eq.s32.totalorder %s22, 0
      %p105 = por %p103, %p104
      %p106 = scmp.ne.s32.totalorder %s98, %s100
      %p107 = scmp.eq.s32.totalorder %s27, 1
      %p108 = por %p106, %p107
      %p109 = scmp.ne.s32.totalorder %s100, %s101
      %p110 = scmp.eq.s32.totalorder %s27, 0
      %p111 = por %p109, %p110
      %p112 = scmp.ne.s32.totalorder %s100, %s101
      %p113 = scmp.eq.s32.totalorder %s28, 1
      %p114 = por %p112, %p113
      %p116 = scmp.ne.s32.totalorder %s101, %s115
      %p117 = scmp.eq.s32.totalorder %s28, 0
      %p118 = por %p116, %p117
      %s120 = sadd.s32 %s119, 1
      %p123 = scmp.eq.s32.totalorder %s22, 1
      %p124 = scmp.ne.s32.totalorder %s119, %s121
      %p125 = scmp.eq.s32.totalorder %s22, 0
      %p126 = por %p124, %p125
      %p127 = scmp.ne.s32.totalorder %s119, %s121
      %p128 = scmp.eq.s32.totalorder %s27, 1
      %p129 = por %p127, %p128
      %p130 = scmp.ne.s32.totalorder %s121, %s122
      %p131 = scmp.eq.s32.totalorder %s27, 0
      %p132 = por %p130, %p131
      %p133 = scmp.ne.s32.totalorder %s121, %s122
      %p134 = scmp.eq.s32.totalorder %s28, 1
      %p135 = por %p133, %p134
      %p137 = scmp.ne.s32.totalorder %s122, %s136
      %p138 = scmp.eq.s32.totalorder %s28, 0
      %p139 = por %p137, %p138
      %s141 = sadd.s32 %s140, 1
      %p144 = scmp.eq.s32.totalorder %s22, 1
      %p145 = scmp.ne.s32.totalorder %s140, %s142
      %p146 = scmp.eq.s32.totalorder %s22, 0
      %p147 = por %p145, %p146
      %p148 = scmp.ne.s32.totalorder %s140, %s142
      %p149 = scmp.eq.s32.totalorder %s27, 1
      %p150 = por %p148, %p149
      %p151 = scmp.ne.s32.totalorder %s142, %s143
      %p152 = scmp.eq.s32.totalorder %s27, 0
      %p153 = por %p151, %p152
      %p154 = scmp.ne.s32.totalorder %s142, %s143
      %p155 = scmp.eq.s32.totalorder %s28, 1
      %p156 = por %p154, %p155
      %p158 = scmp.ne.s32.totalorder %s143, %s157
      %p159 = scmp.eq.s32.totalorder %s28, 0
      %p160 = por %p158, %p159
      %s162 = sadd.s32 %s161, 1
      %p165 = scmp.eq.s32.totalorder %s22, 1
      %p166 = scmp.ne.s32.totalorder %s161, %s163
      %p167 = scmp.eq.s32.totalorder %s22, 0
      %p168 = por %p166, %p167
      %p169 = scmp.ne.s32.totalorder %s161, %s163
      %p170 = scmp.eq.s32.totalorder %s27, 1
      %p171 = por %p169, %p170
      %p172 = scmp.ne.s32.totalorder %s163, %s164
      %p173 = scmp.eq.s32.totalorder %s27, 0
      %p174 = por %p172, %p173
      %p175 = scmp.ne.s32.totalorder %s163, %s164
      %p176 = scmp.eq.s32.totalorder %s28, 1
      %p177 = por %p175, %p176
      %p179 = scmp.ne.s32.totalorder %s164, %s178
      %p180 = scmp.eq.s32.totalorder %s28, 0
      %p181 = por %p179, %p180
      %s183 = sadd.s32 %s182, 1
      %p186 = scmp.eq.s32.totalorder %s22, 1
      %p187 = scmp.ne.s32.totalorder %s182, %s184
      %p188 = scmp.eq.s32.totalorder %s22, 0
      %p189 = por %p187, %p188
      %p190 = scmp.ne.s32.totalorder %s182, %s184
      %p191 = scmp.eq.s32.totalorder %s27, 1
      %p192 = por %p190, %p191
      %p193 = scmp.ne.s32.totalorder %s184, %s185
      %p194 = scmp.eq.s32.totalorder %s27, 0
      %p195 = por %p193, %p194
      %p196 = scmp.ne.s32.totalorder %s184, %s185
      %p197 = scmp.eq.s32.totalorder %s28, 1
      %p198 = por %p196, %p197
      %p200 = scmp.ne.s32.totalorder %s185, %s199
      %p201 = scmp.eq.s32.totalorder %s28, 0
      %p202 = por %p200, %p201
      %s204 = sadd.s32 %s203, 1
      %p207 = scmp.eq.s32.totalorder %s22, 1
      %p208 = scmp.ne.s32.totalorder %s203, %s205
      %p209 = scmp.eq.s32.totalorder %s22, 0
      %p210 = por %p208, %p209
      %p211 = scmp.ne.s32.totalorder %s203, %s205
      %p212 = scmp.eq.s32.totalorder %s27, 1
      %p213 = por %p211, %p212
      %p214 = scmp.ne.s32.totalorder %s205, %s206
      %p215 = scmp.eq.s32.totalorder %s27, 0
      %p216 = por %p214, %p215
      %p217 = scmp.ne.s32.totalorder %s205, %s206
      %p218 = scmp.eq.s32.totalorder %s28, 1
      %p219 = por %p217, %p218
      %p221 = scmp.ne.s32.totalorder %s206, %s220
      %p222 = scmp.eq.s32.totalorder %s28, 0
      %p223 = por %p221, %p222
      %s225 = sadd.s32 %s224, 1
      %p228 = scmp.eq.s32.totalorder %s22, 1
      %p229 = scmp.ne.s32.totalorder %s224, %s226
      %p230 = scmp.eq.s32.totalorder %s22, 0
      %p231 = por %p229, %p230
      %p232 = scmp.ne.s32.totalorder %s224, %s226
      %p233 = scmp.eq.s32.totalorder %s27, 1
      %p234 = por %p232, %p233
      %p235 = scmp.ne.s32.totalorder %s226, %s227
      %p236 = scmp.eq.s32.totalorder %s27, 0
      %p237 = por %p235, %p236
      %p238 = scmp.ne.s32.totalorder %s226, %s227
      %p239 = scmp.eq.s32.totalorder %s28, 1
      %p240 = por %p238, %p239
      %p242 = scmp.ne.s32.totalorder %s227, %s241
      %p243 = scmp.eq.s32.totalorder %s28, 0
      %p244 = por %p242, %p243
      %s246 = sadd.s32 %s245, 1
      %p249 = scmp.eq.s32.totalorder %s22, 1
      %p250 = scmp.ne.s32.totalorder %s245, %s247
      %p251 = scmp.eq.s32.totalorder %s22, 0
      %p252 = por %p250, %p251
      %p253 = scmp.ne.s32.totalorder %s245, %s247
      %p254 = scmp.eq.s32.totalorder %s27, 1
      %p255 = por %p253, %p254
      %p256 = scmp.ne.s32.totalorder %s247, %s248
      %p257 = scmp.eq.s32.totalorder %s27, 0
      %p258 = por %p256, %p257
      %p259 = scmp.ne.s32.totalorder %s247, %s248
      %p260 = scmp.eq.s32.totalorder %s28, 1
      %p261 = por %p259, %p260
      %p263 = scmp.ne.s32.totalorder %s248, %s262
      %p264 = scmp.eq.s32.totalorder %s28, 0
      %p265 = por %p263, %p264
      %s267 = sadd.s32 %s266, 1
      %p270 = scmp.eq.s32.totalorder %s22, 1
      %p271 = scmp.ne.s32.totalorder %s266, %s268
      %p272 = scmp.eq.s32.totalorder %s22, 0
      %p273 = por %p271, %p272
      %p274 = scmp.ne.s32.totalorder %s266, %s268
      %p275 = scmp.eq.s32.totalorder %s27, 1
      %p276 = por %p274, %p275
      %p277 = scmp.ne.s32.totalorder %s268, %s269
      %p278 = scmp.eq.s32.totalorder %s27, 0
      %p279 = por %p277, %p278
      %p280 = scmp.ne.s32.totalorder %s268, %s269
      %p281 = scmp.eq.s32.totalorder %s28, 1
      %p282 = por %p280, %p281
      %p284 = scmp.ne.s32.totalorder %s269, %s283
      %p285 = scmp.eq.s32.totalorder %s28, 0
      %p286 = por %p284, %p285
      %s287 = ssub.s32 %s22, %s29
      %p288 = scmp.eq.s32.totalorder %s287, 0
      %s290 = sadd.s32 %s289, 1
      %s291 = scalar_select %p288, %s289, %s290
      %p294 = pneg %p288
      %p295 = scmp.eq.s32.totalorder %s22, 1
      %p296 = por %p294, %p295
      %p297 = scmp.ne.s32.totalorder %s289, %s292
      %p298 = scmp.eq.s32.totalorder %s22, 0
      %p299 = por %p297, %p298
      %p300 = scmp.ne.s32.totalorder %s289, %s292
      %p301 = scmp.eq.s32.totalorder %s27, 1
      %p302 = por %p300, %p301
      %p303 = scmp.ne.s32.totalorder %s292, %s293
      %p304 = scmp.eq.s32.totalorder %s27, 0
      %p305 = por %p303, %p304
      %p306 = scmp.ne.s32.totalorder %s292, %s293
      %p307 = scmp.eq.s32.totalorder %s28, 1
      %p308 = por %p306, %p307
      %p310 = scmp.ne.s32.totalorder %s293, %s309
      %p311 = scmp.eq.s32.totalorder %s28, 0
      %p312 = por %p310, %p311
      %p313 = scmp.le.s32.totalorder 1, %s22
      %p314 = scmp.lt.s32.totalorder %s22, 3
      %p315 = pnand %p313, %p314
      %p316 = pneg %p315
      // Predicated region
      $region9: #{cifarnet_forward.1} parent=5 // pred_check
        _
      $region10: #{cifarnet_forward.1} parent=5 // pred_check_branch
        %318 = sbr.rel (%p315) target = $region12
      $region11: #{cifarnet_forward.1} parent=5 // pred_region
        %s319 = ssub.s32 %s22, 1
        // Predicated region
        $region13: #{cifarnet_forward.1} parent=11 // pred_check
          %p320 = pneg %p69
        $region14: #{cifarnet_forward.1} parent=11 // pred_check_branch
          %322 = sbr.rel (%p320) target = $region16
        $region15: #{cifarnet_forward.1} parent=11 // pred_region
          _
        $region16: #{cifarnet_forward.1} parent=11 // pred_fallthru
          _
        // Predicated region
        $region17: #{cifarnet_forward.1} parent=11 // pred_check
          %p323 = pneg %p90
        $region18: #{cifarnet_forward.1} parent=11 // pred_check_branch
          %325 = sbr.rel (%p323) target = $region20
        $region19: #{cifarnet_forward.1} parent=11 // pred_region
          _
        $region20: #{cifarnet_forward.1} parent=11 // pred_fallthru
          _
        // Predicated region
        $region21: #{cifarnet_forward.1} parent=11 // pred_check
          %p326 = pneg %p111
        $region22: #{cifarnet_forward.1} parent=11 // pred_check_branch
          %328 = sbr.rel (%p326) target = $region24
        $region23: #{cifarnet_forward.1} parent=11 // pred_region
          _
        $region24: #{cifarnet_forward.1} parent=11 // pred_fallthru
          _
        // Predicated region
        $region25: #{cifarnet_forward.1} parent=11 // pred_check
          %p329 = pneg %p132
        $region26: #{cifarnet_forward.1} parent=11 // pred_check_branch
          %331 = sbr.rel (%p329) target = $region28
        $region27: #{cifarnet_forward.1} parent=11 // pred_region
          _
        $region28: #{cifarnet_forward.1} parent=11 // pred_fallthru
          _
        // Predicated region
        $region29: #{cifarnet_forward.1} parent=11 // pred_check
          %p332 = pneg %p153
        $region30: #{cifarnet_forward.1} parent=11 // pred_check_branch
          %334 = sbr.rel (%p332) target = $region32
        $region31: #{cifarnet_forward.1} parent=11 // pred_region
          _
        $region32: #{cifarnet_forward.1} parent=11 // pred_fallthru
          _
        // Predicated region
        $region33: #{cifarnet_forward.1} parent=11 // pred_check
          %p335 = pneg %p174
        $region34: #{cifarnet_forward.1} parent=11 // pred_check_branch
          %337 = sbr.rel (%p335) target = $region36
        $region35: #{cifarnet_forward.1} parent=11 // pred_region
          _
        $region36: #{cifarnet_forward.1} parent=11 // pred_fallthru
          _
        // Predicated region
        $region37: #{cifarnet_forward.1} parent=11 // pred_check
          %p338 = pneg %p195
        $region38: #{cifarnet_forward.1} parent=11 // pred_check_branch
          %340 = sbr.rel (%p338) target = $region40
        $region39: #{cifarnet_forward.1} parent=11 // pred_region
          _
        $region40: #{cifarnet_forward.1} parent=11 // pred_fallthru
          _
        // Predicated region
        $region41: #{cifarnet_forward.1} parent=11 // pred_check
          %p341 = pneg %p216
        $region42: #{cifarnet_forward.1} parent=11 // pred_check_branch
          %343 = sbr.rel (%p341) target = $region44
        $region43: #{cifarnet_forward.1} parent=11 // pred_region
          _
        $region44: #{cifarnet_forward.1} parent=11 // pred_fallthru
          _
        // Predicated region
        $region45: #{cifarnet_forward.1} parent=11 // pred_check
          %p344 = pneg %p237
        $region46: #{cifarnet_forward.1} parent=11 // pred_check_branch
          %346 = sbr.rel (%p344) target = $region48
        $region47: #{cifarnet_forward.1} parent=11 // pred_region
          _
        $region48: #{cifarnet_forward.1} parent=11 // pred_fallthru
          _
        // Predicated region
        $region49: #{cifarnet_forward.1} parent=11 // pred_check
          %p347 = pneg %p258
        $region50: #{cifarnet_forward.1} parent=11 // pred_check_branch
          %349 = sbr.rel (%p347) target = $region52
        $region51: #{cifarnet_forward.1} parent=11 // pred_region
          _
        $region52: #{cifarnet_forward.1} parent=11 // pred_fallthru
          _
        // Predicated region
        $region53: #{cifarnet_forward.1} parent=11 // pred_check
          %p350 = pneg %p279
        $region54: #{cifarnet_forward.1} parent=11 // pred_check_branch
          %352 = sbr.rel (%p350) target = $region56
        $region55: #{cifarnet_forward.1} parent=11 // pred_region
          _
        $region56: #{cifarnet_forward.1} parent=11 // pred_fallthru
          _
      $region12: #{cifarnet_forward.1} parent=5 // pred_fallthru
        _
      %p353 = scmp.lt.s32.totalorder %s22, 2
      // Predicated region
      $region57: #{cifarnet_forward.1} parent=5 // pred_check
        %p354 = pneg %p353
      $region58: #{cifarnet_forward.1} parent=5 // pred_check_branch
        %356 = sbr.rel (%p354) target = $region60
      $region59: #{cifarnet_forward.1} parent=5 // pred_region
        // Predicated region
        $region61: #{cifarnet_forward.1} parent=59 // pred_check
          %p357 = pneg %p42
        $region62: #{cifarnet_forward.1} parent=59 // pred_check_branch
          %359 = sbr.rel (%p357) target = $region64
        $region63: #{cifarnet_forward.1} parent=59 // pred_region
          %p360 = scmp.lt.s32.totalorder %s22, 1
          %s361 = scalar_select %p360, %s22, 1
          %s362 = smul.addr %s361, 4
          %s363 = smul.addr %s362, 8
          %s364 = scalar_lea.vmem %s0, %s363
        $region64: #{cifarnet_forward.1} parent=59 // pred_fallthru
          _
      $region60: #{cifarnet_forward.1} parent=5 // pred_fallthru
        _
      %p365 = scmp.le.s32.totalorder 1, %s22
      %p366 = scmp.lt.s32.totalorder %s22, 3
      %p367 = pnand %p365, %p366
      %p368 = pneg %p367
      // Predicated region
      $region65: #{cifarnet_forward.1} parent=5 // pred_check
        _
      $region66: #{cifarnet_forward.1} parent=5 // pred_check_branch
        %370 = sbr.rel (%p367) target = $region68
      $region67: #{cifarnet_forward.1} parent=5 // pred_region
        %s371 = ssub.s32 %s22, 1
        %p372 = scmp.lt.s32.totalorder %s27, 1
        %s373 = scalar_select %p372, %s27, 1
        %s374 = smul.addr %s373, 4
        %s375 = smul.addr %s374, 8
        %s376 = scalar_lea.vmem %s0, %s375
        %p377 = pneg %p48
        %p378 = pneg %p45
        %p379 = pneg %p69
        %p380 = pneg %p66
        %p381 = pneg %p90
        %p382 = pneg %p87
        %p383 = pneg %p111
        %p384 = pneg %p108
        %p385 = pneg %p132
        %p386 = pneg %p129
        %p387 = pneg %p153
        %p388 = pneg %p150
        %p389 = pneg %p174
        %p390 = pneg %p171
        %p391 = pneg %p195
        %p392 = pneg %p192
        %p393 = pneg %p216
        %p394 = pneg %p213
        %p395 = pneg %p237
        %p396 = pneg %p234
        %p397 = pneg %p258
        %p398 = pneg %p255
        %p399 = pneg %p279
        %p400 = pneg %p276
        %p401 = pneg %p305
        %p402 = pneg %p302
        %s403 = sand.u32 %s292, 1
        %s404 = scalar_lea.sflag [#allocation14], %s403
        %s405 = sand.u32 %s292, 1
        %s406 = scalar_lea.vmem [#allocation13], %s405
        %p407 = scmp.lt.s32.totalorder %s27, 1
        %s408 = scalar_select %p407, %s27, 1
        %s409 = smul.addr %s408, 4
        %s410 = smul.addr %s409, 8
        %s411 = scalar_lea.vmem %s0, %s410
        // Predicated region
        $region69: #{cifarnet_forward.1} parent=67 // pred_check
          _
        $region70: #{cifarnet_forward.1} parent=67 // pred_check_branch
          %413 = sbr.rel (0) target = $region72
        $region71: #{cifarnet_forward.1} parent=67 // pred_region
          loop: start=0, step=1, limit=1
          $region73: #{cifarnet_forward.1} parent=71 // loop_pre_header
            _
          $region74: #{cifarnet_forward.1} parent=71 // loop_header
            %s415 = sphi 0, %s419
            %p416 = scmp.ge.s32.totalorder %s415, 1
            %s420 = sphi %s9, %s9
            %s421 = sphi [#allocation11], [#allocation11]
          $region75: #{cifarnet_forward.1} parent=71 // loop_header_branch
            %418 = sbr.rel (%p416) target = $region79
          $region76: #{cifarnet_forward.1} parent=71 // loop_body
            %v422 = vld [vmem:[%s420] sm:$0xff]
            %423 = vst [vmem:[%s421] sm:$0xff] %v422
            %v424 = vld [vmem:[%s420 + $0x8] sm:$0xff]
            %425 = vst [vmem:[%s421 + $0x8] sm:$0xff] %v424
            %v426 = vld [vmem:[%s420 + $0x10] sm:$0xff]
            %427 = vst [vmem:[%s421 + $0x10] sm:$0xff] %v426
            %v428 = vld [vmem:[%s420 + $0x18] sm:$0xff]
            %429 = vst [vmem:[%s421 + $0x18] sm:$0xff] %v428
            %v430 = vld [vmem:[%s420 + $0x20] sm:$0xff]
            %431 = vst [vmem:[%s421 + $0x20] sm:$0xff] %v430
            %v432 = vld [vmem:[%s420 + $0x28] sm:$0xff]
            %433 = vst [vmem:[%s421 + $0x28] sm:$0xff] %v432
            %v434 = vld [vmem:[%s420 + $0x30] sm:$0xff]
            %435 = vst [vmem:[%s421 + $0x30] sm:$0xff] %v434
            %v436 = vld [vmem:[%s420 + $0x38] sm:$0xff]
            %437 = vst [vmem:[%s421 + $0x38] sm:$0xff] %v436
            %v438 = vld [vmem:[%s420 + $0x40] sm:$0xff]
            %439 = vst [vmem:[%s421 + $0x40] sm:$0xff] %v438
            %v440 = vld [vmem:[%s420 + $0x48] sm:$0xff]
            %441 = vst [vmem:[%s421 + $0x48] sm:$0xff] %v440
            %v442 = vld [vmem:[%s420 + $0x50] sm:$0xff]
            %443 = vst [vmem:[%s421 + $0x50] sm:$0xff] %v442
            %v444 = vld [vmem:[%s420 + $0x58] sm:$0xff]
            %445 = vst [vmem:[%s421 + $0x58] sm:$0xff] %v444
            %v446 = vld [vmem:[%s420 + $0x60] sm:$0xff]
            %447 = vst [vmem:[%s421 + $0x60] sm:$0xff] %v446
            %v448 = vld [vmem:[%s420 + $0x68] sm:$0xff]
            %449 = vst [vmem:[%s421 + $0x68] sm:$0xff] %v448
            %v450 = vld [vmem:[%s420 + $0x70] sm:$0xff]
            %451 = vst [vmem:[%s421 + $0x70] sm:$0xff] %v450
            %v452 = vld [vmem:[%s420 + $0x78] sm:$0xff]
            %453 = vst [vmem:[%s421 + $0x78] sm:$0xff] %v452
            %v454 = vld [vmem:[%s420 + $0x80] sm:$0xff]
            %455 = vst [vmem:[%s421 + $0x80] sm:$0xff] %v454
            %v456 = vld [vmem:[%s420 + $0x88] sm:$0xff]
            %457 = vst [vmem:[%s421 + $0x88] sm:$0xff] %v456
            %v458 = vld [vmem:[%s420 + $0x90] sm:$0xff]
            %459 = vst [vmem:[%s421 + $0x90] sm:$0xff] %v458
            %v460 = vld [vmem:[%s420 + $0x98] sm:$0xff]
            %461 = vst [vmem:[%s421 + $0x98] sm:$0xff] %v460
            %v462 = vld [vmem:[%s420 + $0xa0] sm:$0xff]
            %463 = vst [vmem:[%s421 + $0xa0] sm:$0xff] %v462
            %v464 = vld [vmem:[%s420 + $0xa8] sm:$0xff]
            %465 = vst [vmem:[%s421 + $0xa8] sm:$0xff] %v464
            %v466 = vld [vmem:[%s420 + $0xb0] sm:$0xff]
            %467 = vst [vmem:[%s421 + $0xb0] sm:$0xff] %v466
            %v468 = vld [vmem:[%s420 + $0xb8] sm:$0xff]
            %469 = vst [vmem:[%s421 + $0xb8] sm:$0xff] %v468
            %v470 = vld [vmem:[%s420 + $0xc0] sm:$0xff]
            %471 = vst [vmem:[%s421 + $0xc0] sm:$0xff] %v470
            %v472 = vld [vmem:[%s420 + $0xc8] sm:$0xff]
            %473 = vst [vmem:[%s421 + $0xc8] sm:$0xff] %v472
            %v474 = vld [vmem:[%s420 + $0xd0] sm:$0xff]
            %475 = vst [vmem:[%s421 + $0xd0] sm:$0xff] %v474
            %v476 = vld [vmem:[%s420 + $0xd8] sm:$0xff]
            %477 = vst [vmem:[%s421 + $0xd8] sm:$0xff] %v476
            %v478 = vld [vmem:[%s420 + $0xe0] sm:$0xff]
            %479 = vst [vmem:[%s421 + $0xe0] sm:$0xff] %v478
            %v480 = vld [vmem:[%s420 + $0xe8] sm:$0xff]
            %481 = vst [vmem:[%s421 + $0xe8] sm:$0xff] %v480
            %v482 = vld [vmem:[%s420 + $0xf0] sm:$0xff]
            %483 = vst [vmem:[%s421 + $0xf0] sm:$0xff] %v482
            %v484 = vld [vmem:[%s420 + $0xf8] sm:$0xff]
            %485 = vst [vmem:[%s421 + $0xf8] sm:$0xff] %v484
            %v486 = vld [vmem:[%s420 + $0x100] sm:$0xff]
            %487 = vst [vmem:[%s421 + $0x100] sm:$0xff] %v486
            %v488 = vld [vmem:[%s420 + $0x108] sm:$0xff]
            %489 = vst [vmem:[%s421 + $0x108] sm:$0xff] %v488
            %v490 = vld [vmem:[%s420 + $0x110] sm:$0xff]
            %491 = vst [vmem:[%s421 + $0x110] sm:$0xff] %v490
            %v492 = vld [vmem:[%s420 + $0x118] sm:$0xff]
            %493 = vst [vmem:[%s421 + $0x118] sm:$0xff] %v492
            %v494 = vld [vmem:[%s420 + $0x120] sm:$0xff]
            %495 = vst [vmem:[%s421 + $0x120] sm:$0xff] %v494
            %v496 = vld [vmem:[%s420 + $0x128] sm:$0xff]
            %497 = vst [vmem:[%s421 + $0x128] sm:$0xff] %v496
            %v498 = vld [vmem:[%s420 + $0x130] sm:$0xff]
            %499 = vst [vmem:[%s421 + $0x130] sm:$0xff] %v498
            %v500 = vld [vmem:[%s420 + $0x138] sm:$0xff]
            %501 = vst [vmem:[%s421 + $0x138] sm:$0xff] %v500
            %v502 = vld [vmem:[%s420 + $0x140] sm:$0xff]
            %503 = vst [vmem:[%s421 + $0x140] sm:$0xff] %v502
            %v504 = vld [vmem:[%s420 + $0x148] sm:$0xff]
            %505 = vst [vmem:[%s421 + $0x148] sm:$0xff] %v504
            %v506 = vld [vmem:[%s420 + $0x150] sm:$0xff]
            %507 = vst [vmem:[%s421 + $0x150] sm:$0xff] %v506
            %v508 = vld [vmem:[%s420 + $0x158] sm:$0xff]
            %509 = vst [vmem:[%s421 + $0x158] sm:$0xff] %v508
            %v510 = vld [vmem:[%s420 + $0x160] sm:$0xff]
            %511 = vst [vmem:[%s421 + $0x160] sm:$0xff] %v510
            %v512 = vld [vmem:[%s420 + $0x168] sm:$0xff]
            %513 = vst [vmem:[%s421 + $0x168] sm:$0xff] %v512
            %v514 = vld [vmem:[%s420 + $0x170] sm:$0xff]
            %515 = vst [vmem:[%s421 + $0x170] sm:$0xff] %v514
            %v516 = vld [vmem:[%s420 + $0x178] sm:$0xff]
            %517 = vst [vmem:[%s421 + $0x178] sm:$0xff] %v516
            %v518 = vld [vmem:[%s420 + $0x180] sm:$0xff]
            %519 = vst [vmem:[%s421 + $0x180] sm:$0xff] %v518
            %v520 = vld [vmem:[%s420 + $0x188] sm:$0xff]
            %521 = vst [vmem:[%s421 + $0x188] sm:$0xff] %v520
            %v522 = vld [vmem:[%s420 + $0x190] sm:$0xff]
            %523 = vst [vmem:[%s421 + $0x190] sm:$0xff] %v522
            %v524 = vld [vmem:[%s420 + $0x198] sm:$0xff]
            %525 = vst [vmem:[%s421 + $0x198] sm:$0xff] %v524
            %v526 = vld [vmem:[%s420 + $0x1a0] sm:$0xff]
            %527 = vst [vmem:[%s421 + $0x1a0] sm:$0xff] %v526
            %v528 = vld [vmem:[%s420 + $0x1a8] sm:$0xff]
            %529 = vst [vmem:[%s421 + $0x1a8] sm:$0xff] %v528
            %v530 = vld [vmem:[%s420 + $0x1b0] sm:$0xff]
            %531 = vst [vmem:[%s421 + $0x1b0] sm:$0xff] %v530
            %v532 = vld [vmem:[%s420 + $0x1b8] sm:$0xff]
            %533 = vst [vmem:[%s421 + $0x1b8] sm:$0xff] %v532
            %v534 = vld [vmem:[%s420 + $0x1c0] sm:$0xff]
            %535 = vst [vmem:[%s421 + $0x1c0] sm:$0xff] %v534
            %v536 = vld [vmem:[%s420 + $0x1c8] sm:$0xff]
            %537 = vst [vmem:[%s421 + $0x1c8] sm:$0xff] %v536
            %v538 = vld [vmem:[%s420 + $0x1d0] sm:$0xff]
            %539 = vst [vmem:[%s421 + $0x1d0] sm:$0xff] %v538
            %v540 = vld [vmem:[%s420 + $0x1d8] sm:$0xff]
            %541 = vst [vmem:[%s421 + $0x1d8] sm:$0xff] %v540
            %v542 = vld [vmem:[%s420 + $0x1e0] sm:$0xff]
            %543 = vst [vmem:[%s421 + $0x1e0] sm:$0xff] %v542
            %v544 = vld [vmem:[%s420 + $0x1e8] sm:$0xff]
            %545 = vst [vmem:[%s421 + $0x1e8] sm:$0xff] %v544
            %v546 = vld [vmem:[%s420 + $0x1f0] sm:$0xff]
            %547 = vst [vmem:[%s421 + $0x1f0] sm:$0xff] %v546
            %v548 = vld [vmem:[%s420 + $0x1f8] sm:$0xff]
            %549 = vst [vmem:[%s421 + $0x1f8] sm:$0xff] %v548
            %v550 = vld [vmem:[%s420 + $0x200] sm:$0xff]
            %551 = vst [vmem:[%s421 + $0x200] sm:$0xff] %v550
            %v552 = vld [vmem:[%s420 + $0x208] sm:$0xff]
            %553 = vst [vmem:[%s421 + $0x208] sm:$0xff] %v552
            %v554 = vld [vmem:[%s420 + $0x210] sm:$0xff]
            %555 = vst [vmem:[%s421 + $0x210] sm:$0xff] %v554
            %v556 = vld [vmem:[%s420 + $0x218] sm:$0xff]
            %557 = vst [vmem:[%s421 + $0x218] sm:$0xff] %v556
            %v558 = vld [vmem:[%s420 + $0x220] sm:$0xff]
            %559 = vst [vmem:[%s421 + $0x220] sm:$0xff] %v558
            %v560 = vld [vmem:[%s420 + $0x228] sm:$0xff]
            %561 = vst [vmem:[%s421 + $0x228] sm:$0xff] %v560
            %v562 = vld [vmem:[%s420 + $0x230] sm:$0xff]
            %563 = vst [vmem:[%s421 + $0x230] sm:$0xff] %v562
            %v564 = vld [vmem:[%s420 + $0x238] sm:$0xff]
            %565 = vst [vmem:[%s421 + $0x238] sm:$0xff] %v564
            %v566 = vld [vmem:[%s420 + $0x240] sm:$0xff]
            %567 = vst [vmem:[%s421 + $0x240] sm:$0xff] %v566
            %v568 = vld [vmem:[%s420 + $0x248] sm:$0xff]
            %569 = vst [vmem:[%s421 + $0x248] sm:$0xff] %v568
            %v570 = vld [vmem:[%s420 + $0x250] sm:$0xff]
            %571 = vst [vmem:[%s421 + $0x250] sm:$0xff] %v570
            %v572 = vld [vmem:[%s420 + $0x258] sm:$0xff]
            %573 = vst [vmem:[%s421 + $0x258] sm:$0xff] %v572
            %v574 = vld [vmem:[%s420 + $0x260] sm:$0xff]
            %575 = vst [vmem:[%s421 + $0x260] sm:$0xff] %v574
            %v576 = vld [vmem:[%s420 + $0x268] sm:$0xff]
            %577 = vst [vmem:[%s421 + $0x268] sm:$0xff] %v576
            %v578 = vld [vmem:[%s420 + $0x270] sm:$0xff]
            %579 = vst [vmem:[%s421 + $0x270] sm:$0xff] %v578
            %v580 = vld [vmem:[%s420 + $0x278] sm:$0xff]
            %581 = vst [vmem:[%s421 + $0x278] sm:$0xff] %v580
            %v582 = vld [vmem:[%s420 + $0x280] sm:$0xff]
            %583 = vst [vmem:[%s421 + $0x280] sm:$0xff] %v582
            %v584 = vld [vmem:[%s420 + $0x288] sm:$0xff]
            %585 = vst [vmem:[%s421 + $0x288] sm:$0xff] %v584
            %v586 = vld [vmem:[%s420 + $0x290] sm:$0xff]
            %587 = vst [vmem:[%s421 + $0x290] sm:$0xff] %v586
            %v588 = vld [vmem:[%s420 + $0x298] sm:$0xff]
            %589 = vst [vmem:[%s421 + $0x298] sm:$0xff] %v588
            %v590 = vld [vmem:[%s420 + $0x2a0] sm:$0xff]
            %591 = vst [vmem:[%s421 + $0x2a0] sm:$0xff] %v590
            %v592 = vld [vmem:[%s420 + $0x2a8] sm:$0xff]
            %593 = vst [vmem:[%s421 + $0x2a8] sm:$0xff] %v592
            %v594 = vld [vmem:[%s420 + $0x2b0] sm:$0xff]
            %595 = vst [vmem:[%s421 + $0x2b0] sm:$0xff] %v594
            %v596 = vld [vmem:[%s420 + $0x2b8] sm:$0xff]
            %597 = vst [vmem:[%s421 + $0x2b8] sm:$0xff] %v596
            %v598 = vld [vmem:[%s420 + $0x2c0] sm:$0xff]
            %599 = vst [vmem:[%s421 + $0x2c0] sm:$0xff] %v598
            %v600 = vld [vmem:[%s420 + $0x2c8] sm:$0xff]
            %601 = vst [vmem:[%s421 + $0x2c8] sm:$0xff] %v600
            %v602 = vld [vmem:[%s420 + $0x2d0] sm:$0xff]
            %603 = vst [vmem:[%s421 + $0x2d0] sm:$0xff] %v602
            %v604 = vld [vmem:[%s420 + $0x2d8] sm:$0xff]
            %605 = vst [vmem:[%s421 + $0x2d8] sm:$0xff] %v604
            %v606 = vld [vmem:[%s420 + $0x2e0] sm:$0xff]
            %607 = vst [vmem:[%s421 + $0x2e0] sm:$0xff] %v606
            %v608 = vld [vmem:[%s420 + $0x2e8] sm:$0xff]
            %609 = vst [vmem:[%s421 + $0x2e8] sm:$0xff] %v608
            %v610 = vld [vmem:[%s420 + $0x2f0] sm:$0xff]
            %611 = vst [vmem:[%s421 + $0x2f0] sm:$0xff] %v610
            %v612 = vld [vmem:[%s420 + $0x2f8] sm:$0xff]
            %613 = vst [vmem:[%s421 + $0x2f8] sm:$0xff] %v612
            %v614 = vld [vmem:[%s420 + $0x300] sm:$0xff]
            %615 = vst [vmem:[%s421 + $0x300] sm:$0xff] %v614
            %v616 = vld [vmem:[%s420 + $0x308] sm:$0xff]
            %617 = vst [vmem:[%s421 + $0x308] sm:$0xff] %v616
            %v618 = vld [vmem:[%s420 + $0x310] sm:$0xff]
            %619 = vst [vmem:[%s421 + $0x310] sm:$0xff] %v618
            %v620 = vld [vmem:[%s420 + $0x318] sm:$0xff]
            %621 = vst [vmem:[%s421 + $0x318] sm:$0xff] %v620
            %v622 = vld [vmem:[%s420 + $0x320] sm:$0xff]
            %623 = vst [vmem:[%s421 + $0x320] sm:$0xff] %v622
            %v624 = vld [vmem:[%s420 + $0x328] sm:$0xff]
            %625 = vst [vmem:[%s421 + $0x328] sm:$0xff] %v624
            %v626 = vld [vmem:[%s420 + $0x330] sm:$0xff]
            %627 = vst [vmem:[%s421 + $0x330] sm:$0xff] %v626
            %v628 = vld [vmem:[%s420 + $0x338] sm:$0xff]
            %629 = vst [vmem:[%s421 + $0x338] sm:$0xff] %v628
            %v630 = vld [vmem:[%s420 + $0x340] sm:$0xff]
            %631 = vst [vmem:[%s421 + $0x340] sm:$0xff] %v630
            %v632 = vld [vmem:[%s420 + $0x348] sm:$0xff]
            %633 = vst [vmem:[%s421 + $0x348] sm:$0xff] %v632
            %v634 = vld [vmem:[%s420 + $0x350] sm:$0xff]
            %635 = vst [vmem:[%s421 + $0x350] sm:$0xff] %v634
            %v636 = vld [vmem:[%s420 + $0x358] sm:$0xff]
            %637 = vst [vmem:[%s421 + $0x358] sm:$0xff] %v636
            %v638 = vld [vmem:[%s420 + $0x360] sm:$0xff]
            %639 = vst [vmem:[%s421 + $0x360] sm:$0xff] %v638
            %v640 = vld [vmem:[%s420 + $0x368] sm:$0xff]
            %641 = vst [vmem:[%s421 + $0x368] sm:$0xff] %v640
            %v642 = vld [vmem:[%s420 + $0x370] sm:$0xff]
            %643 = vst [vmem:[%s421 + $0x370] sm:$0xff] %v642
            %v644 = vld [vmem:[%s420 + $0x378] sm:$0xff]
            %645 = vst [vmem:[%s421 + $0x378] sm:$0xff] %v644
            %v646 = vld [vmem:[%s420 + $0x380] sm:$0xff]
            %647 = vst [vmem:[%s421 + $0x380] sm:$0xff] %v646
            %v648 = vld [vmem:[%s420 + $0x388] sm:$0xff]
            %649 = vst [vmem:[%s421 + $0x388] sm:$0xff] %v648
            %v650 = vld [vmem:[%s420 + $0x390] sm:$0xff]
            %651 = vst [vmem:[%s421 + $0x390] sm:$0xff] %v650
            %v652 = vld [vmem:[%s420 + $0x398] sm:$0xff]
            %653 = vst [vmem:[%s421 + $0x398] sm:$0xff] %v652
            %v654 = vld [vmem:[%s420 + $0x3a0] sm:$0xff]
            %655 = vst [vmem:[%s421 + $0x3a0] sm:$0xff] %v654
            %v656 = vld [vmem:[%s420 + $0x3a8] sm:$0xff]
            %657 = vst [vmem:[%s421 + $0x3a8] sm:$0xff] %v656
            %v658 = vld [vmem:[%s420 + $0x3b0] sm:$0xff]
            %659 = vst [vmem:[%s421 + $0x3b0] sm:$0xff] %v658
            %v660 = vld [vmem:[%s420 + $0x3b8] sm:$0xff]
            %661 = vst [vmem:[%s421 + $0x3b8] sm:$0xff] %v660
            %v662 = vld [vmem:[%s420 + $0x3c0] sm:$0xff]
            %663 = vst [vmem:[%s421 + $0x3c0] sm:$0xff] %v662
            %v664 = vld [vmem:[%s420 + $0x3c8] sm:$0xff]
            %665 = vst [vmem:[%s421 + $0x3c8] sm:$0xff] %v664
            %v666 = vld [vmem:[%s420 + $0x3d0] sm:$0xff]
            %667 = vst [vmem:[%s421 + $0x3d0] sm:$0xff] %v666
            %v668 = vld [vmem:[%s420 + $0x3d8] sm:$0xff]
            %669 = vst [vmem:[%s421 + $0x3d8] sm:$0xff] %v668
            %v670 = vld [vmem:[%s420 + $0x3e0] sm:$0xff]
            %671 = vst [vmem:[%s421 + $0x3e0] sm:$0xff] %v670
            %v672 = vld [vmem:[%s420 + $0x3e8] sm:$0xff]
            %673 = vst [vmem:[%s421 + $0x3e8] sm:$0xff] %v672
            %v674 = vld [vmem:[%s420 + $0x3f0] sm:$0xff]
            %675 = vst [vmem:[%s421 + $0x3f0] sm:$0xff] %v674
            %v676 = vld [vmem:[%s420 + $0x3f8] sm:$0xff]
            %677 = vst [vmem:[%s421 + $0x3f8] sm:$0xff] %v676
            %v678 = vld [vmem:[%s420 + $0x400] sm:$0xff]
            %679 = vst [vmem:[%s421 + $0x400] sm:$0xff] %v678
            %v680 = vld [vmem:[%s420 + $0x408] sm:$0xff]
            %681 = vst [vmem:[%s421 + $0x408] sm:$0xff] %v680
            %v682 = vld [vmem:[%s420 + $0x410] sm:$0xff]
            %683 = vst [vmem:[%s421 + $0x410] sm:$0xff] %v682
            %v684 = vld [vmem:[%s420 + $0x418] sm:$0xff]
            %685 = vst [vmem:[%s421 + $0x418] sm:$0xff] %v684
            %v686 = vld [vmem:[%s420 + $0x420] sm:$0xff]
            %687 = vst [vmem:[%s421 + $0x420] sm:$0xff] %v686
            %v688 = vld [vmem:[%s420 + $0x428] sm:$0xff]
            %689 = vst [vmem:[%s421 + $0x428] sm:$0xff] %v688
            %v690 = vld [vmem:[%s420 + $0x430] sm:$0xff]
            %691 = vst [vmem:[%s421 + $0x430] sm:$0xff] %v690
            %v692 = vld [vmem:[%s420 + $0x438] sm:$0xff]
            %693 = vst [vmem:[%s421 + $0x438] sm:$0xff] %v692
            %v694 = vld [vmem:[%s420 + $0x440] sm:$0xff]
            %695 = vst [vmem:[%s421 + $0x440] sm:$0xff] %v694
            %v696 = vld [vmem:[%s420 + $0x448] sm:$0xff]
            %697 = vst [vmem:[%s421 + $0x448] sm:$0xff] %v696
            %v698 = vld [vmem:[%s420 + $0x450] sm:$0xff]
            %699 = vst [vmem:[%s421 + $0x450] sm:$0xff] %v698
            %v700 = vld [vmem:[%s420 + $0x458] sm:$0xff]
            %701 = vst [vmem:[%s421 + $0x458] sm:$0xff] %v700
            %v702 = vld [vmem:[%s420 + $0x460] sm:$0xff]
            %703 = vst [vmem:[%s421 + $0x460] sm:$0xff] %v702
            %v704 = vld [vmem:[%s420 + $0x468] sm:$0xff]
            %705 = vst [vmem:[%s421 + $0x468] sm:$0xff] %v704
            %v706 = vld [vmem:[%s420 + $0x470] sm:$0xff]
            %707 = vst [vmem:[%s421 + $0x470] sm:$0xff] %v706
            %v708 = vld [vmem:[%s420 + $0x478] sm:$0xff]
            %709 = vst [vmem:[%s421 + $0x478] sm:$0xff] %v708
          $region77: #{cifarnet_forward.1} parent=71 // loop_footer
            %s419 = sadd.s32 1, %s415
          $region78: #{cifarnet_forward.1} parent=71 // loop_footer_branch
            %414 = sbr.rel target = $region74
          $region79: #{cifarnet_forward.1} parent=71 // loop_exit
            _
        $region72: #{cifarnet_forward.1} parent=67 // pred_fallthru
          _
        // Predicated region
        $region80: #{cifarnet_forward.1} parent=67 // pred_check
          _
        $region81: #{cifarnet_forward.1} parent=67 // pred_check_branch
          %711 = sbr.rel target = $region83
        $region82: #{cifarnet_forward.1} parent=67 // pred_region
          _
        $region83: #{cifarnet_forward.1} parent=67 // pred_fallthru
          _
        // Predicated region
        $region84: #{cifarnet_forward.1} parent=67 // pred_check
          _
        $region85: #{cifarnet_forward.1} parent=67 // pred_check_branch
          %714 = sbr.rel (0) target = $region87
        $region86: #{cifarnet_forward.1} parent=67 // pred_region
          %715 = vsyncadd [#allocation12], 18432
        $region87: #{cifarnet_forward.1} parent=67 // pred_fallthru
          _
        %vm716 = vcmask 785408
        %717 = vst.msk [vmem:[#allocation2] sm:$0xff] %vm716, 0.0
        %718 = vst.msk [vmem:[#allocation2 + $0x8] sm:$0xff] %vm716, 0.0
        %719 = vst.msk [vmem:[#allocation2 + $0x10] sm:$0xff] %vm716, 0.0
        %720 = vst.msk [vmem:[#allocation2 + $0x18] sm:$0xff] %vm716, 0.0
        %vm721 = vcmask 779264
        %722 = vst.msk [vmem:[#allocation2 + $0x20] sm:$0x3] %vm721, 0.0
        %v723 = vld [vmem:[%s411] sm:$0xff]
        %v724 = vld [vmem:[%s411 + $0x8] sm:$0xff]
        %v725 = vld [vmem:[%s411 + $0x10] sm:$0xff]
        %v726 = vld [vmem:[%s411 + $0x18] sm:$0xff]
        %727 = vst.msk [vmem:[#allocation2 + $0x1] sm:$0xff] %vm716, %v723
        %728 = vst.msk [vmem:[#allocation2 + $0x9] sm:$0xff] %vm716, %v724
        %729 = vst.msk [vmem:[#allocation2 + $0x11] sm:$0xff] %vm716, %v725
        %730 = vst.msk [vmem:[#allocation2 + $0x19] sm:$0xff] %vm716, %v726
        %v731 = vld [vmem:[#allocation2] sm:$0xff]
        %v732 = vld [vmem:[#allocation2 + $0x8] sm:$0xff]
        %v733 = vld [vmem:[#allocation2 + $0x10] sm:$0xff]
        %v734 = vld [vmem:[#allocation2 + $0x18] sm:$0xff]
        %v735 = vld [vmem:[%s1] sm:$0xff]
        %v736 = vld [vmem:[%s1 + $0x8] sm:$0xff]
        %v737 = vld [vmem:[%s1 + $0x10] sm:$0xff]
        %v738 = vld [vmem:[%s1 + $0x18] sm:$0xff]
        %v739 = vld [vmem:[%s1 + $0x20] sm:$0xff]
        %v740 = vld [vmem:[%s1 + $0x28] sm:$0xff]
        %v741 = vld [vmem:[%s1 + $0x30] sm:$0xff]
        %v742 = vld [vmem:[%s1 + $0x38] sm:$0xff]
        %v743 = vld [vmem:[%s1 + $0x40] sm:$0xff]
        %v744 = vld [vmem:[%s1 + $0x48] sm:$0xff]
        %v745 = vld [vmem:[%s1 + $0x50] sm:$0xff]
        %v746 = vld [vmem:[%s1 + $0x58] sm:$0xff]
        %v747 = vunpack.c.l.bf16 %v735
        %v748 = vunpack.c.h.bf16 %v735
        %v749 = vunpack.c.l.bf16 %v736
        %v750 = vunpack.c.h.bf16 %v736
        %v751 = vunpack.c.l.bf16 %v737
        %v752 = vunpack.c.h.bf16 %v737
        %v753 = vunpack.c.l.bf16 %v738
        %v754 = vunpack.c.h.bf16 %v738
        %v755 = vunpack.c.l.bf16 %v739
        %v756 = vunpack.c.h.bf16 %v739
        %v757 = vunpack.c.l.bf16 %v740
        %v758 = vunpack.c.h.bf16 %v740
        %v759 = vunpack.c.l.bf16 %v741
        %v760 = vunpack.c.h.bf16 %v741
        %v761 = vunpack.c.l.bf16 %v742
        %v762 = vunpack.c.h.bf16 %v742
        %v763 = vunpack.c.l.bf16 %v743
        %v764 = vunpack.c.h.bf16 %v743
        %v765 = vunpack.c.l.bf16 %v744
        %v766 = vunpack.c.h.bf16 %v744
        %v767 = vunpack.c.l.bf16 %v745
        %v768 = vunpack.c.h.bf16 %v745
        %v769 = vunpack.c.l.bf16 %v746
        %v770 = vunpack.c.h.bf16 %v746
        %v771 = vld [vmem:[#allocation2 + $0x1] sm:$0xff]
        %v772 = vld [vmem:[#allocation2 + $0x9] sm:$0xff]
        %v773 = vld [vmem:[#allocation2 + $0x11] sm:$0xff]
        %v774 = vld [vmem:[#allocation2 + $0x19] sm:$0xff]
        %s775 = scalar_lea.vmem %s1, 96
        %v776 = vld [vmem:[%s775] sm:$0xff]
        %v777 = vld [vmem:[%s775 + $0x8] sm:$0xff]
        %v778 = vld [vmem:[%s775 + $0x10] sm:$0xff]
        %v779 = vld [vmem:[%s775 + $0x18] sm:$0xff]
        %v780 = vld [vmem:[%s775 + $0x20] sm:$0xff]
        %v781 = vld [vmem:[%s775 + $0x28] sm:$0xff]
        %v782 = vld [vmem:[%s775 + $0x30] sm:$0xff]
        %v783 = vld [vmem:[%s775 + $0x38] sm:$0xff]
        %v784 = vld [vmem:[%s775 + $0x40] sm:$0xff]
        %v785 = vld [vmem:[%s775 + $0x48] sm:$0xff]
        %v786 = vld [vmem:[%s775 + $0x50] sm:$0xff]
        %v787 = vld [vmem:[%s775 + $0x58] sm:$0xff]
        %v788 = vunpack.c.l.bf16 %v776
        %v789 = vunpack.c.h.bf16 %v776
        %v790 = vunpack.c.l.bf16 %v777
        %v791 = vunpack.c.h.bf16 %v777
        %v792 = vunpack.c.l.bf16 %v778
        %v793 = vunpack.c.h.bf16 %v778
        %v794 = vunpack.c.l.bf16 %v779
        %v795 = vunpack.c.h.bf16 %v779
        %v796 = vunpack.c.l.bf16 %v780
        %v797 = vunpack.c.h.bf16 %v780
        %v798 = vunpack.c.l.bf16 %v781
        %v799 = vunpack.c.h.bf16 %v781
        %v800 = vunpack.c.l.bf16 %v782
        %v801 = vunpack.c.h.bf16 %v782
        %v802 = vunpack.c.l.bf16 %v783
        %v803 = vunpack.c.h.bf16 %v783
        %v804 = vunpack.c.l.bf16 %v784
        %v805 = vunpack.c.h.bf16 %v784
        %v806 = vunpack.c.l.bf16 %v785
        %v807 = vunpack.c.h.bf16 %v785
        %v808 = vunpack.c.l.bf16 %v786
        %v809 = vunpack.c.h.bf16 %v786
        %v810 = vunpack.c.l.bf16 %v787
        %v811 = vunpack.c.h.bf16 %v787
        %v813 = vsel %vm716, %v771, 0
        %v816 = vsel %vm716, %v772, 0
        %v819 = vsel %vm716, %v773, 0
        %v822 = vsel %vm716, %v774, 0
        %824 = vmatpush.msra.mxu0 0.0
        %825 = vmatpush.msra.mxu0 0.0
        %826 = vmatpush.msra.mxu0 0.0
        %827 = vmatpush.msra.mxu0 0.0
        %828 = vmatpush.msra.mxu0 %v810
        %829 = vmatpush.msra.mxu0 %v808
        %830 = vmatpush.msra.mxu0 %v806
        %831 = vmatpush.msra.mxu0 %v804
        %832 = vmatpush.msra.mxu0 %v802
        %833 = vmatpush.msra.mxu0 %v800
        %834 = vmatpush.msra.mxu0 %v798
        %835 = vmatpush.msra.mxu0 %v796
        %836 = vmatpush.msra.mxu0 %v794
        %837 = vmatpush.msra.mxu0 %v792
        %838 = vmatpush.msra.mxu0 %v790
        %839 = vmatpush.msra.mxu0 %v788
        %840 = vmatmul.f32.gmra.mxu0 %v813
        %v841 = vpop.f32.mrf.mxu0
        %v842 = vadd.f32 0.0, %v841
        %843 = vmatmul.f32.gmra.mxu0 %v816
        %v844 = vpop.f32.mrf.mxu0
        %v845 = vadd.f32 0.0, %v844
        %846 = vmatmul.f32.gmra.mxu0 %v819
        %v847 = vpop.f32.mrf.mxu0
        %v848 = vadd.f32 0.0, %v847
        %849 = vmatmul.f32.gmra.mxu0 %v822
        %v850 = vpop.f32.mrf.mxu0
        %v851 = vadd.f32 0.0, %v850
        %852 = vdwg.mxu0
        %853 = vmatpush.msra.mxu0 0.0
        %854 = vmatpush.msra.mxu0 0.0
        %855 = vmatpush.msra.mxu0 0.0
        %856 = vmatpush.msra.mxu0 0.0
        %857 = vmatpush.msra.mxu0 %v811
        %858 = vmatpush.msra.mxu0 %v809
        %859 = vmatpush.msra.mxu0 %v807
        %860 = vmatpush.msra.mxu0 %v805
        %861 = vmatpush.msra.mxu0 %v803
        %862 = vmatpush.msra.mxu0 %v801
        %863 = vmatpush.msra.mxu0 %v799
        %864 = vmatpush.msra.mxu0 %v797
        %865 = vmatpush.msra.mxu0 %v795
        %866 = vmatpush.msra.mxu0 %v793
        %867 = vmatpush.msra.mxu0 %v791
        %868 = vmatpush.msra.mxu0 %v789
        %869 = vmatmul.f32.gmra.mxu0 %v813
        %v870 = vpop.f32.mrf.mxu0
        %v871 = vadd.f32 0.0, %v870
        %872 = vmatmul.f32.gmra.mxu0 %v816
        %v873 = vpop.f32.mrf.mxu0
        %v874 = vadd.f32 0.0, %v873
        %875 = vmatmul.f32.gmra.mxu0 %v819
        %v876 = vpop.f32.mrf.mxu0
        %v877 = vadd.f32 0.0, %v876
        %878 = vmatmul.f32.gmra.mxu0 %v822
        %v879 = vpop.f32.mrf.mxu0
        %v880 = vadd.f32 0.0, %v879
        %881 = vdwg.mxu0
        %v883 = vsel %vm716, %v731, 0
        %v886 = vsel %vm716, %v732, 0
        %v889 = vsel %vm716, %v733, 0
        %v892 = vsel %vm716, %v734, 0
        %894 = vmatpush.msra.mxu0 0.0
        %895 = vmatpush.msra.mxu0 0.0
        %896 = vmatpush.msra.mxu0 0.0
        %897 = vmatpush.msra.mxu0 0.0
        %898 = vmatpush.msra.mxu0 %v769
        %899 = vmatpush.msra.mxu0 %v767
        %900 = vmatpush.msra.mxu0 %v765
        %901 = vmatpush.msra.mxu0 %v763
        %902 = vmatpush.msra.mxu0 %v761
        %903 = vmatpush.msra.mxu0 %v759
        %904 = vmatpush.msra.mxu0 %v757
        %905 = vmatpush.msra.mxu0 %v755
        %906 = vmatpush.msra.mxu0 %v753
        %907 = vmatpush.msra.mxu0 %v751
        %908 = vmatpush.msra.mxu0 %v749
        %909 = vmatpush.msra.mxu0 %v747
        %910 = vmatmul.f32.gmra.mxu0 %v883
        %v911 = vpop.f32.mrf.mxu0
        %v912 = vadd.f32 %v842, %v911
        %913 = vmatmul.f32.gmra.mxu0 %v886
        %v914 = vpop.f32.mrf.mxu0
        %v915 = vadd.f32 %v845, %v914
        %916 = vmatmul.f32.gmra.mxu0 %v889
        %v917 = vpop.f32.mrf.mxu0
        %v918 = vadd.f32 %v848, %v917
        %919 = vmatmul.f32.gmra.mxu0 %v892
        %v920 = vpop.f32.mrf.mxu0
        %v921 = vadd.f32 %v851, %v920
        %922 = vdwg.mxu0
        %923 = vmatpush.msra.mxu0 0.0
        %924 = vmatpush.msra.mxu0 0.0
        %925 = vmatpush.msra.mxu0 0.0
        %926 = vmatpush.msra.mxu0 0.0
        %927 = vmatpush.msra.mxu0 %v770
        %928 = vmatpush.msra.mxu0 %v768
        %929 = vmatpush.msra.mxu0 %v766
        %930 = vmatpush.msra.mxu0 %v764
        %931 = vmatpush.msra.mxu0 %v762
        %932 = vmatpush.msra.mxu0 %v760
        %933 = vmatpush.msra.mxu0 %v758
        %934 = vmatpush.msra.mxu0 %v756
        %935 = vmatpush.msra.mxu0 %v754
        %936 = vmatpush.msra.mxu0 %v752
        %937 = vmatpush.msra.mxu0 %v750
        %938 = vmatpush.msra.mxu0 %v748
        %939 = vmatmul.f32.gmra.mxu0 %v883
        %v940 = vpop.f32.mrf.mxu0
        %v941 = vadd.f32 %v871, %v940
        %942 = vmatmul.f32.gmra.mxu0 %v886
        %v943 = vpop.f32.mrf.mxu0
        %v944 = vadd.f32 %v874, %v943
        %945 = vmatmul.f32.gmra.mxu0 %v889
        %v946 = vpop.f32.mrf.mxu0
        %v947 = vadd.f32 %v877, %v946
        %948 = vmatmul.f32.gmra.mxu0 %v892
        %v949 = vpop.f32.mrf.mxu0
        %v950 = vadd.f32 %v880, %v949
        %951 = vdwg.mxu0
        %v952 = vld [vmem:[#allocation2 + $0x2] sm:$0xff]
        %v953 = vld [vmem:[#allocation2 + $0xa] sm:$0xff]
        %v954 = vld [vmem:[#allocation2 + $0x12] sm:$0xff]
        %v955 = vld [vmem:[#allocation2 + $0x1a] sm:$0xff]
        %s956 = scalar_lea.vmem %s1, 192
        %v957 = vld [vmem:[%s956] sm:$0xff]
        %v958 = vld [vmem:[%s956 + $0x8] sm:$0xff]
        %v959 = vld [vmem:[%s956 + $0x10] sm:$0xff]
        %v960 = vld [vmem:[%s956 + $0x18] sm:$0xff]
        %v961 = vld [vmem:[%s956 + $0x20] sm:$0xff]
        %v962 = vld [vmem:[%s956 + $0x28] sm:$0xff]
        %v963 = vld [vmem:[%s956 + $0x30] sm:$0xff]
        %v964 = vld [vmem:[%s956 + $0x38] sm:$0xff]
        %v965 = vld [vmem:[%s956 + $0x40] sm:$0xff]
        %v966 = vld [vmem:[%s956 + $0x48] sm:$0xff]
        %v967 = vld [vmem:[%s956 + $0x50] sm:$0xff]
        %v968 = vld [vmem:[%s956 + $0x58] sm:$0xff]
        %v969 = vunpack.c.l.bf16 %v957
        %v970 = vunpack.c.h.bf16 %v957
        %v971 = vunpack.c.l.bf16 %v958
        %v972 = vunpack.c.h.bf16 %v958
        %v973 = vunpack.c.l.bf16 %v959
        %v974 = vunpack.c.h.bf16 %v959
        %v975 = vunpack.c.l.bf16 %v960
        %v976 = vunpack.c.h.bf16 %v960
        %v977 = vunpack.c.l.bf16 %v961
        %v978 = vunpack.c.h.bf16 %v961
        %v979 = vunpack.c.l.bf16 %v962
        %v980 = vunpack.c.h.bf16 %v962
        %v981 = vunpack.c.l.bf16 %v963
        %v982 = vunpack.c.h.bf16 %v963
        %v983 = vunpack.c.l.bf16 %v964
        %v984 = vunpack.c.h.bf16 %v964
        %v985 = vunpack.c.l.bf16 %v965
        %v986 = vunpack.c.h.bf16 %v965
        %v987 = vunpack.c.l.bf16 %v966
        %v988 = vunpack.c.h.bf16 %v966
        %v989 = vunpack.c.l.bf16 %v967
        %v990 = vunpack.c.h.bf16 %v967
        %v991 = vunpack.c.l.bf16 %v968
        %v992 = vunpack.c.h.bf16 %v968
        %v994 = vsel %vm716, %v952, 0
        %v997 = vsel %vm716, %v953, 0
        %v1000 = vsel %vm716, %v954, 0
        %v1003 = vsel %vm716, %v955, 0
        %1005 = vmatpush.msra.mxu0 0.0
        %1006 = vmatpush.msra.mxu0 0.0
        %1007 = vmatpush.msra.mxu0 0.0
        %1008 = vmatpush.msra.mxu0 0.0
        %1009 = vmatpush.msra.mxu0 %v991
        %1010 = vmatpush.msra.mxu0 %v989
        %1011 = vmatpush.msra.mxu0 %v987
        %1012 = vmatpush.msra.mxu0 %v985
        %1013 = vmatpush.msra.mxu0 %v983
        %1014 = vmatpush.msra.mxu0 %v981
        %1015 = vmatpush.msra.mxu0 %v979
        %1016 = vmatpush.msra.mxu0 %v977
        %1017 = vmatpush.msra.mxu0 %v975
        %1018 = vmatpush.msra.mxu0 %v973
        %1019 = vmatpush.msra.mxu0 %v971
        %1020 = vmatpush.msra.mxu0 %v969
        %1021 = vmatmul.f32.gmra.mxu0 %v994
        %v1022 = vpop.f32.mrf.mxu0
        %v1023 = vadd.f32 0.0, %v1022
        %1024 = vmatmul.f32.gmra.mxu0 %v997
        %v1025 = vpop.f32.mrf.mxu0
        %v1026 = vadd.f32 0.0, %v1025
        %1027 = vmatmul.f32.gmra.mxu0 %v1000
        %v1028 = vpop.f32.mrf.mxu0
        %v1029 = vadd.f32 0.0, %v1028
        %1030 = vmatmul.f32.gmra.mxu0 %v1003
        %v1031 = vpop.f32.mrf.mxu0
        %v1032 = vadd.f32 0.0, %v1031
        %1033 = vdwg.mxu0
        %1034 = vmatpush.msra.mxu0 0.0
        %1035 = vmatpush.msra.mxu0 0.0
        %1036 = vmatpush.msra.mxu0 0.0
        %1037 = vmatpush.msra.mxu0 0.0
        %1038 = vmatpush.msra.mxu0 %v992
        %1039 = vmatpush.msra.mxu0 %v990
        %1040 = vmatpush.msra.mxu0 %v988
        %1041 = vmatpush.msra.mxu0 %v986
        %1042 = vmatpush.msra.mxu0 %v984
        %1043 = vmatpush.msra.mxu0 %v982
        %1044 = vmatpush.msra.mxu0 %v980
        %1045 = vmatpush.msra.mxu0 %v978
        %1046 = vmatpush.msra.mxu0 %v976
        %1047 = vmatpush.msra.mxu0 %v974
        %1048 = vmatpush.msra.mxu0 %v972
        %1049 = vmatpush.msra.mxu0 %v970
        %1050 = vmatmul.f32.gmra.mxu0 %v994
        %v1051 = vpop.f32.mrf.mxu0
        %v1052 = vadd.f32 0.0, %v1051
        %1053 = vmatmul.f32.gmra.mxu0 %v997
        %v1054 = vpop.f32.mrf.mxu0
        %v1055 = vadd.f32 0.0, %v1054
        %1056 = vmatmul.f32.gmra.mxu0 %v1000
        %v1057 = vpop.f32.mrf.mxu0
        %v1058 = vadd.f32 0.0, %v1057
        %1059 = vmatmul.f32.gmra.mxu0 %v1003
        %v1060 = vpop.f32.mrf.mxu0
        %v1061 = vadd.f32 0.0, %v1060
        %1062 = vdwg.mxu0
        %v1063 = vadd.f32 %v912, %v1023
        %v1064 = vadd.f32 %v941, %v1052
        %v1065 = vadd.f32 %v915, %v1026
        %v1066 = vadd.f32 %v944, %v1055
        %v1067 = vadd.f32 %v918, %v1029
        %v1068 = vadd.f32 %v947, %v1058
        %v1069 = vadd.f32 %v921, %v1032
        %v1070 = vadd.f32 %v950, %v1061
        %v1071 = vld [vmem:[%s2] sm:$0x3]
        %v1073 = vperm.slane %v1071, 0
        %v1074 = vperm.slane %v1071, 1
        %v1077 = vadd.f32 %v1063, %v1073
        %v1078 = vadd.f32 %v1064, %v1074
        %v1079 = vadd.f32 %v1065, %v1073
        %v1080 = vadd.f32 %v1066, %v1074
        %v1081 = vadd.f32 %v1067, %v1073
        %v1082 = vadd.f32 %v1068, %v1074
        %v1083 = vadd.f32 %v1069, %v1073
        %v1084 = vadd.f32 %v1070, %v1074
        %v1085 = vmax.f32 %v1077, 0.0
        %v1086 = vmax.f32 %v1078, 0.0
        %v1087 = vmax.f32 %v1079, 0.0
        %v1088 = vmax.f32 %v1080, 0.0
        %v1089 = vmax.f32 %v1081, 0.0
        %v1090 = vmax.f32 %v1082, 0.0
        %v1091 = vmax.f32 %v1083, 0.0
        %v1092 = vmax.f32 %v1084, 0.0
        %1093 = vst [vmem:[#allocation3] sm:$0xff] %v1085
        %1094 = vst [vmem:[#allocation3 + $0x8] sm:$0xff] %v1086
        %1095 = vst [vmem:[#allocation3 + $0x10] sm:$0xff] %v1087
        %1096 = vst [vmem:[#allocation3 + $0x18] sm:$0xff] %v1088
        %1097 = vst [vmem:[#allocation3 + $0x20] sm:$0xff] %v1089
        %1098 = vst [vmem:[#allocation3 + $0x28] sm:$0xff] %v1090
        %1099 = vst [vmem:[#allocation3 + $0x30] sm:$0xff] %v1091
        %1100 = vst [vmem:[#allocation3 + $0x38] sm:$0xff] %v1092
        %v1101 = vld [vmem:[#allocation3] sm:$0xff]
        %v1102 = vld [vmem:[#allocation3 + $0x8] sm:$0xff]
        %v1103 = vld [vmem:[#allocation3 + $0x10] sm:$0xff]
        %v1104 = vld [vmem:[#allocation3 + $0x18] sm:$0xff]
        %v1105 = vld [vmem:[#allocation3 + $0x20] sm:$0xff]
        %v1106 = vld [vmem:[#allocation3 + $0x28] sm:$0xff]
        %v1107 = vld [vmem:[#allocation3 + $0x30] sm:$0x3f]
        %v1108 = vld [vmem:[#allocation3 + $0x38] sm:$0x3f]
        %v1109 = vld [vmem:[%s3] sm:$0xff]
        %v1110 = vld [vmem:[%s3 + $0x8] sm:$0xff]
        %v1111 = vld [vmem:[%s3 + $0x10] sm:$0xff]
        %v1112 = vld [vmem:[%s3 + $0x18] sm:$0xff]
        %v1113 = vld [vmem:[%s3 + $0x20] sm:$0xff]
        %v1114 = vld [vmem:[%s3 + $0x28] sm:$0xff]
        %v1115 = vld [vmem:[%s3 + $0x30] sm:$0xff]
        %v1116 = vld [vmem:[%s3 + $0x38] sm:$0xff]
        %v1117 = vld [vmem:[%s3 + $0x40] sm:$0xff]
        %v1118 = vld [vmem:[%s3 + $0x48] sm:$0xff]
        %v1119 = vld [vmem:[%s3 + $0x50] sm:$0xff]
        %v1120 = vld [vmem:[%s3 + $0x58] sm:$0xff]
        %v1121 = vld [vmem:[%s3 + $0x60] sm:$0xff]
        %v1122 = vld [vmem:[%s3 + $0x68] sm:$0xff]
        %v1123 = vld [vmem:[%s3 + $0x70] sm:$0xff]
        %v1124 = vld [vmem:[%s3 + $0x78] sm:$0xff]
        %v1125 = vld [vmem:[%s3 + $0x80] sm:$0xff]
        %v1126 = vld [vmem:[%s3 + $0x88] sm:$0xff]
        %v1127 = vld [vmem:[%s3 + $0x90] sm:$0xff]
        %v1128 = vld [vmem:[%s3 + $0x98] sm:$0xff]
        %v1129 = vld [vmem:[%s3 + $0xa0] sm:$0xff]
        %v1130 = vld [vmem:[%s3 + $0xa8] sm:$0xff]
        %v1131 = vld [vmem:[%s3 + $0xb0] sm:$0xff]
        %v1132 = vld [vmem:[%s3 + $0xb8] sm:$0xff]
        %v1133 = vld [vmem:[%s3 + $0xc0] sm:$0xff]
        %v1134 = vld [vmem:[%s3 + $0xc8] sm:$0xff]
        %v1135 = vld [vmem:[%s3 + $0xd0] sm:$0xff]
        %v1136 = vld [vmem:[%s3 + $0xd8] sm:$0xff]
        %v1137 = vld [vmem:[%s3 + $0xe0] sm:$0xff]
        %v1138 = vld [vmem:[%s3 + $0xe8] sm:$0xff]
        %v1139 = vld [vmem:[%s3 + $0xf0] sm:$0xff]
        %v1140 = vld [vmem:[%s3 + $0xf8] sm:$0xff]
        %v1141 = vunpack.c.l.bf16 %v1109
        %v1142 = vunpack.c.h.bf16 %v1109
        %v1143 = vunpack.c.l.bf16 %v1110
        %v1144 = vunpack.c.h.bf16 %v1110
        %v1145 = vunpack.c.l.bf16 %v1111
        %v1146 = vunpack.c.h.bf16 %v1111
        %v1147 = vunpack.c.l.bf16 %v1112
        %v1148 = vunpack.c.h.bf16 %v1112
        %v1149 = vunpack.c.l.bf16 %v1113
        %v1150 = vunpack.c.h.bf16 %v1113
        %v1151 = vunpack.c.l.bf16 %v1114
        %v1152 = vunpack.c.h.bf16 %v1114
        %v1153 = vunpack.c.l.bf16 %v1115
        %v1154 = vunpack.c.h.bf16 %v1115
        %v1155 = vunpack.c.l.bf16 %v1116
        %v1156 = vunpack.c.h.bf16 %v1116
        %v1157 = vunpack.c.l.bf16 %v1117
        %v1158 = vunpack.c.h.bf16 %v1117
        %v1159 = vunpack.c.l.bf16 %v1118
        %v1160 = vunpack.c.h.bf16 %v1118
        %v1161 = vunpack.c.l.bf16 %v1119
        %v1162 = vunpack.c.h.bf16 %v1119
        %v1163 = vunpack.c.l.bf16 %v1120
        %v1164 = vunpack.c.h.bf16 %v1120
        %v1165 = vunpack.c.l.bf16 %v1121
        %v1166 = vunpack.c.h.bf16 %v1121
        %v1167 = vunpack.c.l.bf16 %v1122
        %v1168 = vunpack.c.h.bf16 %v1122
        %v1169 = vunpack.c.l.bf16 %v1123
        %v1170 = vunpack.c.h.bf16 %v1123
        %v1171 = vunpack.c.l.bf16 %v1124
        %v1172 = vunpack.c.h.bf16 %v1124
        %v1173 = vunpack.c.l.bf16 %v1125
        %v1174 = vunpack.c.h.bf16 %v1125
        %v1175 = vunpack.c.l.bf16 %v1126
        %v1176 = vunpack.c.h.bf16 %v1126
        %v1177 = vunpack.c.l.bf16 %v1127
        %v1178 = vunpack.c.h.bf16 %v1127
        %v1179 = vunpack.c.l.bf16 %v1128
        %v1180 = vunpack.c.h.bf16 %v1128
        %v1181 = vunpack.c.l.bf16 %v1129
        %v1182 = vunpack.c.h.bf16 %v1129
        %v1183 = vunpack.c.l.bf16 %v1130
        %v1184 = vunpack.c.h.bf16 %v1130
        %v1185 = vunpack.c.l.bf16 %v1131
        %v1186 = vunpack.c.h.bf16 %v1131
        %v1187 = vunpack.c.l.bf16 %v1132
        %v1188 = vunpack.c.h.bf16 %v1132
        %v1189 = vunpack.c.l.bf16 %v1133
        %v1190 = vunpack.c.h.bf16 %v1133
        %v1191 = vunpack.c.l.bf16 %v1134
        %v1192 = vunpack.c.h.bf16 %v1134
        %v1193 = vunpack.c.l.bf16 %v1135
        %v1194 = vunpack.c.h.bf16 %v1135
        %v1195 = vunpack.c.l.bf16 %v1136
        %v1196 = vunpack.c.h.bf16 %v1136
        %v1197 = vunpack.c.l.bf16 %v1137
        %v1198 = vunpack.c.h.bf16 %v1137
        %v1199 = vunpack.c.l.bf16 %v1138
        %v1200 = vunpack.c.h.bf16 %v1138
        %v1201 = vunpack.c.l.bf16 %v1139
        %v1202 = vunpack.c.h.bf16 %v1139
        %v1203 = vunpack.c.l.bf16 %v1140
        %v1204 = vunpack.c.h.bf16 %v1140
        %v1205 = vld [vmem:[#allocation3] sm:$0xfe]
        %v1206 = vld [vmem:[#allocation3 + $0x8] sm:$0xfe]
        %v1207 = vld [vmem:[#allocation3 + $0x30] sm:$0x7f]
        %v1208 = vld [vmem:[#allocation3 + $0x38] sm:$0x7f]
        %s1209 = scalar_lea.vmem %s3, 256
        %v1210 = vld [vmem:[%s1209] sm:$0xff]
        %v1211 = vld [vmem:[%s1209 + $0x8] sm:$0xff]
        %v1212 = vld [vmem:[%s1209 + $0x10] sm:$0xff]
        %v1213 = vld [vmem:[%s1209 + $0x18] sm:$0xff]
        %v1214 = vld [vmem:[%s1209 + $0x20] sm:$0xff]
        %v1215 = vld [vmem:[%s1209 + $0x28] sm:$0xff]
        %v1216 = vld [vmem:[%s1209 + $0x30] sm:$0xff]
        %v1217 = vld [vmem:[%s1209 + $0x38] sm:$0xff]
        %v1218 = vld [vmem:[%s1209 + $0x40] sm:$0xff]
        %v1219 = vld [vmem:[%s1209 + $0x48] sm:$0xff]
        %v1220 = vld [vmem:[%s1209 + $0x50] sm:$0xff]
        %v1221 = vld [vmem:[%s1209 + $0x58] sm:$0xff]
        %v1222 = vld [vmem:[%s1209 + $0x60] sm:$0xff]
        %v1223 = vld [vmem:[%s1209 + $0x68] sm:$0xff]
        %v1224 = vld [vmem:[%s1209 + $0x70] sm:$0xff]
        %v1225 = vld [vmem:[%s1209 + $0x78] sm:$0xff]
        %v1226 = vld [vmem:[%s1209 + $0x80] sm:$0xff]
        %v1227 = vld [vmem:[%s1209 + $0x88] sm:$0xff]
        %v1228 = vld [vmem:[%s1209 + $0x90] sm:$0xff]
        %v1229 = vld [vmem:[%s1209 + $0x98] sm:$0xff]
        %v1230 = vld [vmem:[%s1209 + $0xa0] sm:$0xff]
        %v1231 = vld [vmem:[%s1209 + $0xa8] sm:$0xff]
        %v1232 = vld [vmem:[%s1209 + $0xb0] sm:$0xff]
        %v1233 = vld [vmem:[%s1209 + $0xb8] sm:$0xff]
        %v1234 = vld [vmem:[%s1209 + $0xc0] sm:$0xff]
        %v1235 = vld [vmem:[%s1209 + $0xc8] sm:$0xff]
        %v1236 = vld [vmem:[%s1209 + $0xd0] sm:$0xff]
        %v1237 = vld [vmem:[%s1209 + $0xd8] sm:$0xff]
        %v1238 = vld [vmem:[%s1209 + $0xe0] sm:$0xff]
        %v1239 = vld [vmem:[%s1209 + $0xe8] sm:$0xff]
        %v1240 = vld [vmem:[%s1209 + $0xf0] sm:$0xff]
        %v1241 = vld [vmem:[%s1209 + $0xf8] sm:$0xff]
        %v1242 = vunpack.c.l.bf16 %v1210
        %v1243 = vunpack.c.h.bf16 %v1210
        %v1244 = vunpack.c.l.bf16 %v1211
        %v1245 = vunpack.c.h.bf16 %v1211
        %v1246 = vunpack.c.l.bf16 %v1212
        %v1247 = vunpack.c.h.bf16 %v1212
        %v1248 = vunpack.c.l.bf16 %v1213
        %v1249 = vunpack.c.h.bf16 %v1213
        %v1250 = vunpack.c.l.bf16 %v1214
        %v1251 = vunpack.c.h.bf16 %v1214
        %v1252 = vunpack.c.l.bf16 %v1215
        %v1253 = vunpack.c.h.bf16 %v1215
        %v1254 = vunpack.c.l.bf16 %v1216
        %v1255 = vunpack.c.h.bf16 %v1216
        %v1256 = vunpack.c.l.bf16 %v1217
        %v1257 = vunpack.c.h.bf16 %v1217
        %v1258 = vunpack.c.l.bf16 %v1218
        %v1259 = vunpack.c.h.bf16 %v1218
        %v1260 = vunpack.c.l.bf16 %v1219
        %v1261 = vunpack.c.h.bf16 %v1219
        %v1262 = vunpack.c.l.bf16 %v1220
        %v1263 = vunpack.c.h.bf16 %v1220
        %v1264 = vunpack.c.l.bf16 %v1221
        %v1265 = vunpack.c.h.bf16 %v1221
        %v1266 = vunpack.c.l.bf16 %v1222
        %v1267 = vunpack.c.h.bf16 %v1222
        %v1268 = vunpack.c.l.bf16 %v1223
        %v1269 = vunpack.c.h.bf16 %v1223
        %v1270 = vunpack.c.l.bf16 %v1224
        %v1271 = vunpack.c.h.bf16 %v1224
        %v1272 = vunpack.c.l.bf16 %v1225
        %v1273 = vunpack.c.h.bf16 %v1225
        %v1274 = vunpack.c.l.bf16 %v1226
        %v1275 = vunpack.c.h.bf16 %v1226
        %v1276 = vunpack.c.l.bf16 %v1227
        %v1277 = vunpack.c.h.bf16 %v1227
        %v1278 = vunpack.c.l.bf16 %v1228
        %v1279 = vunpack.c.h.bf16 %v1228
        %v1280 = vunpack.c.l.bf16 %v1229
        %v1281 = vunpack.c.h.bf16 %v1229
        %v1282 = vunpack.c.l.bf16 %v1230
        %v1283 = vunpack.c.h.bf16 %v1230
        %v1284 = vunpack.c.l.bf16 %v1231
        %v1285 = vunpack.c.h.bf16 %v1231
        %v1286 = vunpack.c.l.bf16 %v1232
        %v1287 = vunpack.c.h.bf16 %v1232
        %v1288 = vunpack.c.l.bf16 %v1233
        %v1289 = vunpack.c.h.bf16 %v1233
        %v1290 = vunpack.c.l.bf16 %v1234
        %v1291 = vunpack.c.h.bf16 %v1234
        %v1292 = vunpack.c.l.bf16 %v1235
        %v1293 = vunpack.c.h.bf16 %v1235
        %v1294 = vunpack.c.l.bf16 %v1236
        %v1295 = vunpack.c.h.bf16 %v1236
        %v1296 = vunpack.c.l.bf16 %v1237
        %v1297 = vunpack.c.h.bf16 %v1237
        %v1298 = vunpack.c.l.bf16 %v1238
        %v1299 = vunpack.c.h.bf16 %v1238
        %v1300 = vunpack.c.l.bf16 %v1239
        %v1301 = vunpack.c.h.bf16 %v1239
        %v1302 = vunpack.c.l.bf16 %v1240
        %v1303 = vunpack.c.h.bf16 %v1240
        %v1304 = vunpack.c.l.bf16 %v1241
        %v1305 = vunpack.c.h.bf16 %v1241
        %vm1314 = vcmask 1046528
        %v1315 = vrot.slane %v1205, 1
        %v1316 = vrot.slane %v1103, 1
        %v1317 = vsel %vm1314, %v1315, %v1316
        %v1318 = vrot.slane %v1206, 1
        %v1319 = vrot.slane %v1104, 1
        %v1320 = vsel %vm1314, %v1318, %v1319
        %v1321 = vrot.slane %v1105, 1
        %v1322 = vsel %vm1314, %v1316, %v1321
        %v1323 = vrot.slane %v1106, 1
        %v1324 = vsel %vm1314, %v1319, %v1323
        %v1325 = vrot.slane %v1207, 1
        %v1326 = vsel %vm1314, %v1321, %v1325
        %v1327 = vrot.slane %v1208, 1
        %v1328 = vsel %vm1314, %v1323, %v1327
        %1337 = vmatpush.msra.mxu0 %v1272
        %1338 = vmatpush.msra.mxu0 %v1270
        %1339 = vmatpush.msra.mxu0 %v1268
        %1340 = vmatpush.msra.mxu0 %v1266
        %1341 = vmatpush.msra.mxu0 %v1264
        %1342 = vmatpush.msra.mxu0 %v1262
        %1343 = vmatpush.msra.mxu0 %v1260
        %1344 = vmatpush.msra.mxu0 %v1258
        %1345 = vmatpush.msra.mxu0 %v1256
        %1346 = vmatpush.msra.mxu0 %v1254
        %1347 = vmatpush.msra.mxu0 %v1252
        %1348 = vmatpush.msra.mxu0 %v1250
        %1349 = vmatpush.msra.mxu0 %v1248
        %1350 = vmatpush.msra.mxu0 %v1246
        %1351 = vmatpush.msra.mxu0 %v1244
        %1352 = vmatpush.msra.mxu0 %v1242
        %1353 = vmatmul.f32.gmra.mxu0 %v1317
        %v1354 = vpop.f32.mrf.mxu0
        %v1355 = vadd.f32 0.0, %v1354
        %1356 = vmatmul.f32.gmra.mxu0 %v1322
        %v1357 = vpop.f32.mrf.mxu0
        %v1358 = vadd.f32 0.0, %v1357
        %1359 = vmatmul.f32.gmra.mxu0 %v1326
        %v1360 = vpop.f32.mrf.mxu0
        %v1361 = vadd.f32 0.0, %v1360
        %1362 = vmatmul.f32.gmra.mxu0 %v1325
        %v1363 = vpop.f32.mrf.mxu0
        %v1364 = vadd.f32 0.0, %v1363
        %1365 = vdwg.mxu0
        %1366 = vmatpush.msra.mxu0 %v1304
        %1367 = vmatpush.msra.mxu0 %v1302
        %1368 = vmatpush.msra.mxu0 %v1300
        %1369 = vmatpush.msra.mxu0 %v1298
        %1370 = vmatpush.msra.mxu0 %v1296
        %1371 = vmatpush.msra.mxu0 %v1294
        %1372 = vmatpush.msra.mxu0 %v1292
        %1373 = vmatpush.msra.mxu0 %v1290
        %1374 = vmatpush.msra.mxu0 %v1288
        %1375 = vmatpush.msra.mxu0 %v1286
        %1376 = vmatpush.msra.mxu0 %v1284
        %1377 = vmatpush.msra.mxu0 %v1282
        %1378 = vmatpush.msra.mxu0 %v1280
        %1379 = vmatpush.msra.mxu0 %v1278
        %1380 = vmatpush.msra.mxu0 %v1276
        %1381 = vmatpush.msra.mxu0 %v1274
        %1382 = vmatmul.f32.gmra.mxu0 %v1320
        %v1383 = vpop.f32.mrf.mxu0
        %v1384 = vadd.f32 %v1355, %v1383
        %1385 = vmatmul.f32.gmra.mxu0 %v1324
        %v1386 = vpop.f32.mrf.mxu0
        %v1387 = vadd.f32 %v1358, %v1386
        %1388 = vmatmul.f32.gmra.mxu0 %v1328
        %v1389 = vpop.f32.mrf.mxu0
        %v1390 = vadd.f32 %v1361, %v1389
        %1391 = vmatmul.f32.gmra.mxu0 %v1327
        %v1392 = vpop.f32.mrf.mxu0
        %v1393 = vadd.f32 %v1364, %v1392
        %1394 = vdwg.mxu0
        %1395 = vmatpush.msra.mxu0 %v1273
        %1396 = vmatpush.msra.mxu0 %v1271
        %1397 = vmatpush.msra.mxu0 %v1269
        %1398 = vmatpush.msra.mxu0 %v1267
        %1399 = vmatpush.msra.mxu0 %v1265
        %1400 = vmatpush.msra.mxu0 %v1263
        %1401 = vmatpush.msra.mxu0 %v1261
        %1402 = vmatpush.msra.mxu0 %v1259
        %1403 = vmatpush.msra.mxu0 %v1257
        %1404 = vmatpush.msra.mxu0 %v1255
        %1405 = vmatpush.msra.mxu0 %v1253
        %1406 = vmatpush.msra.mxu0 %v1251
        %1407 = vmatpush.msra.mxu0 %v1249
        %1408 = vmatpush.msra.mxu0 %v1247
        %1409 = vmatpush.msra.mxu0 %v1245
        %1410 = vmatpush.msra.mxu0 %v1243
        %1411 = vmatmul.f32.gmra.mxu0 %v1317
        %v1412 = vpop.f32.mrf.mxu0
        %v1413 = vadd.f32 0.0, %v1412
        %1414 = vmatmul.f32.gmra.mxu0 %v1322
        %v1415 = vpop.f32.mrf.mxu0
        %v1416 = vadd.f32 0.0, %v1415
        %1417 = vmatmul.f32.gmra.mxu0 %v1326
        %v1418 = vpop.f32.mrf.mxu0
        %v1419 = vadd.f32 0.0, %v1418
        %1420 = vmatmul.f32.gmra.mxu0 %v1325
        %v1421 = vpop.f32.mrf.mxu0
        %v1422 = vadd.f32 0.0, %v1421
        %1423 = vdwg.mxu0
        %1424 = vmatpush.msra.mxu0 %v1305
        %1425 = vmatpush.msra.mxu0 %v1303
        %1426 = vmatpush.msra.mxu0 %v1301
        %1427 = vmatpush.msra.mxu0 %v1299
        %1428 = vmatpush.msra.mxu0 %v1297
        %1429 = vmatpush.msra.mxu0 %v1295
        %1430 = vmatpush.msra.mxu0 %v1293
        %1431 = vmatpush.msra.mxu0 %v1291
        %1432 = vmatpush.msra.mxu0 %v1289
        %1433 = vmatpush.msra.mxu0 %v1287
        %1434 = vmatpush.msra.mxu0 %v1285
        %1435 = vmatpush.msra.mxu0 %v1283
        %1436 = vmatpush.msra.mxu0 %v1281
        %1437 = vmatpush.msra.mxu0 %v1279
        %1438 = vmatpush.msra.mxu0 %v1277
        %1439 = vmatpush.msra.mxu0 %v1275
        %1440 = vmatmul.f32.gmra.mxu0 %v1320
        %v1441 = vpop.f32.mrf.mxu0
        %v1442 = vadd.f32 %v1413, %v1441
        %1443 = vmatmul.f32.gmra.mxu0 %v1324
        %v1444 = vpop.f32.mrf.mxu0
        %v1445 = vadd.f32 %v1416, %v1444
        %1446 = vmatmul.f32.gmra.mxu0 %v1328
        %v1447 = vpop.f32.mrf.mxu0
        %v1448 = vadd.f32 %v1419, %v1447
        %1449 = vmatmul.f32.gmra.mxu0 %v1327
        %v1450 = vpop.f32.mrf.mxu0
        %v1451 = vadd.f32 %v1422, %v1450
        %1452 = vdwg.mxu0
        %1453 = vmatpush.msra.mxu0 %v1171
        %1454 = vmatpush.msra.mxu0 %v1169
        %1455 = vmatpush.msra.mxu0 %v1167
        %1456 = vmatpush.msra.mxu0 %v1165
        %1457 = vmatpush.msra.mxu0 %v1163
        %1458 = vmatpush.msra.mxu0 %v1161
        %1459 = vmatpush.msra.mxu0 %v1159
        %1460 = vmatpush.msra.mxu0 %v1157
        %1461 = vmatpush.msra.mxu0 %v1155
        %1462 = vmatpush.msra.mxu0 %v1153
        %1463 = vmatpush.msra.mxu0 %v1151
        %1464 = vmatpush.msra.mxu0 %v1149
        %1465 = vmatpush.msra.mxu0 %v1147
        %1466 = vmatpush.msra.mxu0 %v1145
        %1467 = vmatpush.msra.mxu0 %v1143
        %1468 = vmatpush.msra.mxu0 %v1141
        %1469 = vmatmul.f32.gmra.mxu0 %v1101
        %v1470 = vpop.f32.mrf.mxu0
        %v1471 = vadd.f32 %v1384, %v1470
        %1472 = vmatmul.f32.gmra.mxu0 %v1103
        %v1473 = vpop.f32.mrf.mxu0
        %v1474 = vadd.f32 %v1387, %v1473
        %1475 = vmatmul.f32.gmra.mxu0 %v1105
        %v1476 = vpop.f32.mrf.mxu0
        %v1477 = vadd.f32 %v1390, %v1476
        %1478 = vmatmul.f32.gmra.mxu0 %v1107
        %v1479 = vpop.f32.mrf.mxu0
        %v1480 = vadd.f32 %v1393, %v1479
        %1481 = vdwg.mxu0
        %1482 = vmatpush.msra.mxu0 %v1203
        %1483 = vmatpush.msra.mxu0 %v1201
        %1484 = vmatpush.msra.mxu0 %v1199
        %1485 = vmatpush.msra.mxu0 %v1197
        %1486 = vmatpush.msra.mxu0 %v1195
        %1487 = vmatpush.msra.mxu0 %v1193
        %1488 = vmatpush.msra.mxu0 %v1191
        %1489 = vmatpush.msra.mxu0 %v1189
        %1490 = vmatpush.msra.mxu0 %v1187
        %1491 = vmatpush.msra.mxu0 %v1185
        %1492 = vmatpush.msra.mxu0 %v1183
        %1493 = vmatpush.msra.mxu0 %v1181
        %1494 = vmatpush.msra.mxu0 %v1179
        %1495 = vmatpush.msra.mxu0 %v1177
        %1496 = vmatpush.msra.mxu0 %v1175
        %1497 = vmatpush.msra.mxu0 %v1173
        %1498 = vmatmul.f32.gmra.mxu0 %v1102
        %v1499 = vpop.f32.mrf.mxu0
        %v1500 = vadd.f32 %v1471, %v1499
        %1501 = vmatmul.f32.gmra.mxu0 %v1104
        %v1502 = vpop.f32.mrf.mxu0
        %v1503 = vadd.f32 %v1474, %v1502
        %1504 = vmatmul.f32.gmra.mxu0 %v1106
        %v1505 = vpop.f32.mrf.mxu0
        %v1506 = vadd.f32 %v1477, %v1505
        %1507 = vmatmul.f32.gmra.mxu0 %v1108
        %v1508 = vpop.f32.mrf.mxu0
        %v1509 = vadd.f32 %v1480, %v1508
        %1510 = vdwg.mxu0
        %1511 = vmatpush.msra.mxu0 %v1172
        %1512 = vmatpush.msra.mxu0 %v1170
        %1513 = vmatpush.msra.mxu0 %v1168
        %1514 = vmatpush.msra.mxu0 %v1166
        %1515 = vmatpush.msra.mxu0 %v1164
        %1516 = vmatpush.msra.mxu0 %v1162
        %1517 = vmatpush.msra.mxu0 %v1160
        %1518 = vmatpush.msra.mxu0 %v1158
        %1519 = vmatpush.msra.mxu0 %v1156
        %1520 = vmatpush.msra.mxu0 %v1154
        %1521 = vmatpush.msra.mxu0 %v1152
        %1522 = vmatpush.msra.mxu0 %v1150
        %1523 = vmatpush.msra.mxu0 %v1148
        %1524 = vmatpush.msra.mxu0 %v1146
        %1525 = vmatpush.msra.mxu0 %v1144
        %1526 = vmatpush.msra.mxu0 %v1142
        %1527 = vmatmul.f32.gmra.mxu0 %v1101
        %v1528 = vpop.f32.mrf.mxu0
        %v1529 = vadd.f32 %v1442, %v1528
        %1530 = vmatmul.f32.gmra.mxu0 %v1103
        %v1531 = vpop.f32.mrf.mxu0
        %v1532 = vadd.f32 %v1445, %v1531
        %1533 = vmatmul.f32.gmra.mxu0 %v1105
        %v1534 = vpop.f32.mrf.mxu0
        %v1535 = vadd.f32 %v1448, %v1534
        %1536 = vmatmul.f32.gmra.mxu0 %v1107
        %v1537 = vpop.f32.mrf.mxu0
        %v1538 = vadd.f32 %v1451, %v1537
        %1539 = vdwg.mxu0
        %1540 = vmatpush.msra.mxu0 %v1204
        %1541 = vmatpush.msra.mxu0 %v1202
        %1542 = vmatpush.msra.mxu0 %v1200
        %1543 = vmatpush.msra.mxu0 %v1198
        %1544 = vmatpush.msra.mxu0 %v1196
        %1545 = vmatpush.msra.mxu0 %v1194
        %1546 = vmatpush.msra.mxu0 %v1192
        %1547 = vmatpush.msra.mxu0 %v1190
        %1548 = vmatpush.msra.mxu0 %v1188
        %1549 = vmatpush.msra.mxu0 %v1186
        %1550 = vmatpush.msra.mxu0 %v1184
        %1551 = vmatpush.msra.mxu0 %v1182
        %1552 = vmatpush.msra.mxu0 %v1180
        %1553 = vmatpush.msra.mxu0 %v1178
        %1554 = vmatpush.msra.mxu0 %v1176
        %1555 = vmatpush.msra.mxu0 %v1174
        %1556 = vmatmul.f32.gmra.mxu0 %v1102
        %v1557 = vpop.f32.mrf.mxu0
        %v1558 = vadd.f32 %v1529, %v1557
        %1559 = vmatmul.f32.gmra.mxu0 %v1104
        %v1560 = vpop.f32.mrf.mxu0
        %v1561 = vadd.f32 %v1532, %v1560
        %1562 = vmatmul.f32.gmra.mxu0 %v1106
        %v1563 = vpop.f32.mrf.mxu0
        %v1564 = vadd.f32 %v1535, %v1563
        %1565 = vmatmul.f32.gmra.mxu0 %v1108
        %v1566 = vpop.f32.mrf.mxu0
        %v1567 = vadd.f32 %v1538, %v1566
        %1568 = vdwg.mxu0
        %v1569 = vld [vmem:[#allocation3] sm:$0xfc]
        %v1570 = vld [vmem:[#allocation3 + $0x8] sm:$0xfc]
        %v1571 = vld [vmem:[#allocation3 + $0x30] sm:$0xff]
        %v1572 = vld [vmem:[#allocation3 + $0x38] sm:$0xff]
        %s1573 = scalar_lea.vmem %s3, 512
        %v1574 = vld [vmem:[%s1573] sm:$0xff]
        %v1575 = vld [vmem:[%s1573 + $0x8] sm:$0xff]
        %v1576 = vld [vmem:[%s1573 + $0x10] sm:$0xff]
        %v1577 = vld [vmem:[%s1573 + $0x18] sm:$0xff]
        %v1578 = vld [vmem:[%s1573 + $0x20] sm:$0xff]
        %v1579 = vld [vmem:[%s1573 + $0x28] sm:$0xff]
        %v1580 = vld [vmem:[%s1573 + $0x30] sm:$0xff]
        %v1581 = vld [vmem:[%s1573 + $0x38] sm:$0xff]
        %v1582 = vld [vmem:[%s1573 + $0x40] sm:$0xff]
        %v1583 = vld [vmem:[%s1573 + $0x48] sm:$0xff]
        %v1584 = vld [vmem:[%s1573 + $0x50] sm:$0xff]
        %v1585 = vld [vmem:[%s1573 + $0x58] sm:$0xff]
        %v1586 = vld [vmem:[%s1573 + $0x60] sm:$0xff]
        %v1587 = vld [vmem:[%s1573 + $0x68] sm:$0xff]
        %v1588 = vld [vmem:[%s1573 + $0x70] sm:$0xff]
        %v1589 = vld [vmem:[%s1573 + $0x78] sm:$0xff]
        %v1590 = vld [vmem:[%s1573 + $0x80] sm:$0xff]
        %v1591 = vld [vmem:[%s1573 + $0x88] sm:$0xff]
        %v1592 = vld [vmem:[%s1573 + $0x90] sm:$0xff]
        %v1593 = vld [vmem:[%s1573 + $0x98] sm:$0xff]
        %v1594 = vld [vmem:[%s1573 + $0xa0] sm:$0xff]
        %v1595 = vld [vmem:[%s1573 + $0xa8] sm:$0xff]
        %v1596 = vld [vmem:[%s1573 + $0xb0] sm:$0xff]
        %v1597 = vld [vmem:[%s1573 + $0xb8] sm:$0xff]
        %v1598 = vld [vmem:[%s1573 + $0xc0] sm:$0xff]
        %v1599 = vld [vmem:[%s1573 + $0xc8] sm:$0xff]
        %v1600 = vld [vmem:[%s1573 + $0xd0] sm:$0xff]
        %v1601 = vld [vmem:[%s1573 + $0xd8] sm:$0xff]
        %v1602 = vld [vmem:[%s1573 + $0xe0] sm:$0xff]
        %v1603 = vld [vmem:[%s1573 + $0xe8] sm:$0xff]
        %v1604 = vld [vmem:[%s1573 + $0xf0] sm:$0xff]
        %v1605 = vld [vmem:[%s1573 + $0xf8] sm:$0xff]
        %v1606 = vunpack.c.l.bf16 %v1574
        %v1607 = vunpack.c.h.bf16 %v1574
        %v1608 = vunpack.c.l.bf16 %v1575
        %v1609 = vunpack.c.h.bf16 %v1575
        %v1610 = vunpack.c.l.bf16 %v1576
        %v1611 = vunpack.c.h.bf16 %v1576
        %v1612 = vunpack.c.l.bf16 %v1577
        %v1613 = vunpack.c.h.bf16 %v1577
        %v1614 = vunpack.c.l.bf16 %v1578
        %v1615 = vunpack.c.h.bf16 %v1578
        %v1616 = vunpack.c.l.bf16 %v1579
        %v1617 = vunpack.c.h.bf16 %v1579
        %v1618 = vunpack.c.l.bf16 %v1580
        %v1619 = vunpack.c.h.bf16 %v1580
        %v1620 = vunpack.c.l.bf16 %v1581
        %v1621 = vunpack.c.h.bf16 %v1581
        %v1622 = vunpack.c.l.bf16 %v1582
        %v1623 = vunpack.c.h.bf16 %v1582
        %v1624 = vunpack.c.l.bf16 %v1583
        %v1625 = vunpack.c.h.bf16 %v1583
        %v1626 = vunpack.c.l.bf16 %v1584
        %v1627 = vunpack.c.h.bf16 %v1584
        %v1628 = vunpack.c.l.bf16 %v1585
        %v1629 = vunpack.c.h.bf16 %v1585
        %v1630 = vunpack.c.l.bf16 %v1586
        %v1631 = vunpack.c.h.bf16 %v1586
        %v1632 = vunpack.c.l.bf16 %v1587
        %v1633 = vunpack.c.h.bf16 %v1587
        %v1634 = vunpack.c.l.bf16 %v1588
        %v1635 = vunpack.c.h.bf16 %v1588
        %v1636 = vunpack.c.l.bf16 %v1589
        %v1637 = vunpack.c.h.bf16 %v1589
        %v1638 = vunpack.c.l.bf16 %v1590
        %v1639 = vunpack.c.h.bf16 %v1590
        %v1640 = vunpack.c.l.bf16 %v1591
        %v1641 = vunpack.c.h.bf16 %v1591
        %v1642 = vunpack.c.l.bf16 %v1592
        %v1643 = vunpack.c.h.bf16 %v1592
        %v1644 = vunpack.c.l.bf16 %v1593
        %v1645 = vunpack.c.h.bf16 %v1593
        %v1646 = vunpack.c.l.bf16 %v1594
        %v1647 = vunpack.c.h.bf16 %v1594
        %v1648 = vunpack.c.l.bf16 %v1595
        %v1649 = vunpack.c.h.bf16 %v1595
        %v1650 = vunpack.c.l.bf16 %v1596
        %v1651 = vunpack.c.h.bf16 %v1596
        %v1652 = vunpack.c.l.bf16 %v1597
        %v1653 = vunpack.c.h.bf16 %v1597
        %v1654 = vunpack.c.l.bf16 %v1598
        %v1655 = vunpack.c.h.bf16 %v1598
        %v1656 = vunpack.c.l.bf16 %v1599
        %v1657 = vunpack.c.h.bf16 %v1599
        %v1658 = vunpack.c.l.bf16 %v1600
        %v1659 = vunpack.c.h.bf16 %v1600
        %v1660 = vunpack.c.l.bf16 %v1601
        %v1661 = vunpack.c.h.bf16 %v1601
        %v1662 = vunpack.c.l.bf16 %v1602
        %v1663 = vunpack.c.h.bf16 %v1602
        %v1664 = vunpack.c.l.bf16 %v1603
        %v1665 = vunpack.c.h.bf16 %v1603
        %v1666 = vunpack.c.l.bf16 %v1604
        %v1667 = vunpack.c.h.bf16 %v1604
        %v1668 = vunpack.c.l.bf16 %v1605
        %v1669 = vunpack.c.h.bf16 %v1605
        %vm1674 = vcmask 1045504
        %v1675 = vrot.slane %v1569, 2
        %v1676 = vrot.slane %v1103, 2
        %v1677 = vsel %vm1674, %v1675, %v1676
        %v1678 = vrot.slane %v1570, 2
        %v1679 = vrot.slane %v1104, 2
        %v1680 = vsel %vm1674, %v1678, %v1679
        %v1681 = vrot.slane %v1105, 2
        %v1682 = vsel %vm1674, %v1676, %v1681
        %v1683 = vrot.slane %v1106, 2
        %v1684 = vsel %vm1674, %v1679, %v1683
        %v1685 = vrot.slane %v1571, 2
        %v1686 = vsel %vm1674, %v1681, %v1685
        %v1687 = vrot.slane %v1572, 2
        %v1688 = vsel %vm1674, %v1683, %v1687
        %1697 = vmatpush.msra.mxu0 %v1636
        %1698 = vmatpush.msra.mxu0 %v1634
        %1699 = vmatpush.msra.mxu0 %v1632
        %1700 = vmatpush.msra.mxu0 %v1630
        %1701 = vmatpush.msra.mxu0 %v1628
        %1702 = vmatpush.msra.mxu0 %v1626
        %1703 = vmatpush.msra.mxu0 %v1624
        %1704 = vmatpush.msra.mxu0 %v1622
        %1705 = vmatpush.msra.mxu0 %v1620
        %1706 = vmatpush.msra.mxu0 %v1618
        %1707 = vmatpush.msra.mxu0 %v1616
        %1708 = vmatpush.msra.mxu0 %v1614
        %1709 = vmatpush.msra.mxu0 %v1612
        %1710 = vmatpush.msra.mxu0 %v1610
        %1711 = vmatpush.msra.mxu0 %v1608
        %1712 = vmatpush.msra.mxu0 %v1606
        %1713 = vmatmul.f32.gmra.mxu0 %v1677
        %v1714 = vpop.f32.mrf.mxu0
        %v1715 = vadd.f32 0.0, %v1714
        %1716 = vmatmul.f32.gmra.mxu0 %v1682
        %v1717 = vpop.f32.mrf.mxu0
        %v1718 = vadd.f32 0.0, %v1717
        %1719 = vmatmul.f32.gmra.mxu0 %v1686
        %v1720 = vpop.f32.mrf.mxu0
        %v1721 = vadd.f32 0.0, %v1720
        %1722 = vmatmul.f32.gmra.mxu0 %v1685
        %v1723 = vpop.f32.mrf.mxu0
        %v1724 = vadd.f32 0.0, %v1723
        %1725 = vdwg.mxu0
        %1726 = vmatpush.msra.mxu0 %v1668
        %1727 = vmatpush.msra.mxu0 %v1666
        %1728 = vmatpush.msra.mxu0 %v1664
        %1729 = vmatpush.msra.mxu0 %v1662
        %1730 = vmatpush.msra.mxu0 %v1660
        %1731 = vmatpush.msra.mxu0 %v1658
        %1732 = vmatpush.msra.mxu0 %v1656
        %1733 = vmatpush.msra.mxu0 %v1654
        %1734 = vmatpush.msra.mxu0 %v1652
        %1735 = vmatpush.msra.mxu0 %v1650
        %1736 = vmatpush.msra.mxu0 %v1648
        %1737 = vmatpush.msra.mxu0 %v1646
        %1738 = vmatpush.msra.mxu0 %v1644
        %1739 = vmatpush.msra.mxu0 %v1642
        %1740 = vmatpush.msra.mxu0 %v1640
        %1741 = vmatpush.msra.mxu0 %v1638
        %1742 = vmatmul.f32.gmra.mxu0 %v1680
        %v1743 = vpop.f32.mrf.mxu0
        %v1744 = vadd.f32 %v1715, %v1743
        %1745 = vmatmul.f32.gmra.mxu0 %v1684
        %v1746 = vpop.f32.mrf.mxu0
        %v1747 = vadd.f32 %v1718, %v1746
        %1748 = vmatmul.f32.gmra.mxu0 %v1688
        %v1749 = vpop.f32.mrf.mxu0
        %v1750 = vadd.f32 %v1721, %v1749
        %1751 = vmatmul.f32.gmra.mxu0 %v1687
        %v1752 = vpop.f32.mrf.mxu0
        %v1753 = vadd.f32 %v1724, %v1752
        %1754 = vdwg.mxu0
        %1755 = vmatpush.msra.mxu0 %v1637
        %1756 = vmatpush.msra.mxu0 %v1635
        %1757 = vmatpush.msra.mxu0 %v1633
        %1758 = vmatpush.msra.mxu0 %v1631
        %1759 = vmatpush.msra.mxu0 %v1629
        %1760 = vmatpush.msra.mxu0 %v1627
        %1761 = vmatpush.msra.mxu0 %v1625
        %1762 = vmatpush.msra.mxu0 %v1623
        %1763 = vmatpush.msra.mxu0 %v1621
        %1764 = vmatpush.msra.mxu0 %v1619
        %1765 = vmatpush.msra.mxu0 %v1617
        %1766 = vmatpush.msra.mxu0 %v1615
        %1767 = vmatpush.msra.mxu0 %v1613
        %1768 = vmatpush.msra.mxu0 %v1611
        %1769 = vmatpush.msra.mxu0 %v1609
        %1770 = vmatpush.msra.mxu0 %v1607
        %1771 = vmatmul.f32.gmra.mxu0 %v1677
        %v1772 = vpop.f32.mrf.mxu0
        %v1773 = vadd.f32 0.0, %v1772
        %1774 = vmatmul.f32.gmra.mxu0 %v1682
        %v1775 = vpop.f32.mrf.mxu0
        %v1776 = vadd.f32 0.0, %v1775
        %1777 = vmatmul.f32.gmra.mxu0 %v1686
        %v1778 = vpop.f32.mrf.mxu0
        %v1779 = vadd.f32 0.0, %v1778
        %1780 = vmatmul.f32.gmra.mxu0 %v1685
        %v1781 = vpop.f32.mrf.mxu0
        %v1782 = vadd.f32 0.0, %v1781
        %1783 = vdwg.mxu0
        %1784 = vmatpush.msra.mxu0 %v1669
        %1785 = vmatpush.msra.mxu0 %v1667
        %1786 = vmatpush.msra.mxu0 %v1665
        %1787 = vmatpush.msra.mxu0 %v1663
        %1788 = vmatpush.msra.mxu0 %v1661
        %1789 = vmatpush.msra.mxu0 %v1659
        %1790 = vmatpush.msra.mxu0 %v1657
        %1791 = vmatpush.msra.mxu0 %v1655
        %1792 = vmatpush.msra.mxu0 %v1653
        %1793 = vmatpush.msra.mxu0 %v1651
        %1794 = vmatpush.msra.mxu0 %v1649
        %1795 = vmatpush.msra.mxu0 %v1647
        %1796 = vmatpush.msra.mxu0 %v1645
        %1797 = vmatpush.msra.mxu0 %v1643
        %1798 = vmatpush.msra.mxu0 %v1641
        %1799 = vmatpush.msra.mxu0 %v1639
        %1800 = vmatmul.f32.gmra.mxu0 %v1680
        %v1801 = vpop.f32.mrf.mxu0
        %v1802 = vadd.f32 %v1773, %v1801
        %1803 = vmatmul.f32.gmra.mxu0 %v1684
        %v1804 = vpop.f32.mrf.mxu0
        %v1805 = vadd.f32 %v1776, %v1804
        %1806 = vmatmul.f32.gmra.mxu0 %v1688
        %v1807 = vpop.f32.mrf.mxu0
        %v1808 = vadd.f32 %v1779, %v1807
        %1809 = vmatmul.f32.gmra.mxu0 %v1687
        %v1810 = vpop.f32.mrf.mxu0
        %v1811 = vadd.f32 %v1782, %v1810
        %1812 = vdwg.mxu0
        %v1813 = vadd.f32 %v1500, %v1744
        %v1814 = vadd.f32 %v1558, %v1802
        %v1815 = vadd.f32 %v1503, %v1747
        %v1816 = vadd.f32 %v1561, %v1805
        %v1817 = vadd.f32 %v1506, %v1750
        %v1818 = vadd.f32 %v1564, %v1808
        %v1819 = vadd.f32 %v1509, %v1753
        %v1820 = vadd.f32 %v1567, %v1811
        %v1821 = vld [vmem:[%s4] sm:$0x3]
        %v1823 = vperm.slane %v1821, 0
        %v1824 = vperm.slane %v1821, 1
        %v1827 = vadd.f32 %v1813, %v1823
        %v1828 = vadd.f32 %v1814, %v1824
        %v1829 = vadd.f32 %v1815, %v1823
        %v1830 = vadd.f32 %v1816, %v1824
        %v1831 = vadd.f32 %v1817, %v1823
        %v1832 = vadd.f32 %v1818, %v1824
        %v1833 = vadd.f32 %v1819, %v1823
        %v1834 = vadd.f32 %v1820, %v1824
        %v1835 = vmax.f32 %v1827, 0.0
        %v1836 = vmax.f32 %v1828, 0.0
        %v1837 = vmax.f32 %v1829, 0.0
        %v1838 = vmax.f32 %v1830, 0.0
        %v1839 = vmax.f32 %v1831, 0.0
        %v1840 = vmax.f32 %v1832, 0.0
        %v1841 = vmax.f32 %v1833, 0.0
        %v1842 = vmax.f32 %v1834, 0.0
        %1843 = vst [vmem:[#allocation4] sm:$0xff] %v1835
        %vm1844 = vcmask 916480
        %1845 = vst.msk [vmem:[#allocation4 + $0x8] sm:$0xff] %vm1844, %v1836
        %1846 = vst [vmem:[#allocation4 + $0x10] sm:$0xff] %v1837
        %1847 = vst.msk [vmem:[#allocation4 + $0x18] sm:$0xff] %vm1844, %v1838
        %1848 = vst [vmem:[#allocation4 + $0x20] sm:$0xff] %v1839
        %1849 = vst.msk [vmem:[#allocation4 + $0x28] sm:$0xff] %vm1844, %v1840
        %1850 = vst [vmem:[#allocation4 + $0x30] sm:$0x3f] %v1841
        %vm1851 = vcmask 914432
        %1852 = vst.msk [vmem:[#allocation4 + $0x38] sm:$0x3f] %vm1851, %v1842
        %vm1853 = vcmask 982016
        %1854 = vst.msk [vmem:[#allocation6] sm:$0xff] %vm1853, 0.0
        %1855 = vst.msk [vmem:[#allocation6 + $0x8] sm:$0xff] %vm1853, 0.0
        %vm1856 = vcmask 974848
        %1857 = vst.msk [vmem:[#allocation6 + $0x10] sm:$0x1] %vm1856, 0.0
        %v1858 = vld [vmem:[#allocation4] ss:$8 sm:$0x3]
        %s1859 = scalar_lea.vmem [#allocation4], 1
        %v1860 = vld [vmem:[%s1859] ss:$8 sm:$0x3]
        %v1861 = vmax.f32 %v1858, %v1860
        %v1862 = vlaneseq
        %vm1863 = vcmp.ge.s32.totalorder %v1862, 0
        %vm1864 = vcmp.lt.s32.totalorder %v1862, 240
        %vm1865 = vmand %vm1863, %vm1864
        %1866 = vst.msk [vmem:[#allocation5] ss:$8 sm:$0x3] %vm1865, %v1861
        %1867 = vst.msk [vmem:[#allocation5] ss:$8 sm:$0x0] %vm1865, %v1861
        %s1868 = scalar_lea.vmem [#allocation4], 2
        %v1869 = vld [vmem:[%s1868] ss:$8 sm:$0x3]
        %s1870 = scalar_lea.vmem [#allocation4], 3
        %v1871 = vld [vmem:[%s1870] ss:$8 sm:$0x3]
        %v1872 = vmax.f32 %v1869, %v1871
        %s1873 = scalar_lea.vmem [#allocation5], 1
        %1874 = vst.msk [vmem:[%s1873] ss:$8 sm:$0x3] %vm1865, %v1872
        %1875 = vst.msk [vmem:[%s1873] ss:$8 sm:$0x0] %vm1865, %v1872
        %s1876 = scalar_lea.vmem [#allocation4], 4
        %v1877 = vld [vmem:[%s1876] ss:$8 sm:$0x3]
        %s1878 = scalar_lea.vmem [#allocation4], 5
        %v1879 = vld [vmem:[%s1878] ss:$8 sm:$0x3]
        %v1880 = vmax.f32 %v1877, %v1879
        %s1881 = scalar_lea.vmem [#allocation5], 2
        %1882 = vst.msk [vmem:[%s1881] ss:$8 sm:$0x3] %vm1865, %v1880
        %1883 = vst.msk [vmem:[%s1881] ss:$8 sm:$0x0] %vm1865, %v1880
        %s1884 = scalar_lea.vmem [#allocation4], 6
        %v1885 = vld [vmem:[%s1884] ss:$8 sm:$0x3]
        %s1886 = scalar_lea.vmem [#allocation4], 7
        %v1887 = vld [vmem:[%s1886] ss:$8 sm:$0x3]
        %v1888 = vmax.f32 %v1885, %v1887
        %s1889 = scalar_lea.vmem [#allocation5], 3
        %1890 = vst.msk [vmem:[%s1889] ss:$8 sm:$0x3] %vm1865, %v1888
        %1891 = vst.msk [vmem:[%s1889] ss:$8 sm:$0x0] %vm1865, %v1888
        %s1892 = scalar_lea.vmem [#allocation4], 16
        %v1893 = vld [vmem:[%s1892] ss:$8 sm:$0x3]
        %s1894 = scalar_lea.vmem [#allocation4], 17
        %v1895 = vld [vmem:[%s1894] ss:$8 sm:$0x3]
        %v1896 = vmax.f32 %v1893, %v1895
        %s1897 = scalar_lea.vmem [#allocation5], 4
        %1898 = vst.msk [vmem:[%s1897] ss:$8 sm:$0x3] %vm1865, %v1896
        %1899 = vst.msk [vmem:[%s1897] ss:$8 sm:$0x0] %vm1865, %v1896
        %s1900 = scalar_lea.vmem [#allocation4], 18
        %v1901 = vld [vmem:[%s1900] ss:$8 sm:$0x3]
        %s1902 = scalar_lea.vmem [#allocation4], 19
        %v1903 = vld [vmem:[%s1902] ss:$8 sm:$0x3]
        %v1904 = vmax.f32 %v1901, %v1903
        %s1905 = scalar_lea.vmem [#allocation5], 5
        %1906 = vst.msk [vmem:[%s1905] ss:$8 sm:$0x3] %vm1865, %v1904
        %1907 = vst.msk [vmem:[%s1905] ss:$8 sm:$0x0] %vm1865, %v1904
        %s1908 = scalar_lea.vmem [#allocation4], 20
        %v1909 = vld [vmem:[%s1908] ss:$8 sm:$0x3]
        %s1910 = scalar_lea.vmem [#allocation4], 21
        %v1911 = vld [vmem:[%s1910] ss:$8 sm:$0x3]
        %v1912 = vmax.f32 %v1909, %v1911
        %s1913 = scalar_lea.vmem [#allocation5], 6
        %1914 = vst.msk [vmem:[%s1913] ss:$8 sm:$0x3] %vm1865, %v1912
        %1915 = vst.msk [vmem:[%s1913] ss:$8 sm:$0x0] %vm1865, %v1912
        %s1916 = scalar_lea.vmem [#allocation4], 22
        %v1917 = vld [vmem:[%s1916] ss:$8 sm:$0x3]
        %s1918 = scalar_lea.vmem [#allocation4], 23
        %v1919 = vld [vmem:[%s1918] ss:$8 sm:$0x3]
        %v1920 = vmax.f32 %v1917, %v1919
        %s1921 = scalar_lea.vmem [#allocation5], 7
        %1922 = vst.msk [vmem:[%s1921] ss:$8 sm:$0x3] %vm1865, %v1920
        %1923 = vst.msk [vmem:[%s1921] ss:$8 sm:$0x0] %vm1865, %v1920
        %s1924 = scalar_lea.vmem [#allocation4], 32
        %v1925 = vld [vmem:[%s1924] ss:$8 sm:$0x3]
        %s1926 = scalar_lea.vmem [#allocation4], 33
        %v1927 = vld [vmem:[%s1926] ss:$8 sm:$0x3]
        %v1928 = vmax.f32 %v1925, %v1927
        %s1929 = scalar_lea.vmem [#allocation5], 16
        %1930 = vst.msk [vmem:[%s1929] ss:$8 sm:$0x3] %vm1865, %v1928
        %1931 = vst.msk [vmem:[%s1929] ss:$8 sm:$0x0] %vm1865, %v1928
        %s1932 = scalar_lea.vmem [#allocation4], 34
        %v1933 = vld [vmem:[%s1932] ss:$8 sm:$0x3]
        %s1934 = scalar_lea.vmem [#allocation4], 35
        %v1935 = vld [vmem:[%s1934] ss:$8 sm:$0x3]
        %v1936 = vmax.f32 %v1933, %v1935
        %s1937 = scalar_lea.vmem [#allocation5], 17
        %1938 = vst.msk [vmem:[%s1937] ss:$8 sm:$0x3] %vm1865, %v1936
        %1939 = vst.msk [vmem:[%s1937] ss:$8 sm:$0x0] %vm1865, %v1936
        %s1940 = scalar_lea.vmem [#allocation4], 36
        %v1941 = vld [vmem:[%s1940] ss:$8 sm:$0x3]
        %s1942 = scalar_lea.vmem [#allocation4], 37
        %v1943 = vld [vmem:[%s1942] ss:$8 sm:$0x3]
        %v1944 = vmax.f32 %v1941, %v1943
        %s1945 = scalar_lea.vmem [#allocation5], 18
        %1946 = vst.msk [vmem:[%s1945] ss:$8 sm:$0x3] %vm1865, %v1944
        %1947 = vst.msk [vmem:[%s1945] ss:$8 sm:$0x0] %vm1865, %v1944
        %s1948 = scalar_lea.vmem [#allocation4], 38
        %v1949 = vld [vmem:[%s1948] ss:$8 sm:$0x3]
        %s1950 = scalar_lea.vmem [#allocation4], 39
        %v1951 = vld [vmem:[%s1950] ss:$8 sm:$0x3]
        %v1952 = vmax.f32 %v1949, %v1951
        %s1953 = scalar_lea.vmem [#allocation5], 19
        %1954 = vst.msk [vmem:[%s1953] ss:$8 sm:$0x3] %vm1865, %v1952
        %1955 = vst.msk [vmem:[%s1953] ss:$8 sm:$0x0] %vm1865, %v1952
        %s1956 = scalar_lea.vmem [#allocation4], 48
        %v1957 = vld [vmem:[%s1956] ss:$8 sm:$0x3]
        %s1958 = scalar_lea.vmem [#allocation4], 49
        %v1959 = vld [vmem:[%s1958] ss:$8 sm:$0x3]
        %v1960 = vmax.f32 %v1957, %v1959
        %s1961 = scalar_lea.vmem [#allocation5], 20
        %1962 = vst.msk [vmem:[%s1961] ss:$8 sm:$0x3] %vm1865, %v1960
        %1963 = vst.msk [vmem:[%s1961] ss:$8 sm:$0x0] %vm1865, %v1960
        %s1964 = scalar_lea.vmem [#allocation4], 50
        %v1965 = vld [vmem:[%s1964] ss:$8 sm:$0x3]
        %s1966 = scalar_lea.vmem [#allocation4], 51
        %v1967 = vld [vmem:[%s1966] ss:$8 sm:$0x3]
        %v1968 = vmax.f32 %v1965, %v1967
        %s1969 = scalar_lea.vmem [#allocation5], 21
        %1970 = vst.msk [vmem:[%s1969] ss:$8 sm:$0x3] %vm1865, %v1968
        %1971 = vst.msk [vmem:[%s1969] ss:$8 sm:$0x0] %vm1865, %v1968
        %s1972 = scalar_lea.vmem [#allocation4], 52
        %v1973 = vld [vmem:[%s1972] ss:$8 sm:$0x3]
        %s1974 = scalar_lea.vmem [#allocation4], 53
        %v1975 = vld [vmem:[%s1974] ss:$8 sm:$0x3]
        %v1976 = vmax.f32 %v1973, %v1975
        %s1977 = scalar_lea.vmem [#allocation5], 22
        %1978 = vst.msk [vmem:[%s1977] ss:$8 sm:$0x3] %vm1865, %v1976
        %1979 = vst.msk [vmem:[%s1977] ss:$8 sm:$0x0] %vm1865, %v1976
        %v1980 = vld [vmem:[#allocation5] sm:$0xff]
        %v1981 = vld [vmem:[#allocation5 + $0x10] sm:$0x7f]
        %1984 = vrot.lane.b32.xlu0 %v1980, 120
        %v1985 = vpop.permute.xlu0 %1984
        %1986 = vrot.lane.b32.xlu0 %v1981, 120
        %v1987 = vpop.permute.xlu0 %1986
        %v1990 = vmax.f32 %v1980, %v1985
        %v1991 = vmax.f32 %v1981, %v1987
        %vm1992 = vcmask 64512
        %1993 = vst.msk [vmem:[#allocation6 + $0x1] sm:$0xff] %vm1992, %v1990
        %vm1994 = vcmask 63488
        %1995 = vst.msk [vmem:[#allocation6 + $0x9] sm:$0x7f] %vm1994, %v1991
        %v1996 = vld [vmem:[#allocation5] sm:$0xff]
        %v1997 = vld [vmem:[#allocation5 + $0x10] sm:$0x7f]
        %2000 = vrot.lane.b32.xlu0 %v1996, 120
        %v2001 = vpop.permute.xlu0 %2000
        %2002 = vrot.lane.b32.xlu0 %v1997, 120
        %v2003 = vpop.permute.xlu0 %2002
        %v2006 = vmax.f32 %v1996, %v2001
        %v2007 = vmax.f32 %v1997, %v2003
        %2010 = vrot.lane.b32.xlu0 %v2006, 120
        %v2011 = vpop.permute.xlu0 %2010
        %2012 = vrot.lane.b32.xlu0 %v2007, 120
        %v2013 = vpop.permute.xlu0 %2012
        %vm2016 = vcmask 130112
        %2017 = vst.msk [vmem:[#allocation6 + $0x1] sm:$0xff] %vm2016, %v2011
        %vm2018 = vcmask 129088
        %2019 = vst.msk [vmem:[#allocation6 + $0x9] sm:$0x7f] %vm2018, %v2013
        %v2020 = vld [vmem:[#allocation5] sm:$0xff]
        %v2021 = vld [vmem:[#allocation5 + $0x10] sm:$0x7f]
        %2024 = vrot.lane.b32.xlu0 %v2020, 120
        %v2025 = vpop.permute.xlu0 %2024
        %2026 = vrot.lane.b32.xlu0 %v2021, 120
        %v2027 = vpop.permute.xlu0 %2026
        %v2030 = vmax.f32 %v2020, %v2025
        %v2031 = vmax.f32 %v2021, %v2027
        %2034 = vrot.lane.b32.xlu0 %v2030, 112
        %v2035 = vpop.permute.xlu0 %2034
        %2036 = vrot.lane.b32.xlu0 %v2031, 112
        %v2037 = vpop.permute.xlu0 %2036
        %vm2040 = vcmask 195712
        %2041 = vst.msk [vmem:[#allocation6 + $0x1] sm:$0xff] %vm2040, %v2035
        %vm2042 = vcmask 194688
        %2043 = vst.msk [vmem:[#allocation6 + $0x9] sm:$0x7f] %vm2042, %v2037
        %v2044 = vld [vmem:[#allocation5] sm:$0xff]
        %v2045 = vld [vmem:[#allocation5 + $0x10] sm:$0x7f]
        %2048 = vrot.lane.b32.xlu0 %v2044, 120
        %v2049 = vpop.permute.xlu0 %2048
        %2050 = vrot.lane.b32.xlu0 %v2045, 120
        %v2051 = vpop.permute.xlu0 %2050
        %v2054 = vmax.f32 %v2044, %v2049
        %v2055 = vmax.f32 %v2045, %v2051
        %2058 = vrot.lane.b32.xlu0 %v2054, 104
        %v2059 = vpop.permute.xlu0 %2058
        %2060 = vrot.lane.b32.xlu0 %v2055, 104
        %v2061 = vpop.permute.xlu0 %2060
        %vm2064 = vcmask 261312
        %2065 = vst.msk [vmem:[#allocation6 + $0x1] sm:$0xff] %vm2064, %v2059
        %vm2066 = vcmask 260288
        %2067 = vst.msk [vmem:[#allocation6 + $0x9] sm:$0x7f] %vm2066, %v2061
        %v2068 = vld [vmem:[#allocation5] sm:$0xff]
        %v2069 = vld [vmem:[#allocation5 + $0x10] sm:$0x7f]
        %2072 = vrot.lane.b32.xlu0 %v2068, 120
        %v2073 = vpop.permute.xlu0 %2072
        %2074 = vrot.lane.b32.xlu0 %v2069, 120
        %v2075 = vpop.permute.xlu0 %2074
        %v2078 = vmax.f32 %v2068, %v2073
        %v2079 = vmax.f32 %v2069, %v2075
        %2082 = vrot.lane.b32.xlu0 %v2078, 96
        %v2083 = vpop.permute.xlu0 %2082
        %2084 = vrot.lane.b32.xlu0 %v2079, 96
        %v2085 = vpop.permute.xlu0 %2084
        %vm2088 = vcmask 326912
        %2089 = vst.msk [vmem:[#allocation6 + $0x1] sm:$0xff] %vm2088, %v2083
        %vm2090 = vcmask 325888
        %2091 = vst.msk [vmem:[#allocation6 + $0x9] sm:$0x7f] %vm2090, %v2085
        %v2092 = vld [vmem:[#allocation5] sm:$0xff]
        %v2093 = vld [vmem:[#allocation5 + $0x10] sm:$0x7f]
        %2096 = vrot.lane.b32.xlu0 %v2092, 120
        %v2097 = vpop.permute.xlu0 %2096
        %2098 = vrot.lane.b32.xlu0 %v2093, 120
        %v2099 = vpop.permute.xlu0 %2098
        %v2102 = vmax.f32 %v2092, %v2097
        %v2103 = vmax.f32 %v2093, %v2099
        %2106 = vrot.lane.b32.xlu0 %v2102, 88
        %v2107 = vpop.permute.xlu0 %2106
        %2108 = vrot.lane.b32.xlu0 %v2103, 88
        %v2109 = vpop.permute.xlu0 %2108
        %vm2112 = vcmask 392512
        %2113 = vst.msk [vmem:[#allocation6 + $0x1] sm:$0xff] %vm2112, %v2107
        %vm2114 = vcmask 391488
        %2115 = vst.msk [vmem:[#allocation6 + $0x9] sm:$0x7f] %vm2114, %v2109
        %v2116 = vld [vmem:[#allocation5] sm:$0xff]
        %v2117 = vld [vmem:[#allocation5 + $0x10] sm:$0x7f]
        %2120 = vrot.lane.b32.xlu0 %v2116, 120
        %v2121 = vpop.permute.xlu0 %2120
        %2122 = vrot.lane.b32.xlu0 %v2117, 120
        %v2123 = vpop.permute.xlu0 %2122
        %v2126 = vmax.f32 %v2116, %v2121
        %v2127 = vmax.f32 %v2117, %v2123
        %2130 = vrot.lane.b32.xlu0 %v2126, 80
        %v2131 = vpop.permute.xlu0 %2130
        %2132 = vrot.lane.b32.xlu0 %v2127, 80
        %v2133 = vpop.permute.xlu0 %2132
        %vm2136 = vcmask 458112
        %2137 = vst.msk [vmem:[#allocation6 + $0x1] sm:$0xff] %vm2136, %v2131
        %vm2138 = vcmask 457088
        %2139 = vst.msk [vmem:[#allocation6 + $0x9] sm:$0x7f] %vm2138, %v2133
        %v2140 = vld [vmem:[#allocation5] sm:$0xff]
        %v2141 = vld [vmem:[#allocation5 + $0x10] sm:$0x7f]
        %2144 = vrot.lane.b32.xlu0 %v2140, 120
        %v2145 = vpop.permute.xlu0 %2144
        %2146 = vrot.lane.b32.xlu0 %v2141, 120
        %v2147 = vpop.permute.xlu0 %2146
        %v2150 = vmax.f32 %v2140, %v2145
        %v2151 = vmax.f32 %v2141, %v2147
        %2154 = vrot.lane.b32.xlu0 %v2150, 72
        %v2155 = vpop.permute.xlu0 %2154
        %2156 = vrot.lane.b32.xlu0 %v2151, 72
        %v2157 = vpop.permute.xlu0 %2156
        %vm2160 = vcmask 523712
        %2161 = vst.msk [vmem:[#allocation6 + $0x1] sm:$0xff] %vm2160, %v2155
        %vm2162 = vcmask 522688
        %2163 = vst.msk [vmem:[#allocation6 + $0x9] sm:$0x7f] %vm2162, %v2157
        %v2164 = vld [vmem:[#allocation5 + $0x8] sm:$0xff]
        %v2165 = vld [vmem:[#allocation5 + $0x18] sm:$0x7f]
        %2168 = vrot.lane.b32.xlu0 %v2164, 120
        %v2169 = vpop.permute.xlu0 %2168
        %2170 = vrot.lane.b32.xlu0 %v2165, 120
        %v2171 = vpop.permute.xlu0 %2170
        %v2174 = vmax.f32 %v2164, %v2169
        %v2175 = vmax.f32 %v2165, %v2171
        %2178 = vrot.lane.b32.xlu0 %v2174, 64
        %v2179 = vpop.permute.xlu0 %2178
        %2180 = vrot.lane.b32.xlu0 %v2175, 64
        %v2181 = vpop.permute.xlu0 %2180
        %vm2184 = vcmask 589312
        %2185 = vst.msk [vmem:[#allocation6 + $0x1] sm:$0xff] %vm2184, %v2179
        %vm2186 = vcmask 588288
        %2187 = vst.msk [vmem:[#allocation6 + $0x9] sm:$0x7f] %vm2186, %v2181
        %v2188 = vld [vmem:[#allocation5 + $0x8] sm:$0xff]
        %v2189 = vld [vmem:[#allocation5 + $0x18] sm:$0x7f]
        %2192 = vrot.lane.b32.xlu0 %v2188, 120
        %v2193 = vpop.permute.xlu0 %2192
        %2194 = vrot.lane.b32.xlu0 %v2189, 120
        %v2195 = vpop.permute.xlu0 %2194
        %v2198 = vmax.f32 %v2188, %v2193
        %v2199 = vmax.f32 %v2189, %v2195
        %2202 = vrot.lane.b32.xlu0 %v2198, 56
        %v2203 = vpop.permute.xlu0 %2202
        %2204 = vrot.lane.b32.xlu0 %v2199, 56
        %v2205 = vpop.permute.xlu0 %2204
        %vm2208 = vcmask 654912
        %2209 = vst.msk [vmem:[#allocation6 + $0x1] sm:$0xff] %vm2208, %v2203
        %vm2210 = vcmask 653888
        %2211 = vst.msk [vmem:[#allocation6 + $0x9] sm:$0x7f] %vm2210, %v2205
        %v2212 = vld [vmem:[#allocation5 + $0x8] sm:$0xff]
        %v2213 = vld [vmem:[#allocation5 + $0x18] sm:$0x7f]
        %2216 = vrot.lane.b32.xlu0 %v2212, 120
        %v2217 = vpop.permute.xlu0 %2216
        %2218 = vrot.lane.b32.xlu0 %v2213, 120
        %v2219 = vpop.permute.xlu0 %2218
        %v2222 = vmax.f32 %v2212, %v2217
        %v2223 = vmax.f32 %v2213, %v2219
        %2226 = vrot.lane.b32.xlu0 %v2222, 48
        %v2227 = vpop.permute.xlu0 %2226
        %2228 = vrot.lane.b32.xlu0 %v2223, 48
        %v2229 = vpop.permute.xlu0 %2228
        %vm2232 = vcmask 720512
        %2233 = vst.msk [vmem:[#allocation6 + $0x1] sm:$0xff] %vm2232, %v2227
        %vm2234 = vcmask 719488
        %2235 = vst.msk [vmem:[#allocation6 + $0x9] sm:$0x7f] %vm2234, %v2229
        %v2236 = vld [vmem:[#allocation5 + $0x8] sm:$0xff]
        %v2237 = vld [vmem:[#allocation5 + $0x18] sm:$0x7f]
        %2240 = vrot.lane.b32.xlu0 %v2236, 120
        %v2241 = vpop.permute.xlu0 %2240
        %2242 = vrot.lane.b32.xlu0 %v2237, 120
        %v2243 = vpop.permute.xlu0 %2242
        %v2246 = vmax.f32 %v2236, %v2241
        %v2247 = vmax.f32 %v2237, %v2243
        %2250 = vrot.lane.b32.xlu0 %v2246, 40
        %v2251 = vpop.permute.xlu0 %2250
        %2252 = vrot.lane.b32.xlu0 %v2247, 40
        %v2253 = vpop.permute.xlu0 %2252
        %vm2256 = vcmask 786112
        %2257 = vst.msk [vmem:[#allocation6 + $0x1] sm:$0xff] %vm2256, %v2251
        %vm2258 = vcmask 785088
        %2259 = vst.msk [vmem:[#allocation6 + $0x9] sm:$0x7f] %vm2258, %v2253
        %v2260 = vld [vmem:[#allocation5 + $0x8] sm:$0xff]
        %v2261 = vld [vmem:[#allocation5 + $0x18] sm:$0x7f]
        %2264 = vrot.lane.b32.xlu0 %v2260, 120
        %v2265 = vpop.permute.xlu0 %2264
        %2266 = vrot.lane.b32.xlu0 %v2261, 120
        %v2267 = vpop.permute.xlu0 %2266
        %v2270 = vmax.f32 %v2260, %v2265
        %v2271 = vmax.f32 %v2261, %v2267
        %2274 = vrot.lane.b32.xlu0 %v2270, 32
        %v2275 = vpop.permute.xlu0 %2274
        %2276 = vrot.lane.b32.xlu0 %v2271, 32
        %v2277 = vpop.permute.xlu0 %2276
        %vm2280 = vcmask 851712
        %2281 = vst.msk [vmem:[#allocation6 + $0x1] sm:$0xff] %vm2280, %v2275
        %vm2282 = vcmask 850688
        %2283 = vst.msk [vmem:[#allocation6 + $0x9] sm:$0x7f] %vm2282, %v2277
        %v2284 = vld [vmem:[#allocation5 + $0x8] sm:$0xff]
        %v2285 = vld [vmem:[#allocation5 + $0x18] sm:$0x7f]
        %2288 = vrot.lane.b32.xlu0 %v2284, 120
        %v2289 = vpop.permute.xlu0 %2288
        %2290 = vrot.lane.b32.xlu0 %v2285, 120
        %v2291 = vpop.permute.xlu0 %2290
        %v2294 = vmax.f32 %v2284, %v2289
        %v2295 = vmax.f32 %v2285, %v2291
        %2298 = vrot.lane.b32.xlu0 %v2294, 24
        %v2299 = vpop.permute.xlu0 %2298
        %2300 = vrot.lane.b32.xlu0 %v2295, 24
        %v2301 = vpop.permute.xlu0 %2300
        %vm2304 = vcmask 917312
        %2305 = vst.msk [vmem:[#allocation6 + $0x1] sm:$0xff] %vm2304, %v2299
        %vm2306 = vcmask 916288
        %2307 = vst.msk [vmem:[#allocation6 + $0x9] sm:$0x7f] %vm2306, %v2301
        %v2308 = vld [vmem:[#allocation5 + $0x8] sm:$0xff]
        %v2309 = vld [vmem:[#allocation5 + $0x18] sm:$0x7f]
        %2312 = vrot.lane.b32.xlu0 %v2308, 120
        %v2313 = vpop.permute.xlu0 %2312
        %2314 = vrot.lane.b32.xlu0 %v2309, 120
        %v2315 = vpop.permute.xlu0 %2314
        %v2318 = vmax.f32 %v2308, %v2313
        %v2319 = vmax.f32 %v2309, %v2315
        %2322 = vrot.lane.b32.xlu0 %v2318, 16
        %v2323 = vpop.permute.xlu0 %2322
        %2324 = vrot.lane.b32.xlu0 %v2319, 16
        %v2325 = vpop.permute.xlu0 %2324
        %vm2328 = vcmask 982912
        %2329 = vst.msk [vmem:[#allocation6 + $0x1] sm:$0xff] %vm2328, %v2323
        %vm2330 = vcmask 981888
        %2331 = vst.msk [vmem:[#allocation6 + $0x9] sm:$0x7f] %vm2330, %v2325
        %v2332 = vld [vmem:[#allocation6] sm:$0xff]
        %v2333 = vld [vmem:[#allocation6 + $0x8] sm:$0x7f]
        %v2334 = vld [vmem:[%s5] sm:$0xff]
        %v2335 = vld [vmem:[%s5 + $0x8] sm:$0xff]
        %v2336 = vld [vmem:[%s5 + $0x10] sm:$0xff]
        %v2337 = vld [vmem:[%s5 + $0x18] sm:$0xff]
        %v2338 = vld [vmem:[%s5 + $0x20] sm:$0xff]
        %v2339 = vld [vmem:[%s5 + $0x28] sm:$0xff]
        %v2340 = vld [vmem:[%s5 + $0x30] sm:$0xff]
        %v2341 = vld [vmem:[%s5 + $0x38] sm:$0xff]
        %v2342 = vld [vmem:[%s5 + $0x40] sm:$0xff]
        %v2343 = vld [vmem:[%s5 + $0x48] sm:$0xff]
        %v2344 = vld [vmem:[%s5 + $0x50] sm:$0xff]
        %v2345 = vld [vmem:[%s5 + $0x58] sm:$0xff]
        %v2346 = vld [vmem:[%s5 + $0x60] sm:$0xff]
        %v2347 = vld [vmem:[%s5 + $0x68] sm:$0xff]
        %v2348 = vld [vmem:[%s5 + $0x70] sm:$0xff]
        %v2349 = vunpack.c.l.bf16 %v2334
        %v2350 = vunpack.c.h.bf16 %v2334
        %v2351 = vunpack.c.l.bf16 %v2335
        %v2352 = vunpack.c.h.bf16 %v2335
        %v2353 = vunpack.c.l.bf16 %v2336
        %v2354 = vunpack.c.h.bf16 %v2336
        %v2355 = vunpack.c.l.bf16 %v2337
        %v2356 = vunpack.c.h.bf16 %v2337
        %v2357 = vunpack.c.l.bf16 %v2338
        %v2358 = vunpack.c.h.bf16 %v2338
        %v2359 = vunpack.c.l.bf16 %v2339
        %v2360 = vunpack.c.h.bf16 %v2339
        %v2361 = vunpack.c.l.bf16 %v2340
        %v2362 = vunpack.c.h.bf16 %v2340
        %v2363 = vunpack.c.l.bf16 %v2341
        %v2364 = vunpack.c.h.bf16 %v2341
        %v2365 = vunpack.c.l.bf16 %v2342
        %v2366 = vunpack.c.h.bf16 %v2342
        %v2367 = vunpack.c.l.bf16 %v2343
        %v2368 = vunpack.c.h.bf16 %v2343
        %v2369 = vunpack.c.l.bf16 %v2344
        %v2370 = vunpack.c.h.bf16 %v2344
        %v2371 = vunpack.c.l.bf16 %v2345
        %v2372 = vunpack.c.h.bf16 %v2345
        %v2373 = vunpack.c.l.bf16 %v2346
        %v2374 = vunpack.c.h.bf16 %v2346
        %v2375 = vunpack.c.l.bf16 %v2347
        %v2376 = vunpack.c.h.bf16 %v2347
        %v2377 = vunpack.c.l.bf16 %v2348
        %v2378 = vunpack.c.h.bf16 %v2348
        %v2379 = vld [vmem:[#allocation6 + $0x1] sm:$0xff]
        %v2380 = vld [vmem:[#allocation6 + $0x9] sm:$0x7f]
        %s2381 = scalar_lea.vmem %s5, 120
        %v2382 = vld [vmem:[%s2381] sm:$0xff]
        %v2383 = vld [vmem:[%s2381 + $0x8] sm:$0xff]
        %v2384 = vld [vmem:[%s2381 + $0x10] sm:$0xff]
        %v2385 = vld [vmem:[%s2381 + $0x18] sm:$0xff]
        %v2386 = vld [vmem:[%s2381 + $0x20] sm:$0xff]
        %v2387 = vld [vmem:[%s2381 + $0x28] sm:$0xff]
        %v2388 = vld [vmem:[%s2381 + $0x30] sm:$0xff]
        %v2389 = vld [vmem:[%s2381 + $0x38] sm:$0xff]
        %v2390 = vld [vmem:[%s2381 + $0x40] sm:$0xff]
        %v2391 = vld [vmem:[%s2381 + $0x48] sm:$0xff]
        %v2392 = vld [vmem:[%s2381 + $0x50] sm:$0xff]
        %v2393 = vld [vmem:[%s2381 + $0x58] sm:$0xff]
        %v2394 = vld [vmem:[%s2381 + $0x60] sm:$0xff]
        %v2395 = vld [vmem:[%s2381 + $0x68] sm:$0xff]
        %v2396 = vld [vmem:[%s2381 + $0x70] sm:$0xff]
        %v2397 = vunpack.c.l.bf16 %v2382
        %v2398 = vunpack.c.h.bf16 %v2382
        %v2399 = vunpack.c.l.bf16 %v2383
        %v2400 = vunpack.c.h.bf16 %v2383
        %v2401 = vunpack.c.l.bf16 %v2384
        %v2402 = vunpack.c.h.bf16 %v2384
        %v2403 = vunpack.c.l.bf16 %v2385
        %v2404 = vunpack.c.h.bf16 %v2385
        %v2405 = vunpack.c.l.bf16 %v2386
        %v2406 = vunpack.c.h.bf16 %v2386
        %v2407 = vunpack.c.l.bf16 %v2387
        %v2408 = vunpack.c.h.bf16 %v2387
        %v2409 = vunpack.c.l.bf16 %v2388
        %v2410 = vunpack.c.h.bf16 %v2388
        %v2411 = vunpack.c.l.bf16 %v2389
        %v2412 = vunpack.c.h.bf16 %v2389
        %v2413 = vunpack.c.l.bf16 %v2390
        %v2414 = vunpack.c.h.bf16 %v2390
        %v2415 = vunpack.c.l.bf16 %v2391
        %v2416 = vunpack.c.h.bf16 %v2391
        %v2417 = vunpack.c.l.bf16 %v2392
        %v2418 = vunpack.c.h.bf16 %v2392
        %v2419 = vunpack.c.l.bf16 %v2393
        %v2420 = vunpack.c.h.bf16 %v2393
        %v2421 = vunpack.c.l.bf16 %v2394
        %v2422 = vunpack.c.h.bf16 %v2394
        %v2423 = vunpack.c.l.bf16 %v2395
        %v2424 = vunpack.c.h.bf16 %v2395
        %v2425 = vunpack.c.l.bf16 %v2396
        %v2426 = vunpack.c.h.bf16 %v2396
        %v2428 = vsel %vm1853, %v2379, 0
        %v2431 = vsel %vm1853, %v2380, 0
        %2433 = vmatpush.msra.mxu0 0.0
        %2434 = vmatpush.msra.mxu0 %v2425
        %2435 = vmatpush.msra.mxu0 %v2423
        %2436 = vmatpush.msra.mxu0 %v2421
        %2437 = vmatpush.msra.mxu0 %v2419
        %2438 = vmatpush.msra.mxu0 %v2417
        %2439 = vmatpush.msra.mxu0 %v2415
        %2440 = vmatpush.msra.mxu0 %v2413
        %2441 = vmatpush.msra.mxu0 %v2411
        %2442 = vmatpush.msra.mxu0 %v2409
        %2443 = vmatpush.msra.mxu0 %v2407
        %2444 = vmatpush.msra.mxu0 %v2405
        %2445 = vmatpush.msra.mxu0 %v2403
        %2446 = vmatpush.msra.mxu0 %v2401
        %2447 = vmatpush.msra.mxu0 %v2399
        %2448 = vmatpush.msra.mxu0 %v2397
        %2449 = vmatmul.f32.gmra.mxu0 %v2428
        %v2450 = vpop.f32.mrf.mxu0
        %v2451 = vadd.f32 0.0, %v2450
        %2452 = vmatmul.f32.gmra.mxu0 %v2431
        %v2453 = vpop.f32.mrf.mxu0
        %v2454 = vadd.f32 0.0, %v2453
        %2455 = vdwg.mxu0
        %2456 = vmatpush.msra.mxu0 0.0
        %2457 = vmatpush.msra.mxu0 %v2426
        %2458 = vmatpush.msra.mxu0 %v2424
        %2459 = vmatpush.msra.mxu0 %v2422
        %2460 = vmatpush.msra.mxu0 %v2420
        %2461 = vmatpush.msra.mxu0 %v2418
        %2462 = vmatpush.msra.mxu0 %v2416
        %2463 = vmatpush.msra.mxu0 %v2414
        %2464 = vmatpush.msra.mxu0 %v2412
        %2465 = vmatpush.msra.mxu0 %v2410
        %2466 = vmatpush.msra.mxu0 %v2408
        %2467 = vmatpush.msra.mxu0 %v2406
        %2468 = vmatpush.msra.mxu0 %v2404
        %2469 = vmatpush.msra.mxu0 %v2402
        %2470 = vmatpush.msra.mxu0 %v2400
        %2471 = vmatpush.msra.mxu0 %v2398
        %2472 = vmatmul.f32.gmra.mxu0 %v2428
        %v2473 = vpop.f32.mrf.mxu0
        %v2474 = vadd.f32 0.0, %v2473
        %2475 = vmatmul.f32.gmra.mxu0 %v2431
        %v2476 = vpop.f32.mrf.mxu0
        %v2477 = vadd.f32 0.0, %v2476
        %2478 = vdwg.mxu0
        %v2480 = vsel %vm1853, %v2332, 0
        %v2483 = vsel %vm1853, %v2333, 0
        %2485 = vmatpush.msra.mxu0 0.0
        %2486 = vmatpush.msra.mxu0 %v2377
        %2487 = vmatpush.msra.mxu0 %v2375
        %2488 = vmatpush.msra.mxu0 %v2373
        %2489 = vmatpush.msra.mxu0 %v2371
        %2490 = vmatpush.msra.mxu0 %v2369
        %2491 = vmatpush.msra.mxu0 %v2367
        %2492 = vmatpush.msra.mxu0 %v2365
        %2493 = vmatpush.msra.mxu0 %v2363
        %2494 = vmatpush.msra.mxu0 %v2361
        %2495 = vmatpush.msra.mxu0 %v2359
        %2496 = vmatpush.msra.mxu0 %v2357
        %2497 = vmatpush.msra.mxu0 %v2355
        %2498 = vmatpush.msra.mxu0 %v2353
        %2499 = vmatpush.msra.mxu0 %v2351
        %2500 = vmatpush.msra.mxu0 %v2349
        %2501 = vmatmul.f32.gmra.mxu0 %v2480
        %v2502 = vpop.f32.mrf.mxu0
        %v2503 = vadd.f32 %v2451, %v2502
        %2504 = vmatmul.f32.gmra.mxu0 %v2483
        %v2505 = vpop.f32.mrf.mxu0
        %v2506 = vadd.f32 %v2454, %v2505
        %2507 = vdwg.mxu0
        %2508 = vmatpush.msra.mxu0 0.0
        %2509 = vmatpush.msra.mxu0 %v2378
        %2510 = vmatpush.msra.mxu0 %v2376
        %2511 = vmatpush.msra.mxu0 %v2374
        %2512 = vmatpush.msra.mxu0 %v2372
        %2513 = vmatpush.msra.mxu0 %v2370
        %2514 = vmatpush.msra.mxu0 %v2368
        %2515 = vmatpush.msra.mxu0 %v2366
        %2516 = vmatpush.msra.mxu0 %v2364
        %2517 = vmatpush.msra.mxu0 %v2362
        %2518 = vmatpush.msra.mxu0 %v2360
        %2519 = vmatpush.msra.mxu0 %v2358
        %2520 = vmatpush.msra.mxu0 %v2356
        %2521 = vmatpush.msra.mxu0 %v2354
        %2522 = vmatpush.msra.mxu0 %v2352
        %2523 = vmatpush.msra.mxu0 %v2350
        %2524 = vmatmul.f32.gmra.mxu0 %v2480
        %v2525 = vpop.f32.mrf.mxu0
        %v2526 = vadd.f32 %v2474, %v2525
        %2527 = vmatmul.f32.gmra.mxu0 %v2483
        %v2528 = vpop.f32.mrf.mxu0
        %v2529 = vadd.f32 %v2477, %v2528
        %2530 = vdwg.mxu0
        %v2531 = vld [vmem:[#allocation6 + $0x2] sm:$0xff]
        %v2532 = vld [vmem:[#allocation6 + $0xa] sm:$0x7f]
        %s2533 = scalar_lea.vmem %s5, 240
        %v2534 = vld [vmem:[%s2533] sm:$0xff]
        %v2535 = vld [vmem:[%s2533 + $0x8] sm:$0xff]
        %v2536 = vld [vmem:[%s2533 + $0x10] sm:$0xff]
        %v2537 = vld [vmem:[%s2533 + $0x18] sm:$0xff]
        %v2538 = vld [vmem:[%s2533 + $0x20] sm:$0xff]
        %v2539 = vld [vmem:[%s2533 + $0x28] sm:$0xff]
        %v2540 = vld [vmem:[%s2533 + $0x30] sm:$0xff]
        %v2541 = vld [vmem:[%s2533 + $0x38] sm:$0xff]
        %v2542 = vld [vmem:[%s2533 + $0x40] sm:$0xff]
        %v2543 = vld [vmem:[%s2533 + $0x48] sm:$0xff]
        %v2544 = vld [vmem:[%s2533 + $0x50] sm:$0xff]
        %v2545 = vld [vmem:[%s2533 + $0x58] sm:$0xff]
        %v2546 = vld [vmem:[%s2533 + $0x60] sm:$0xff]
        %v2547 = vld [vmem:[%s2533 + $0x68] sm:$0xff]
        %v2548 = vld [vmem:[%s2533 + $0x70] sm:$0xff]
        %v2549 = vunpack.c.l.bf16 %v2534
        %v2550 = vunpack.c.h.bf16 %v2534
        %v2551 = vunpack.c.l.bf16 %v2535
        %v2552 = vunpack.c.h.bf16 %v2535
        %v2553 = vunpack.c.l.bf16 %v2536
        %v2554 = vunpack.c.h.bf16 %v2536
        %v2555 = vunpack.c.l.bf16 %v2537
        %v2556 = vunpack.c.h.bf16 %v2537
        %v2557 = vunpack.c.l.bf16 %v2538
        %v2558 = vunpack.c.h.bf16 %v2538
        %v2559 = vunpack.c.l.bf16 %v2539
        %v2560 = vunpack.c.h.bf16 %v2539
        %v2561 = vunpack.c.l.bf16 %v2540
        %v2562 = vunpack.c.h.bf16 %v2540
        %v2563 = vunpack.c.l.bf16 %v2541
        %v2564 = vunpack.c.h.bf16 %v2541
        %v2565 = vunpack.c.l.bf16 %v2542
        %v2566 = vunpack.c.h.bf16 %v2542
        %v2567 = vunpack.c.l.bf16 %v2543
        %v2568 = vunpack.c.h.bf16 %v2543
        %v2569 = vunpack.c.l.bf16 %v2544
        %v2570 = vunpack.c.h.bf16 %v2544
        %v2571 = vunpack.c.l.bf16 %v2545
        %v2572 = vunpack.c.h.bf16 %v2545
        %v2573 = vunpack.c.l.bf16 %v2546
        %v2574 = vunpack.c.h.bf16 %v2546
        %v2575 = vunpack.c.l.bf16 %v2547
        %v2576 = vunpack.c.h.bf16 %v2547
        %v2577 = vunpack.c.l.bf16 %v2548
        %v2578 = vunpack.c.h.bf16 %v2548
        %v2580 = vsel %vm1853, %v2531, 0
        %v2583 = vsel %vm1853, %v2532, 0
        %2585 = vmatpush.msra.mxu0 0.0
        %2586 = vmatpush.msra.mxu0 %v2577
        %2587 = vmatpush.msra.mxu0 %v2575
        %2588 = vmatpush.msra.mxu0 %v2573
        %2589 = vmatpush.msra.mxu0 %v2571
        %2590 = vmatpush.msra.mxu0 %v2569
        %2591 = vmatpush.msra.mxu0 %v2567
        %2592 = vmatpush.msra.mxu0 %v2565
        %2593 = vmatpush.msra.mxu0 %v2563
        %2594 = vmatpush.msra.mxu0 %v2561
        %2595 = vmatpush.msra.mxu0 %v2559
        %2596 = vmatpush.msra.mxu0 %v2557
        %2597 = vmatpush.msra.mxu0 %v2555
        %2598 = vmatpush.msra.mxu0 %v2553
        %2599 = vmatpush.msra.mxu0 %v2551
        %2600 = vmatpush.msra.mxu0 %v2549
        %2601 = vmatmul.f32.gmra.mxu0 %v2580
        %v2602 = vpop.f32.mrf.mxu0
        %v2603 = vadd.f32 0.0, %v2602
        %2604 = vmatmul.f32.gmra.mxu0 %v2583
        %v2605 = vpop.f32.mrf.mxu0
        %v2606 = vadd.f32 0.0, %v2605
        %2607 = vdwg.mxu0
        %2608 = vmatpush.msra.mxu0 0.0
        %2609 = vmatpush.msra.mxu0 %v2578
        %2610 = vmatpush.msra.mxu0 %v2576
        %2611 = vmatpush.msra.mxu0 %v2574
        %2612 = vmatpush.msra.mxu0 %v2572
        %2613 = vmatpush.msra.mxu0 %v2570
        %2614 = vmatpush.msra.mxu0 %v2568
        %2615 = vmatpush.msra.mxu0 %v2566
        %2616 = vmatpush.msra.mxu0 %v2564
        %2617 = vmatpush.msra.mxu0 %v2562
        %2618 = vmatpush.msra.mxu0 %v2560
        %2619 = vmatpush.msra.mxu0 %v2558
        %2620 = vmatpush.msra.mxu0 %v2556
        %2621 = vmatpush.msra.mxu0 %v2554
        %2622 = vmatpush.msra.mxu0 %v2552
        %2623 = vmatpush.msra.mxu0 %v2550
        %2624 = vmatmul.f32.gmra.mxu0 %v2580
        %v2625 = vpop.f32.mrf.mxu0
        %v2626 = vadd.f32 0.0, %v2625
        %2627 = vmatmul.f32.gmra.mxu0 %v2583
        %v2628 = vpop.f32.mrf.mxu0
        %v2629 = vadd.f32 0.0, %v2628
        %2630 = vdwg.mxu0
        %v2631 = vadd.f32 %v2503, %v2603
        %v2632 = vadd.f32 %v2526, %v2626
        %v2633 = vadd.f32 %v2506, %v2606
        %v2634 = vadd.f32 %v2529, %v2629
        %v2635 = vld [vmem:[%s6] sm:$0x3]
        %v2637 = vperm.slane %v2635, 0
        %v2638 = vperm.slane %v2635, 1
        %v2641 = vadd.f32 %v2631, %v2637
        %v2642 = vadd.f32 %v2632, %v2638
        %v2643 = vadd.f32 %v2633, %v2637
        %v2644 = vadd.f32 %v2634, %v2638
        %v2645 = vmax.f32 %v2641, 0.0
        %v2646 = vmax.f32 %v2642, 0.0
        %v2647 = vmax.f32 %v2643, 0.0
        %v2648 = vmax.f32 %v2644, 0.0
        %2649 = vst [vmem:[#allocation7] sm:$0xff] %v2645
        %2650 = vst.msk [vmem:[#allocation7 + $0x8] sm:$0xff] %vm1844, %v2646
        %2651 = vst [vmem:[#allocation7 + $0x10] sm:$0x7f] %v2647
        %vm2652 = vcmask 915456
        %2653 = vst.msk [vmem:[#allocation7 + $0x18] sm:$0x7f] %vm2652, %v2648
        %v2654 = vld [vmem:[#allocation7] sm:$0xff]
        %v2655 = vld [vmem:[#allocation7 + $0x8] sm:$0xff]
        %v2656 = vld [vmem:[#allocation7 + $0x10] sm:$0x1f]
        %v2657 = vld [vmem:[#allocation7 + $0x18] sm:$0x1f]
        %v2658 = vld [vmem:[%s7] sm:$0xff]
        %v2659 = vld [vmem:[%s7 + $0x8] sm:$0xff]
        %v2660 = vld [vmem:[%s7 + $0x10] sm:$0xff]
        %v2661 = vld [vmem:[%s7 + $0x18] sm:$0xff]
        %v2662 = vld [vmem:[%s7 + $0x20] sm:$0xff]
        %v2663 = vld [vmem:[%s7 + $0x28] sm:$0xff]
        %v2664 = vld [vmem:[%s7 + $0x30] sm:$0xff]
        %v2665 = vld [vmem:[%s7 + $0x38] sm:$0xff]
        %v2666 = vld [vmem:[%s7 + $0x40] sm:$0xff]
        %v2667 = vld [vmem:[%s7 + $0x48] sm:$0xff]
        %v2668 = vld [vmem:[%s7 + $0x50] sm:$0xff]
        %v2669 = vld [vmem:[%s7 + $0x58] sm:$0xff]
        %v2670 = vld [vmem:[%s7 + $0x60] sm:$0xff]
        %v2671 = vld [vmem:[%s7 + $0x68] sm:$0xff]
        %v2672 = vld [vmem:[%s7 + $0x70] sm:$0xff]
        %v2673 = vld [vmem:[%s7 + $0x78] sm:$0xff]
        %v2674 = vld [vmem:[%s7 + $0x80] sm:$0xff]
        %v2675 = vld [vmem:[%s7 + $0x88] sm:$0xff]
        %v2676 = vld [vmem:[%s7 + $0x90] sm:$0xff]
        %v2677 = vld [vmem:[%s7 + $0x98] sm:$0xff]
        %v2678 = vld [vmem:[%s7 + $0xa0] sm:$0xff]
        %v2679 = vld [vmem:[%s7 + $0xa8] sm:$0xff]
        %v2680 = vld [vmem:[%s7 + $0xb0] sm:$0xff]
        %v2681 = vld [vmem:[%s7 + $0xb8] sm:$0xff]
        %v2682 = vld [vmem:[%s7 + $0xc0] sm:$0xff]
        %v2683 = vld [vmem:[%s7 + $0xc8] sm:$0xff]
        %v2684 = vld [vmem:[%s7 + $0xd0] sm:$0xff]
        %v2685 = vld [vmem:[%s7 + $0xd8] sm:$0xff]
        %v2686 = vld [vmem:[%s7 + $0xe0] sm:$0xff]
        %v2687 = vld [vmem:[%s7 + $0xe8] sm:$0xff]
        %v2688 = vunpack.c.l.bf16 %v2658
        %v2689 = vunpack.c.h.bf16 %v2658
        %v2690 = vunpack.c.l.bf16 %v2659
        %v2691 = vunpack.c.h.bf16 %v2659
        %v2692 = vunpack.c.l.bf16 %v2660
        %v2693 = vunpack.c.h.bf16 %v2660
        %v2694 = vunpack.c.l.bf16 %v2661
        %v2695 = vunpack.c.h.bf16 %v2661
        %v2696 = vunpack.c.l.bf16 %v2662
        %v2697 = vunpack.c.h.bf16 %v2662
        %v2698 = vunpack.c.l.bf16 %v2663
        %v2699 = vunpack.c.h.bf16 %v2663
        %v2700 = vunpack.c.l.bf16 %v2664
        %v2701 = vunpack.c.h.bf16 %v2664
        %v2702 = vunpack.c.l.bf16 %v2665
        %v2703 = vunpack.c.h.bf16 %v2665
        %v2704 = vunpack.c.l.bf16 %v2666
        %v2705 = vunpack.c.h.bf16 %v2666
        %v2706 = vunpack.c.l.bf16 %v2667
        %v2707 = vunpack.c.h.bf16 %v2667
        %v2708 = vunpack.c.l.bf16 %v2668
        %v2709 = vunpack.c.h.bf16 %v2668
        %v2710 = vunpack.c.l.bf16 %v2669
        %v2711 = vunpack.c.h.bf16 %v2669
        %v2712 = vunpack.c.l.bf16 %v2670
        %v2713 = vunpack.c.h.bf16 %v2670
        %v2714 = vunpack.c.l.bf16 %v2671
        %v2715 = vunpack.c.h.bf16 %v2671
        %v2716 = vunpack.c.l.bf16 %v2672
        %v2717 = vunpack.c.h.bf16 %v2672
        %v2718 = vunpack.c.l.bf16 %v2673
        %v2719 = vunpack.c.h.bf16 %v2673
        %v2720 = vunpack.c.l.bf16 %v2674
        %v2721 = vunpack.c.h.bf16 %v2674
        %v2722 = vunpack.c.l.bf16 %v2675
        %v2723 = vunpack.c.h.bf16 %v2675
        %v2724 = vunpack.c.l.bf16 %v2676
        %v2725 = vunpack.c.h.bf16 %v2676
        %v2726 = vunpack.c.l.bf16 %v2677
        %v2727 = vunpack.c.h.bf16 %v2677
        %v2728 = vunpack.c.l.bf16 %v2678
        %v2729 = vunpack.c.h.bf16 %v2678
        %v2730 = vunpack.c.l.bf16 %v2679
        %v2731 = vunpack.c.h.bf16 %v2679
        %v2732 = vunpack.c.l.bf16 %v2680
        %v2733 = vunpack.c.h.bf16 %v2680
        %v2734 = vunpack.c.l.bf16 %v2681
        %v2735 = vunpack.c.h.bf16 %v2681
        %v2736 = vunpack.c.l.bf16 %v2682
        %v2737 = vunpack.c.h.bf16 %v2682
        %v2738 = vunpack.c.l.bf16 %v2683
        %v2739 = vunpack.c.h.bf16 %v2683
        %v2740 = vunpack.c.l.bf16 %v2684
        %v2741 = vunpack.c.h.bf16 %v2684
        %v2742 = vunpack.c.l.bf16 %v2685
        %v2743 = vunpack.c.h.bf16 %v2685
        %v2744 = vunpack.c.l.bf16 %v2686
        %v2745 = vunpack.c.h.bf16 %v2686
        %v2746 = vunpack.c.l.bf16 %v2687
        %v2747 = vunpack.c.h.bf16 %v2687
        %v2748 = vld [vmem:[#allocation7] sm:$0xfe]
        %v2749 = vld [vmem:[#allocation7 + $0x8] sm:$0xfe]
        %v2750 = vld [vmem:[#allocation7 + $0x10] sm:$0x3f]
        %v2751 = vld [vmem:[#allocation7 + $0x18] sm:$0x3f]
        %s2752 = scalar_lea.vmem %s7, 240
        %v2753 = vld [vmem:[%s2752] sm:$0xff]
        %v2754 = vld [vmem:[%s2752 + $0x8] sm:$0xff]
        %v2755 = vld [vmem:[%s2752 + $0x10] sm:$0xff]
        %v2756 = vld [vmem:[%s2752 + $0x18] sm:$0xff]
        %v2757 = vld [vmem:[%s2752 + $0x20] sm:$0xff]
        %v2758 = vld [vmem:[%s2752 + $0x28] sm:$0xff]
        %v2759 = vld [vmem:[%s2752 + $0x30] sm:$0xff]
        %v2760 = vld [vmem:[%s2752 + $0x38] sm:$0xff]
        %v2761 = vld [vmem:[%s2752 + $0x40] sm:$0xff]
        %v2762 = vld [vmem:[%s2752 + $0x48] sm:$0xff]
        %v2763 = vld [vmem:[%s2752 + $0x50] sm:$0xff]
        %v2764 = vld [vmem:[%s2752 + $0x58] sm:$0xff]
        %v2765 = vld [vmem:[%s2752 + $0x60] sm:$0xff]
        %v2766 = vld [vmem:[%s2752 + $0x68] sm:$0xff]
        %v2767 = vld [vmem:[%s2752 + $0x70] sm:$0xff]
        %v2768 = vld [vmem:[%s2752 + $0x78] sm:$0xff]
        %v2769 = vld [vmem:[%s2752 + $0x80] sm:$0xff]
        %v2770 = vld [vmem:[%s2752 + $0x88] sm:$0xff]
        %v2771 = vld [vmem:[%s2752 + $0x90] sm:$0xff]
        %v2772 = vld [vmem:[%s2752 + $0x98] sm:$0xff]
        %v2773 = vld [vmem:[%s2752 + $0xa0] sm:$0xff]
        %v2774 = vld [vmem:[%s2752 + $0xa8] sm:$0xff]
        %v2775 = vld [vmem:[%s2752 + $0xb0] sm:$0xff]
        %v2776 = vld [vmem:[%s2752 + $0xb8] sm:$0xff]
        %v2777 = vld [vmem:[%s2752 + $0xc0] sm:$0xff]
        %v2778 = vld [vmem:[%s2752 + $0xc8] sm:$0xff]
        %v2779 = vld [vmem:[%s2752 + $0xd0] sm:$0xff]
        %v2780 = vld [vmem:[%s2752 + $0xd8] sm:$0xff]
        %v2781 = vld [vmem:[%s2752 + $0xe0] sm:$0xff]
        %v2782 = vld [vmem:[%s2752 + $0xe8] sm:$0xff]
        %v2783 = vunpack.c.l.bf16 %v2753
        %v2784 = vunpack.c.h.bf16 %v2753
        %v2785 = vunpack.c.l.bf16 %v2754
        %v2786 = vunpack.c.h.bf16 %v2754
        %v2787 = vunpack.c.l.bf16 %v2755
        %v2788 = vunpack.c.h.bf16 %v2755
        %v2789 = vunpack.c.l.bf16 %v2756
        %v2790 = vunpack.c.h.bf16 %v2756
        %v2791 = vunpack.c.l.bf16 %v2757
        %v2792 = vunpack.c.h.bf16 %v2757
        %v2793 = vunpack.c.l.bf16 %v2758
        %v2794 = vunpack.c.h.bf16 %v2758
        %v2795 = vunpack.c.l.bf16 %v2759
        %v2796 = vunpack.c.h.bf16 %v2759
        %v2797 = vunpack.c.l.bf16 %v2760
        %v2798 = vunpack.c.h.bf16 %v2760
        %v2799 = vunpack.c.l.bf16 %v2761
        %v2800 = vunpack.c.h.bf16 %v2761
        %v2801 = vunpack.c.l.bf16 %v2762
        %v2802 = vunpack.c.h.bf16 %v2762
        %v2803 = vunpack.c.l.bf16 %v2763
        %v2804 = vunpack.c.h.bf16 %v2763
        %v2805 = vunpack.c.l.bf16 %v2764
        %v2806 = vunpack.c.h.bf16 %v2764
        %v2807 = vunpack.c.l.bf16 %v2765
        %v2808 = vunpack.c.h.bf16 %v2765
        %v2809 = vunpack.c.l.bf16 %v2766
        %v2810 = vunpack.c.h.bf16 %v2766
        %v2811 = vunpack.c.l.bf16 %v2767
        %v2812 = vunpack.c.h.bf16 %v2767
        %v2813 = vunpack.c.l.bf16 %v2768
        %v2814 = vunpack.c.h.bf16 %v2768
        %v2815 = vunpack.c.l.bf16 %v2769
        %v2816 = vunpack.c.h.bf16 %v2769
        %v2817 = vunpack.c.l.bf16 %v2770
        %v2818 = vunpack.c.h.bf16 %v2770
        %v2819 = vunpack.c.l.bf16 %v2771
        %v2820 = vunpack.c.h.bf16 %v2771
        %v2821 = vunpack.c.l.bf16 %v2772
        %v2822 = vunpack.c.h.bf16 %v2772
        %v2823 = vunpack.c.l.bf16 %v2773
        %v2824 = vunpack.c.h.bf16 %v2773
        %v2825 = vunpack.c.l.bf16 %v2774
        %v2826 = vunpack.c.h.bf16 %v2774
        %v2827 = vunpack.c.l.bf16 %v2775
        %v2828 = vunpack.c.h.bf16 %v2775
        %v2829 = vunpack.c.l.bf16 %v2776
        %v2830 = vunpack.c.h.bf16 %v2776
        %v2831 = vunpack.c.l.bf16 %v2777
        %v2832 = vunpack.c.h.bf16 %v2777
        %v2833 = vunpack.c.l.bf16 %v2778
        %v2834 = vunpack.c.h.bf16 %v2778
        %v2835 = vunpack.c.l.bf16 %v2779
        %v2836 = vunpack.c.h.bf16 %v2779
        %v2837 = vunpack.c.l.bf16 %v2780
        %v2838 = vunpack.c.h.bf16 %v2780
        %v2839 = vunpack.c.l.bf16 %v2781
        %v2840 = vunpack.c.h.bf16 %v2781
        %v2841 = vunpack.c.l.bf16 %v2782
        %v2842 = vunpack.c.h.bf16 %v2782
        %v2847 = vrot.slane %v2748, 1
        %v2848 = vrot.slane %v2750, 1
        %v2849 = vsel %vm1314, %v2847, %v2848
        %v2850 = vrot.slane %v2749, 1
        %v2851 = vrot.slane %v2751, 1
        %v2852 = vsel %vm1314, %v2850, %v2851
        %v2855 = vsel %vm1844, %v2852, 0
        %v2857 = vsel %vm1844, %v2851, 0
        %2859 = vmatpush.msra.mxu0 %v2813
        %2860 = vmatpush.msra.mxu0 %v2811
        %2861 = vmatpush.msra.mxu0 %v2809
        %2862 = vmatpush.msra.mxu0 %v2807
        %2863 = vmatpush.msra.mxu0 %v2805
        %2864 = vmatpush.msra.mxu0 %v2803
        %2865 = vmatpush.msra.mxu0 %v2801
        %2866 = vmatpush.msra.mxu0 %v2799
        %2867 = vmatpush.msra.mxu0 %v2797
        %2868 = vmatpush.msra.mxu0 %v2795
        %2869 = vmatpush.msra.mxu0 %v2793
        %2870 = vmatpush.msra.mxu0 %v2791
        %2871 = vmatpush.msra.mxu0 %v2789
        %2872 = vmatpush.msra.mxu0 %v2787
        %2873 = vmatpush.msra.mxu0 %v2785
        %2874 = vmatpush.msra.mxu0 %v2783
        %2875 = vmatmul.f32.gmra.mxu0 %v2849
        %v2876 = vpop.f32.mrf.mxu0
        %v2877 = vadd.f32 0.0, %v2876
        %2878 = vmatmul.f32.gmra.mxu0 %v2848
        %v2879 = vpop.f32.mrf.mxu0
        %v2880 = vadd.f32 0.0, %v2879
        %2881 = vdwg.mxu0
        %2882 = vmatpush.msra.mxu0 0.0
        %2883 = vmatpush.msra.mxu0 0.0
        %2884 = vmatpush.msra.mxu0 %v2841
        %2885 = vmatpush.msra.mxu0 %v2839
        %2886 = vmatpush.msra.mxu0 %v2837
        %2887 = vmatpush.msra.mxu0 %v2835
        %2888 = vmatpush.msra.mxu0 %v2833
        %2889 = vmatpush.msra.mxu0 %v2831
        %2890 = vmatpush.msra.mxu0 %v2829
        %2891 = vmatpush.msra.mxu0 %v2827
        %2892 = vmatpush.msra.mxu0 %v2825
        %2893 = vmatpush.msra.mxu0 %v2823
        %2894 = vmatpush.msra.mxu0 %v2821
        %2895 = vmatpush.msra.mxu0 %v2819
        %2896 = vmatpush.msra.mxu0 %v2817
        %2897 = vmatpush.msra.mxu0 %v2815
        %2898 = vmatmul.f32.gmra.mxu0 %v2855
        %v2899 = vpop.f32.mrf.mxu0
        %v2900 = vadd.f32 %v2877, %v2899
        %2901 = vmatmul.f32.gmra.mxu0 %v2857
        %v2902 = vpop.f32.mrf.mxu0
        %v2903 = vadd.f32 %v2880, %v2902
        %2904 = vdwg.mxu0
        %2905 = vmatpush.msra.mxu0 %v2814
        %2906 = vmatpush.msra.mxu0 %v2812
        %2907 = vmatpush.msra.mxu0 %v2810
        %2908 = vmatpush.msra.mxu0 %v2808
        %2909 = vmatpush.msra.mxu0 %v2806
        %2910 = vmatpush.msra.mxu0 %v2804
        %2911 = vmatpush.msra.mxu0 %v2802
        %2912 = vmatpush.msra.mxu0 %v2800
        %2913 = vmatpush.msra.mxu0 %v2798
        %2914 = vmatpush.msra.mxu0 %v2796
        %2915 = vmatpush.msra.mxu0 %v2794
        %2916 = vmatpush.msra.mxu0 %v2792
        %2917 = vmatpush.msra.mxu0 %v2790
        %2918 = vmatpush.msra.mxu0 %v2788
        %2919 = vmatpush.msra.mxu0 %v2786
        %2920 = vmatpush.msra.mxu0 %v2784
        %2921 = vmatmul.f32.gmra.mxu0 %v2849
        %v2922 = vpop.f32.mrf.mxu0
        %v2923 = vadd.f32 0.0, %v2922
        %2924 = vmatmul.f32.gmra.mxu0 %v2848
        %v2925 = vpop.f32.mrf.mxu0
        %v2926 = vadd.f32 0.0, %v2925
        %2927 = vdwg.mxu0
        %2928 = vmatpush.msra.mxu0 0.0
        %2929 = vmatpush.msra.mxu0 0.0
        %2930 = vmatpush.msra.mxu0 %v2842
        %2931 = vmatpush.msra.mxu0 %v2840
        %2932 = vmatpush.msra.mxu0 %v2838
        %2933 = vmatpush.msra.mxu0 %v2836
        %2934 = vmatpush.msra.mxu0 %v2834
        %2935 = vmatpush.msra.mxu0 %v2832
        %2936 = vmatpush.msra.mxu0 %v2830
        %2937 = vmatpush.msra.mxu0 %v2828
        %2938 = vmatpush.msra.mxu0 %v2826
        %2939 = vmatpush.msra.mxu0 %v2824
        %2940 = vmatpush.msra.mxu0 %v2822
        %2941 = vmatpush.msra.mxu0 %v2820
        %2942 = vmatpush.msra.mxu0 %v2818
        %2943 = vmatpush.msra.mxu0 %v2816
        %2944 = vmatmul.f32.gmra.mxu0 %v2855
        %v2945 = vpop.f32.mrf.mxu0
        %v2946 = vadd.f32 %v2923, %v2945
        %2947 = vmatmul.f32.gmra.mxu0 %v2857
        %v2948 = vpop.f32.mrf.mxu0
        %v2949 = vadd.f32 %v2926, %v2948
        %2950 = vdwg.mxu0
        %v2952 = vsel %vm1844, %v2655, 0
        %v2955 = vsel %vm1844, %v2657, 0
        %2957 = vmatpush.msra.mxu0 %v2718
        %2958 = vmatpush.msra.mxu0 %v2716
        %2959 = vmatpush.msra.mxu0 %v2714
        %2960 = vmatpush.msra.mxu0 %v2712
        %2961 = vmatpush.msra.mxu0 %v2710
        %2962 = vmatpush.msra.mxu0 %v2708
        %2963 = vmatpush.msra.mxu0 %v2706
        %2964 = vmatpush.msra.mxu0 %v2704
        %2965 = vmatpush.msra.mxu0 %v2702
        %2966 = vmatpush.msra.mxu0 %v2700
        %2967 = vmatpush.msra.mxu0 %v2698
        %2968 = vmatpush.msra.mxu0 %v2696
        %2969 = vmatpush.msra.mxu0 %v2694
        %2970 = vmatpush.msra.mxu0 %v2692
        %2971 = vmatpush.msra.mxu0 %v2690
        %2972 = vmatpush.msra.mxu0 %v2688
        %2973 = vmatmul.f32.gmra.mxu0 %v2654
        %v2974 = vpop.f32.mrf.mxu0
        %v2975 = vadd.f32 %v2900, %v2974
        %2976 = vmatmul.f32.gmra.mxu0 %v2656
        %v2977 = vpop.f32.mrf.mxu0
        %v2978 = vadd.f32 %v2903, %v2977
        %2979 = vdwg.mxu0
        %2980 = vmatpush.msra.mxu0 0.0
        %2981 = vmatpush.msra.mxu0 0.0
        %2982 = vmatpush.msra.mxu0 %v2746
        %2983 = vmatpush.msra.mxu0 %v2744
        %2984 = vmatpush.msra.mxu0 %v2742
        %2985 = vmatpush.msra.mxu0 %v2740
        %2986 = vmatpush.msra.mxu0 %v2738
        %2987 = vmatpush.msra.mxu0 %v2736
        %2988 = vmatpush.msra.mxu0 %v2734
        %2989 = vmatpush.msra.mxu0 %v2732
        %2990 = vmatpush.msra.mxu0 %v2730
        %2991 = vmatpush.msra.mxu0 %v2728
        %2992 = vmatpush.msra.mxu0 %v2726
        %2993 = vmatpush.msra.mxu0 %v2724
        %2994 = vmatpush.msra.mxu0 %v2722
        %2995 = vmatpush.msra.mxu0 %v2720
        %2996 = vmatmul.f32.gmra.mxu0 %v2952
        %v2997 = vpop.f32.mrf.mxu0
        %v2998 = vadd.f32 %v2975, %v2997
        %2999 = vmatmul.f32.gmra.mxu0 %v2955
        %v3000 = vpop.f32.mrf.mxu0
        %v3001 = vadd.f32 %v2978, %v3000
        %3002 = vdwg.mxu0
        %3003 = vmatpush.msra.mxu0 %v2719
        %3004 = vmatpush.msra.mxu0 %v2717
        %3005 = vmatpush.msra.mxu0 %v2715
        %3006 = vmatpush.msra.mxu0 %v2713
        %3007 = vmatpush.msra.mxu0 %v2711
        %3008 = vmatpush.msra.mxu0 %v2709
        %3009 = vmatpush.msra.mxu0 %v2707
        %3010 = vmatpush.msra.mxu0 %v2705
        %3011 = vmatpush.msra.mxu0 %v2703
        %3012 = vmatpush.msra.mxu0 %v2701
        %3013 = vmatpush.msra.mxu0 %v2699
        %3014 = vmatpush.msra.mxu0 %v2697
        %3015 = vmatpush.msra.mxu0 %v2695
        %3016 = vmatpush.msra.mxu0 %v2693
        %3017 = vmatpush.msra.mxu0 %v2691
        %3018 = vmatpush.msra.mxu0 %v2689
        %3019 = vmatmul.f32.gmra.mxu0 %v2654
        %v3020 = vpop.f32.mrf.mxu0
        %v3021 = vadd.f32 %v2946, %v3020
        %3022 = vmatmul.f32.gmra.mxu0 %v2656
        %v3023 = vpop.f32.mrf.mxu0
        %v3024 = vadd.f32 %v2949, %v3023
        %3025 = vdwg.mxu0
        %3026 = vmatpush.msra.mxu0 0.0
        %3027 = vmatpush.msra.mxu0 0.0
        %3028 = vmatpush.msra.mxu0 %v2747
        %3029 = vmatpush.msra.mxu0 %v2745
        %3030 = vmatpush.msra.mxu0 %v2743
        %3031 = vmatpush.msra.mxu0 %v2741
        %3032 = vmatpush.msra.mxu0 %v2739
        %3033 = vmatpush.msra.mxu0 %v2737
        %3034 = vmatpush.msra.mxu0 %v2735
        %3035 = vmatpush.msra.mxu0 %v2733
        %3036 = vmatpush.msra.mxu0 %v2731
        %3037 = vmatpush.msra.mxu0 %v2729
        %3038 = vmatpush.msra.mxu0 %v2727
        %3039 = vmatpush.msra.mxu0 %v2725
        %3040 = vmatpush.msra.mxu0 %v2723
        %3041 = vmatpush.msra.mxu0 %v2721
        %3042 = vmatmul.f32.gmra.mxu0 %v2952
        %v3043 = vpop.f32.mrf.mxu0
        %v3044 = vadd.f32 %v3021, %v3043
        %3045 = vmatmul.f32.gmra.mxu0 %v2955
        %v3046 = vpop.f32.mrf.mxu0
        %v3047 = vadd.f32 %v3024, %v3046
        %3048 = vdwg.mxu0
        %v3049 = vld [vmem:[#allocation7] sm:$0xfc]
        %v3050 = vld [vmem:[#allocation7 + $0x8] sm:$0xfc]
        %v3051 = vld [vmem:[#allocation7 + $0x10] sm:$0x7f]
        %v3052 = vld [vmem:[#allocation7 + $0x18] sm:$0x7f]
        %s3053 = scalar_lea.vmem %s7, 480
        %v3054 = vld [vmem:[%s3053] sm:$0xff]
        %v3055 = vld [vmem:[%s3053 + $0x8] sm:$0xff]
        %v3056 = vld [vmem:[%s3053 + $0x10] sm:$0xff]
        %v3057 = vld [vmem:[%s3053 + $0x18] sm:$0xff]
        %v3058 = vld [vmem:[%s3053 + $0x20] sm:$0xff]
        %v3059 = vld [vmem:[%s3053 + $0x28] sm:$0xff]
        %v3060 = vld [vmem:[%s3053 + $0x30] sm:$0xff]
        %v3061 = vld [vmem:[%s3053 + $0x38] sm:$0xff]
        %v3062 = vld [vmem:[%s3053 + $0x40] sm:$0xff]
        %v3063 = vld [vmem:[%s3053 + $0x48] sm:$0xff]
        %v3064 = vld [vmem:[%s3053 + $0x50] sm:$0xff]
        %v3065 = vld [vmem:[%s3053 + $0x58] sm:$0xff]
        %v3066 = vld [vmem:[%s3053 + $0x60] sm:$0xff]
        %v3067 = vld [vmem:[%s3053 + $0x68] sm:$0xff]
        %v3068 = vld [vmem:[%s3053 + $0x70] sm:$0xff]
        %v3069 = vld [vmem:[%s3053 + $0x78] sm:$0xff]
        %v3070 = vld [vmem:[%s3053 + $0x80] sm:$0xff]
        %v3071 = vld [vmem:[%s3053 + $0x88] sm:$0xff]
        %v3072 = vld [vmem:[%s3053 + $0x90] sm:$0xff]
        %v3073 = vld [vmem:[%s3053 + $0x98] sm:$0xff]
        %v3074 = vld [vmem:[%s3053 + $0xa0] sm:$0xff]
        %v3075 = vld [vmem:[%s3053 + $0xa8] sm:$0xff]
        %v3076 = vld [vmem:[%s3053 + $0xb0] sm:$0xff]
        %v3077 = vld [vmem:[%s3053 + $0xb8] sm:$0xff]
        %v3078 = vld [vmem:[%s3053 + $0xc0] sm:$0xff]
        %v3079 = vld [vmem:[%s3053 + $0xc8] sm:$0xff]
        %v3080 = vld [vmem:[%s3053 + $0xd0] sm:$0xff]
        %v3081 = vld [vmem:[%s3053 + $0xd8] sm:$0xff]
        %v3082 = vld [vmem:[%s3053 + $0xe0] sm:$0xff]
        %v3083 = vld [vmem:[%s3053 + $0xe8] sm:$0xff]
        %v3084 = vunpack.c.l.bf16 %v3054
        %v3085 = vunpack.c.h.bf16 %v3054
        %v3086 = vunpack.c.l.bf16 %v3055
        %v3087 = vunpack.c.h.bf16 %v3055
        %v3088 = vunpack.c.l.bf16 %v3056
        %v3089 = vunpack.c.h.bf16 %v3056
        %v3090 = vunpack.c.l.bf16 %v3057
        %v3091 = vunpack.c.h.bf16 %v3057
        %v3092 = vunpack.c.l.bf16 %v3058
        %v3093 = vunpack.c.h.bf16 %v3058
        %v3094 = vunpack.c.l.bf16 %v3059
        %v3095 = vunpack.c.h.bf16 %v3059
        %v3096 = vunpack.c.l.bf16 %v3060
        %v3097 = vunpack.c.h.bf16 %v3060
        %v3098 = vunpack.c.l.bf16 %v3061
        %v3099 = vunpack.c.h.bf16 %v3061
        %v3100 = vunpack.c.l.bf16 %v3062
        %v3101 = vunpack.c.h.bf16 %v3062
        %v3102 = vunpack.c.l.bf16 %v3063
        %v3103 = vunpack.c.h.bf16 %v3063
        %v3104 = vunpack.c.l.bf16 %v3064
        %v3105 = vunpack.c.h.bf16 %v3064
        %v3106 = vunpack.c.l.bf16 %v3065
        %v3107 = vunpack.c.h.bf16 %v3065
        %v3108 = vunpack.c.l.bf16 %v3066
        %v3109 = vunpack.c.h.bf16 %v3066
        %v3110 = vunpack.c.l.bf16 %v3067
        %v3111 = vunpack.c.h.bf16 %v3067
        %v3112 = vunpack.c.l.bf16 %v3068
        %v3113 = vunpack.c.h.bf16 %v3068
        %v3114 = vunpack.c.l.bf16 %v3069
        %v3115 = vunpack.c.h.bf16 %v3069
        %v3116 = vunpack.c.l.bf16 %v3070
        %v3117 = vunpack.c.h.bf16 %v3070
        %v3118 = vunpack.c.l.bf16 %v3071
        %v3119 = vunpack.c.h.bf16 %v3071
        %v3120 = vunpack.c.l.bf16 %v3072
        %v3121 = vunpack.c.h.bf16 %v3072
        %v3122 = vunpack.c.l.bf16 %v3073
        %v3123 = vunpack.c.h.bf16 %v3073
        %v3124 = vunpack.c.l.bf16 %v3074
        %v3125 = vunpack.c.h.bf16 %v3074
        %v3126 = vunpack.c.l.bf16 %v3075
        %v3127 = vunpack.c.h.bf16 %v3075
        %v3128 = vunpack.c.l.bf16 %v3076
        %v3129 = vunpack.c.h.bf16 %v3076
        %v3130 = vunpack.c.l.bf16 %v3077
        %v3131 = vunpack.c.h.bf16 %v3077
        %v3132 = vunpack.c.l.bf16 %v3078
        %v3133 = vunpack.c.h.bf16 %v3078
        %v3134 = vunpack.c.l.bf16 %v3079
        %v3135 = vunpack.c.h.bf16 %v3079
        %v3136 = vunpack.c.l.bf16 %v3080
        %v3137 = vunpack.c.h.bf16 %v3080
        %v3138 = vunpack.c.l.bf16 %v3081
        %v3139 = vunpack.c.h.bf16 %v3081
        %v3140 = vunpack.c.l.bf16 %v3082
        %v3141 = vunpack.c.h.bf16 %v3082
        %v3142 = vunpack.c.l.bf16 %v3083
        %v3143 = vunpack.c.h.bf16 %v3083
        %v3148 = vrot.slane %v3049, 2
        %v3149 = vrot.slane %v3051, 2
        %v3150 = vsel %vm1674, %v3148, %v3149
        %v3151 = vrot.slane %v3050, 2
        %v3152 = vrot.slane %v3052, 2
        %v3153 = vsel %vm1674, %v3151, %v3152
        %v3156 = vsel %vm1844, %v3153, 0
        %v3158 = vsel %vm1844, %v3152, 0
        %3160 = vmatpush.msra.mxu0 %v3114
        %3161 = vmatpush.msra.mxu0 %v3112
        %3162 = vmatpush.msra.mxu0 %v3110
        %3163 = vmatpush.msra.mxu0 %v3108
        %3164 = vmatpush.msra.mxu0 %v3106
        %3165 = vmatpush.msra.mxu0 %v3104
        %3166 = vmatpush.msra.mxu0 %v3102
        %3167 = vmatpush.msra.mxu0 %v3100
        %3168 = vmatpush.msra.mxu0 %v3098
        %3169 = vmatpush.msra.mxu0 %v3096
        %3170 = vmatpush.msra.mxu0 %v3094
        %3171 = vmatpush.msra.mxu0 %v3092
        %3172 = vmatpush.msra.mxu0 %v3090
        %3173 = vmatpush.msra.mxu0 %v3088
        %3174 = vmatpush.msra.mxu0 %v3086
        %3175 = vmatpush.msra.mxu0 %v3084
        %3176 = vmatmul.f32.gmra.mxu0 %v3150
        %v3177 = vpop.f32.mrf.mxu0
        %v3178 = vadd.f32 0.0, %v3177
        %3179 = vmatmul.f32.gmra.mxu0 %v3149
        %v3180 = vpop.f32.mrf.mxu0
        %v3181 = vadd.f32 0.0, %v3180
        %3182 = vdwg.mxu0
        %3183 = vmatpush.msra.mxu0 0.0
        %3184 = vmatpush.msra.mxu0 0.0
        %3185 = vmatpush.msra.mxu0 %v3142
        %3186 = vmatpush.msra.mxu0 %v3140
        %3187 = vmatpush.msra.mxu0 %v3138
        %3188 = vmatpush.msra.mxu0 %v3136
        %3189 = vmatpush.msra.mxu0 %v3134
        %3190 = vmatpush.msra.mxu0 %v3132
        %3191 = vmatpush.msra.mxu0 %v3130
        %3192 = vmatpush.msra.mxu0 %v3128
        %3193 = vmatpush.msra.mxu0 %v3126
        %3194 = vmatpush.msra.mxu0 %v3124
        %3195 = vmatpush.msra.mxu0 %v3122
        %3196 = vmatpush.msra.mxu0 %v3120
        %3197 = vmatpush.msra.mxu0 %v3118
        %3198 = vmatpush.msra.mxu0 %v3116
        %3199 = vmatmul.f32.gmra.mxu0 %v3156
        %v3200 = vpop.f32.mrf.mxu0
        %v3201 = vadd.f32 %v3178, %v3200
        %3202 = vmatmul.f32.gmra.mxu0 %v3158
        %v3203 = vpop.f32.mrf.mxu0
        %v3204 = vadd.f32 %v3181, %v3203
        %3205 = vdwg.mxu0
        %3206 = vmatpush.msra.mxu0 %v3115
        %3207 = vmatpush.msra.mxu0 %v3113
        %3208 = vmatpush.msra.mxu0 %v3111
        %3209 = vmatpush.msra.mxu0 %v3109
        %3210 = vmatpush.msra.mxu0 %v3107
        %3211 = vmatpush.msra.mxu0 %v3105
        %3212 = vmatpush.msra.mxu0 %v3103
        %3213 = vmatpush.msra.mxu0 %v3101
        %3214 = vmatpush.msra.mxu0 %v3099
        %3215 = vmatpush.msra.mxu0 %v3097
        %3216 = vmatpush.msra.mxu0 %v3095
        %3217 = vmatpush.msra.mxu0 %v3093
        %3218 = vmatpush.msra.mxu0 %v3091
        %3219 = vmatpush.msra.mxu0 %v3089
        %3220 = vmatpush.msra.mxu0 %v3087
        %3221 = vmatpush.msra.mxu0 %v3085
        %3222 = vmatmul.f32.gmra.mxu0 %v3150
        %v3223 = vpop.f32.mrf.mxu0
        %v3224 = vadd.f32 0.0, %v3223
        %3225 = vmatmul.f32.gmra.mxu0 %v3149
        %v3226 = vpop.f32.mrf.mxu0
        %v3227 = vadd.f32 0.0, %v3226
        %3228 = vdwg.mxu0
        %3229 = vmatpush.msra.mxu0 0.0
        %3230 = vmatpush.msra.mxu0 0.0
        %3231 = vmatpush.msra.mxu0 %v3143
        %3232 = vmatpush.msra.mxu0 %v3141
        %3233 = vmatpush.msra.mxu0 %v3139
        %3234 = vmatpush.msra.mxu0 %v3137
        %3235 = vmatpush.msra.mxu0 %v3135
        %3236 = vmatpush.msra.mxu0 %v3133
        %3237 = vmatpush.msra.mxu0 %v3131
        %3238 = vmatpush.msra.mxu0 %v3129
        %3239 = vmatpush.msra.mxu0 %v3127
        %3240 = vmatpush.msra.mxu0 %v3125
        %3241 = vmatpush.msra.mxu0 %v3123
        %3242 = vmatpush.msra.mxu0 %v3121
        %3243 = vmatpush.msra.mxu0 %v3119
        %3244 = vmatpush.msra.mxu0 %v3117
        %3245 = vmatmul.f32.gmra.mxu0 %v3156
        %v3246 = vpop.f32.mrf.mxu0
        %v3247 = vadd.f32 %v3224, %v3246
        %3248 = vmatmul.f32.gmra.mxu0 %v3158
        %v3249 = vpop.f32.mrf.mxu0
        %v3250 = vadd.f32 %v3227, %v3249
        %3251 = vdwg.mxu0
        %v3252 = vadd.f32 %v2998, %v3201
        %v3253 = vadd.f32 %v3044, %v3247
        %v3254 = vadd.f32 %v3001, %v3204
        %v3255 = vadd.f32 %v3047, %v3250
        %v3256 = vld [vmem:[%s8] sm:$0x3]
        %v3258 = vperm.slane %v3256, 0
        %v3259 = vperm.slane %v3256, 1
        %v3262 = vadd.f32 %v3252, %v3258
        %v3263 = vadd.f32 %v3253, %v3259
        %v3264 = vadd.f32 %v3254, %v3258
        %v3265 = vadd.f32 %v3255, %v3259
        %v3266 = vmax.f32 %v3262, 0.0
        %v3267 = vmax.f32 %v3263, 0.0
        %v3268 = vmax.f32 %v3264, 0.0
        %v3269 = vmax.f32 %v3265, 0.0
        %3270 = vst [vmem:[#allocation8] sm:$0xff] %v3266
        %vm3271 = vcmask 654336
        %3272 = vst.msk [vmem:[#allocation8 + $0x8] sm:$0xff] %vm3271, %v3267
        %3273 = vst [vmem:[#allocation8 + $0x10] sm:$0x1f] %v3268
        %vm3274 = vcmask 651264
        %3275 = vst.msk [vmem:[#allocation8 + $0x18] sm:$0x1f] %vm3274, %v3269
        %v3276 = vld [vmem:[#allocation8] ss:$8 sm:$0x3]
        %s3277 = scalar_lea.vmem [#allocation8], 1
        %v3278 = vld [vmem:[%s3277] ss:$8 sm:$0x3]
        %v3279 = vmax.f32 %v3276, %v3278
        %vm3280 = vcmp.lt.s32.totalorder %v1862, 208
        %vm3281 = vmand %vm1863, %vm3280
        %3282 = vst.msk [vmem:[#allocation9] ss:$8 sm:$0x3] %vm3281, %v3279
        %3283 = vst.msk [vmem:[#allocation9] ss:$8 sm:$0x0] %vm3281, %v3279
        %s3284 = scalar_lea.vmem [#allocation8], 2
        %v3285 = vld [vmem:[%s3284] ss:$8 sm:$0x3]
        %s3286 = scalar_lea.vmem [#allocation8], 3
        %v3287 = vld [vmem:[%s3286] ss:$8 sm:$0x3]
        %v3288 = vmax.f32 %v3285, %v3287
        %s3289 = scalar_lea.vmem [#allocation9], 1
        %3290 = vst.msk [vmem:[%s3289] ss:$8 sm:$0x3] %vm3281, %v3288
        %3291 = vst.msk [vmem:[%s3289] ss:$8 sm:$0x0] %vm3281, %v3288
        %s3292 = scalar_lea.vmem [#allocation8], 4
        %v3293 = vld [vmem:[%s3292] ss:$8 sm:$0x3]
        %s3294 = scalar_lea.vmem [#allocation8], 5
        %v3295 = vld [vmem:[%s3294] ss:$8 sm:$0x3]
        %v3296 = vmax.f32 %v3293, %v3295
        %s3297 = scalar_lea.vmem [#allocation9], 2
        %3298 = vst.msk [vmem:[%s3297] ss:$8 sm:$0x3] %vm3281, %v3296
        %3299 = vst.msk [vmem:[%s3297] ss:$8 sm:$0x0] %vm3281, %v3296
        %s3300 = scalar_lea.vmem [#allocation8], 6
        %v3301 = vld [vmem:[%s3300] ss:$8 sm:$0x3]
        %s3302 = scalar_lea.vmem [#allocation8], 7
        %v3303 = vld [vmem:[%s3302] ss:$8 sm:$0x3]
        %v3304 = vmax.f32 %v3301, %v3303
        %s3305 = scalar_lea.vmem [#allocation9], 3
        %3306 = vst.msk [vmem:[%s3305] ss:$8 sm:$0x3] %vm3281, %v3304
        %3307 = vst.msk [vmem:[%s3305] ss:$8 sm:$0x0] %vm3281, %v3304
        %s3308 = scalar_lea.vmem [#allocation8], 16
        %v3309 = vld [vmem:[%s3308] ss:$8 sm:$0x3]
        %s3310 = scalar_lea.vmem [#allocation8], 17
        %v3311 = vld [vmem:[%s3310] ss:$8 sm:$0x3]
        %v3312 = vmax.f32 %v3309, %v3311
        %s3313 = scalar_lea.vmem [#allocation9], 4
        %3314 = vst.msk [vmem:[%s3313] ss:$8 sm:$0x3] %vm3281, %v3312
        %3315 = vst.msk [vmem:[%s3313] ss:$8 sm:$0x0] %vm3281, %v3312
        %s3316 = scalar_lea.vmem [#allocation8], 18
        %v3317 = vld [vmem:[%s3316] ss:$8 sm:$0x3]
        %s3318 = scalar_lea.vmem [#allocation8], 19
        %v3319 = vld [vmem:[%s3318] ss:$8 sm:$0x3]
        %v3320 = vmax.f32 %v3317, %v3319
        %s3321 = scalar_lea.vmem [#allocation9], 5
        %3322 = vst.msk [vmem:[%s3321] ss:$8 sm:$0x3] %vm3281, %v3320
        %3323 = vst.msk [vmem:[%s3321] ss:$8 sm:$0x0] %vm3281, %v3320
        %v3324 = vld [vmem:[#allocation9] sm:$0x3f]
        %3326 = vrot.lane.b32.xlu0 %v3324, 112
        %v3327 = vpop.permute.xlu0 %3326
        %v3329 = vmax.f32 %v3324, %v3327
        %vm3330 = vcmask 128000
        %3331 = vst.msk [vmem:[#allocation10] sm:$0x3f] %vm3330, %v3329
        %v3332 = vld [vmem:[#allocation9] sm:$0x3f]
        %3334 = vrot.lane.b32.xlu0 %v3332, 112
        %v3335 = vpop.permute.xlu0 %3334
        %v3337 = vmax.f32 %v3332, %v3335
        %3339 = vrot.lane.b32.xlu0 %v3337, 112
        %v3340 = vpop.permute.xlu0 %3339
        %vm3342 = vcmask 259200
        %3343 = vst.msk [vmem:[#allocation10] sm:$0x3f] %vm3342, %v3340
        %v3344 = vld [vmem:[#allocation9] sm:$0x3f]
        %3346 = vrot.lane.b32.xlu0 %v3344, 112
        %v3347 = vpop.permute.xlu0 %3346
        %v3349 = vmax.f32 %v3344, %v3347
        %3351 = vrot.lane.b32.xlu0 %v3349, 96
        %v3352 = vpop.permute.xlu0 %3351
        %vm3354 = vcmask 390400
        %3355 = vst.msk [vmem:[#allocation10] sm:$0x3f] %vm3354, %v3352
        %v3356 = vld [vmem:[#allocation9] sm:$0x3f]
        %3358 = vrot.lane.b32.xlu0 %v3356, 112
        %v3359 = vpop.permute.xlu0 %3358
        %v3361 = vmax.f32 %v3356, %v3359
        %3363 = vrot.lane.b32.xlu0 %v3361, 80
        %v3364 = vpop.permute.xlu0 %3363
        %vm3366 = vcmask 521600
        %3367 = vst.msk [vmem:[#allocation10] sm:$0x3f] %vm3366, %v3364
        %v3368 = vld [vmem:[#allocation9 + $0x8] sm:$0x3f]
        %3370 = vrot.lane.b32.xlu0 %v3368, 112
        %v3371 = vpop.permute.xlu0 %3370
        %v3373 = vmax.f32 %v3368, %v3371
        %3375 = vrot.lane.b32.xlu0 %v3373, 64
        %v3376 = vpop.permute.xlu0 %3375
        %vm3378 = vcmask 652800
        %3379 = vst.msk [vmem:[#allocation10] sm:$0x3f] %vm3378, %v3376
        %v3380 = vld [vmem:[#allocation9 + $0x8] sm:$0x3f]
        %3382 = vrot.lane.b32.xlu0 %v3380, 112
        %v3383 = vpop.permute.xlu0 %3382
        %v3385 = vmax.f32 %v3380, %v3383
        %3387 = vrot.lane.b32.xlu0 %v3385, 48
        %v3388 = vpop.permute.xlu0 %3387
        %vm3390 = vcmask 784000
        %3391 = vst.msk [vmem:[#allocation10] sm:$0x3f] %vm3390, %v3388
        %s3392 = smul.u32 4, 72
        %s3393 = smul.u32 %s3392, 4
        %s3394 = sshll.u32 %s3393, 4
        %3395 = dma.done [#allocation12], %s3394
        %v3396 = vld [vmem:[%s10] sm:$0xf]
        %v3397 = vld [vmem:[#allocation10] sm:$0x1]
        %v3398 = vld [vmem:[#allocation11] sm:$0xff]
        %v3399 = vld [vmem:[#allocation11 + $0x8] sm:$0xff]
        %v3400 = vld [vmem:[#allocation11 + $0x10] sm:$0xff]
        %v3401 = vld [vmem:[#allocation11 + $0x18] sm:$0xff]
        %v3402 = vld [vmem:[#allocation11 + $0x20] sm:$0xff]
        %v3403 = vld [vmem:[#allocation11 + $0x28] sm:$0xff]
        %v3404 = vld [vmem:[#allocation11 + $0x30] sm:$0xff]
        %v3405 = vld [vmem:[#allocation11 + $0x38] sm:$0xff]
        %v3406 = vld [vmem:[#allocation11 + $0x40] sm:$0xff]
        %v3407 = vld [vmem:[#allocation11 + $0x48] sm:$0xff]
        %v3408 = vld [vmem:[#allocation11 + $0x50] sm:$0xff]
        %v3409 = vld [vmem:[#allocation11 + $0x58] sm:$0xff]
        %v3410 = vld [vmem:[#allocation11 + $0x60] sm:$0xff]
        %v3411 = vld [vmem:[#allocation11 + $0x68] sm:$0xff]
        %v3412 = vld [vmem:[#allocation11 + $0x70] sm:$0xff]
        %v3413 = vld [vmem:[#allocation11 + $0x78] sm:$0xff]
        %v3414 = vld [vmem:[#allocation11 + $0x80] sm:$0xff]
        %v3415 = vld [vmem:[#allocation11 + $0x88] sm:$0xff]
        %v3416 = vld [vmem:[#allocation11 + $0x90] sm:$0xff]
        %v3417 = vld [vmem:[#allocation11 + $0x98] sm:$0xff]
        %v3418 = vld [vmem:[#allocation11 + $0xa0] sm:$0xff]
        %v3419 = vld [vmem:[#allocation11 + $0xa8] sm:$0xff]
        %v3420 = vld [vmem:[#allocation11 + $0xb0] sm:$0xff]
        %v3421 = vld [vmem:[#allocation11 + $0xb8] sm:$0xff]
        %v3422 = vunpack.c.l.bf16 %v3398
        %v3423 = vunpack.c.h.bf16 %v3398
        %v3424 = vunpack.c.l.bf16 %v3399
        %v3425 = vunpack.c.h.bf16 %v3399
        %v3426 = vunpack.c.l.bf16 %v3400
        %v3427 = vunpack.c.h.bf16 %v3400
        %v3428 = vunpack.c.l.bf16 %v3401
        %v3429 = vunpack.c.h.bf16 %v3401
        %v3430 = vunpack.c.l.bf16 %v3402
        %v3431 = vunpack.c.h.bf16 %v3402
        %v3432 = vunpack.c.l.bf16 %v3403
        %v3433 = vunpack.c.h.bf16 %v3403
        %v3434 = vunpack.c.l.bf16 %v3404
        %v3435 = vunpack.c.h.bf16 %v3404
        %v3436 = vunpack.c.l.bf16 %v3405
        %v3437 = vunpack.c.h.bf16 %v3405
        %v3438 = vunpack.c.l.bf16 %v3406
        %v3439 = vunpack.c.h.bf16 %v3406
        %v3440 = vunpack.c.l.bf16 %v3407
        %v3441 = vunpack.c.h.bf16 %v3407
        %v3442 = vunpack.c.l.bf16 %v3408
        %v3443 = vunpack.c.h.bf16 %v3408
        %v3444 = vunpack.c.l.bf16 %v3409
        %v3445 = vunpack.c.h.bf16 %v3409
        %v3446 = vunpack.c.l.bf16 %v3410
        %v3447 = vunpack.c.h.bf16 %v3410
        %v3448 = vunpack.c.l.bf16 %v3411
        %v3449 = vunpack.c.h.bf16 %v3411
        %v3450 = vunpack.c.l.bf16 %v3412
        %v3451 = vunpack.c.h.bf16 %v3412
        %v3452 = vunpack.c.l.bf16 %v3413
        %v3453 = vunpack.c.h.bf16 %v3413
        %v3454 = vunpack.c.l.bf16 %v3414
        %v3455 = vunpack.c.h.bf16 %v3414
        %v3456 = vunpack.c.l.bf16 %v3415
        %v3457 = vunpack.c.h.bf16 %v3415
        %v3458 = vunpack.c.l.bf16 %v3416
        %v3459 = vunpack.c.h.bf16 %v3416
        %v3460 = vunpack.c.l.bf16 %v3417
        %v3461 = vunpack.c.h.bf16 %v3417
        %v3462 = vunpack.c.l.bf16 %v3418
        %v3463 = vunpack.c.h.bf16 %v3418
        %v3464 = vunpack.c.l.bf16 %v3419
        %v3465 = vunpack.c.h.bf16 %v3419
        %v3466 = vunpack.c.l.bf16 %v3420
        %v3467 = vunpack.c.h.bf16 %v3420
        %v3468 = vunpack.c.l.bf16 %v3421
        %v3469 = vunpack.c.h.bf16 %v3421
        %v3471 = vsel %vm716, %v3397, 0
        %3473 = vmatpush.msra.mxu0 0.0
        %3474 = vmatpush.msra.mxu0 0.0
        %3475 = vmatpush.msra.mxu0 0.0
        %3476 = vmatpush.msra.mxu0 0.0
        %3477 = vmatpush.msra.mxu0 %v3466
        %3478 = vmatpush.msra.mxu0 %v3462
        %3479 = vmatpush.msra.mxu0 %v3458
        %3480 = vmatpush.msra.mxu0 %v3454
        %3481 = vmatpush.msra.mxu0 %v3450
        %3482 = vmatpush.msra.mxu0 %v3446
        %3483 = vmatpush.msra.mxu0 %v3442
        %3484 = vmatpush.msra.mxu0 %v3438
        %3485 = vmatpush.msra.mxu0 %v3434
        %3486 = vmatpush.msra.mxu0 %v3430
        %3487 = vmatpush.msra.mxu0 %v3426
        %3488 = vmatpush.msra.mxu0 %v3422
        %3489 = vmatmul.f32.gmra.mxu0 %v3471
        %v3490 = vpop.f32.mrf.mxu0
        %v3491 = vadd.f32 0.0, %v3490
        %3492 = vdwg.mxu0
        %3493 = vmatpush.msra.mxu0 0.0
        %3494 = vmatpush.msra.mxu0 0.0
        %3495 = vmatpush.msra.mxu0 0.0
        %3496 = vmatpush.msra.mxu0 0.0
        %3497 = vmatpush.msra.mxu0 %v3467
        %3498 = vmatpush.msra.mxu0 %v3463
        %3499 = vmatpush.msra.mxu0 %v3459
        %3500 = vmatpush.msra.mxu0 %v3455
        %3501 = vmatpush.msra.mxu0 %v3451
        %3502 = vmatpush.msra.mxu0 %v3447
        %3503 = vmatpush.msra.mxu0 %v3443
        %3504 = vmatpush.msra.mxu0 %v3439
        %3505 = vmatpush.msra.mxu0 %v3435
        %3506 = vmatpush.msra.mxu0 %v3431
        %3507 = vmatpush.msra.mxu0 %v3427
        %3508 = vmatpush.msra.mxu0 %v3423
        %3509 = vmatmul.f32.gmra.mxu0 %v3471
        %v3510 = vpop.f32.mrf.mxu0
        %v3511 = vadd.f32 0.0, %v3510
        %3512 = vdwg.mxu0
        %3513 = vmatpush.msra.mxu0 0.0
        %3514 = vmatpush.msra.mxu0 0.0
        %3515 = vmatpush.msra.mxu0 0.0
        %3516 = vmatpush.msra.mxu0 0.0
        %3517 = vmatpush.msra.mxu0 %v3468
        %3518 = vmatpush.msra.mxu0 %v3464
        %3519 = vmatpush.msra.mxu0 %v3460
        %3520 = vmatpush.msra.mxu0 %v3456
        %3521 = vmatpush.msra.mxu0 %v3452
        %3522 = vmatpush.msra.mxu0 %v3448
        %3523 = vmatpush.msra.mxu0 %v3444
        %3524 = vmatpush.msra.mxu0 %v3440
        %3525 = vmatpush.msra.mxu0 %v3436
        %3526 = vmatpush.msra.mxu0 %v3432
        %3527 = vmatpush.msra.mxu0 %v3428
        %3528 = vmatpush.msra.mxu0 %v3424
        %3529 = vmatmul.f32.gmra.mxu0 %v3471
        %v3530 = vpop.f32.mrf.mxu0
        %v3531 = vadd.f32 0.0, %v3530
        %3532 = vdwg.mxu0
        %3533 = vmatpush.msra.mxu0 0.0
        %3534 = vmatpush.msra.mxu0 0.0
        %3535 = vmatpush.msra.mxu0 0.0
        %3536 = vmatpush.msra.mxu0 0.0
        %3537 = vmatpush.msra.mxu0 %v3469
        %3538 = vmatpush.msra.mxu0 %v3465
        %3539 = vmatpush.msra.mxu0 %v3461
        %3540 = vmatpush.msra.mxu0 %v3457
        %3541 = vmatpush.msra.mxu0 %v3453
        %3542 = vmatpush.msra.mxu0 %v3449
        %3543 = vmatpush.msra.mxu0 %v3445
        %3544 = vmatpush.msra.mxu0 %v3441
        %3545 = vmatpush.msra.mxu0 %v3437
        %3546 = vmatpush.msra.mxu0 %v3433
        %3547 = vmatpush.msra.mxu0 %v3429
        %3548 = vmatpush.msra.mxu0 %v3425
        %3549 = vmatmul.f32.gmra.mxu0 %v3471
        %v3550 = vpop.f32.mrf.mxu0
        %v3551 = vadd.f32 0.0, %v3550
        %3552 = vdwg.mxu0
        %v3557 = vrot.slane %v3511, 7
        %v3558 = vrot.slane %v3531, 6
        %v3559 = vrot.slane %v3551, 5
        %vm3560 = vcmask 1040384
        %v3561 = vsel %vm3560, %v3491, %v3557
        %vm3562 = vcmask 1042434
        %v3563 = vsel %vm3562, %v3558, %v3559
        %vm3564 = vcmask 1041408
        %v3565 = vsel %vm3564, %v3561, %v3563
        %v3567 = vadd.f32 %v3396, %v3565
        %v3568 = vld [vmem:[#allocation10 + $0x1] sm:$0x1]
        %v3569 = vld [vmem:[#allocation11 + $0xc0] sm:$0xff]
        %v3570 = vld [vmem:[#allocation11 + $0xc8] sm:$0xff]
        %v3571 = vld [vmem:[#allocation11 + $0xd0] sm:$0xff]
        %v3572 = vld [vmem:[#allocation11 + $0xd8] sm:$0xff]
        %v3573 = vld [vmem:[#allocation11 + $0xe0] sm:$0xff]
        %v3574 = vld [vmem:[#allocation11 + $0xe8] sm:$0xff]
        %v3575 = vld [vmem:[#allocation11 + $0xf0] sm:$0xff]
        %v3576 = vld [vmem:[#allocation11 + $0xf8] sm:$0xff]
        %v3577 = vld [vmem:[#allocation11 + $0x100] sm:$0xff]
        %v3578 = vld [vmem:[#allocation11 + $0x108] sm:$0xff]
        %v3579 = vld [vmem:[#allocation11 + $0x110] sm:$0xff]
        %v3580 = vld [vmem:[#allocation11 + $0x118] sm:$0xff]
        %v3581 = vld [vmem:[#allocation11 + $0x120] sm:$0xff]
        %v3582 = vld [vmem:[#allocation11 + $0x128] sm:$0xff]
        %v3583 = vld [vmem:[#allocation11 + $0x130] sm:$0xff]
        %v3584 = vld [vmem:[#allocation11 + $0x138] sm:$0xff]
        %v3585 = vld [vmem:[#allocation11 + $0x140] sm:$0xff]
        %v3586 = vld [vmem:[#allocation11 + $0x148] sm:$0xff]
        %v3587 = vld [vmem:[#allocation11 + $0x150] sm:$0xff]
        %v3588 = vld [vmem:[#allocation11 + $0x158] sm:$0xff]
        %v3589 = vld [vmem:[#allocation11 + $0x160] sm:$0xff]
        %v3590 = vld [vmem:[#allocation11 + $0x168] sm:$0xff]
        %v3591 = vld [vmem:[#allocation11 + $0x170] sm:$0xff]
        %v3592 = vld [vmem:[#allocation11 + $0x178] sm:$0xff]
        %v3593 = vunpack.c.l.bf16 %v3569
        %v3594 = vunpack.c.h.bf16 %v3569
        %v3595 = vunpack.c.l.bf16 %v3570
        %v3596 = vunpack.c.h.bf16 %v3570
        %v3597 = vunpack.c.l.bf16 %v3571
        %v3598 = vunpack.c.h.bf16 %v3571
        %v3599 = vunpack.c.l.bf16 %v3572
        %v3600 = vunpack.c.h.bf16 %v3572
        %v3601 = vunpack.c.l.bf16 %v3573
        %v3602 = vunpack.c.h.bf16 %v3573
        %v3603 = vunpack.c.l.bf16 %v3574
        %v3604 = vunpack.c.h.bf16 %v3574
        %v3605 = vunpack.c.l.bf16 %v3575
        %v3606 = vunpack.c.h.bf16 %v3575
        %v3607 = vunpack.c.l.bf16 %v3576
        %v3608 = vunpack.c.h.bf16 %v3576
        %v3609 = vunpack.c.l.bf16 %v3577
        %v3610 = vunpack.c.h.bf16 %v3577
        %v3611 = vunpack.c.l.bf16 %v3578
        %v3612 = vunpack.c.h.bf16 %v3578
        %v3613 = vunpack.c.l.bf16 %v3579
        %v3614 = vunpack.c.h.bf16 %v3579
        %v3615 = vunpack.c.l.bf16 %v3580
        %v3616 = vunpack.c.h.bf16 %v3580
        %v3617 = vunpack.c.l.bf16 %v3581
        %v3618 = vunpack.c.h.bf16 %v3581
        %v3619 = vunpack.c.l.bf16 %v3582
        %v3620 = vunpack.c.h.bf16 %v3582
        %v3621 = vunpack.c.l.bf16 %v3583
        %v3622 = vunpack.c.h.bf16 %v3583
        %v3623 = vunpack.c.l.bf16 %v3584
        %v3624 = vunpack.c.h.bf16 %v3584
        %v3625 = vunpack.c.l.bf16 %v3585
        %v3626 = vunpack.c.h.bf16 %v3585
        %v3627 = vunpack.c.l.bf16 %v3586
        %v3628 = vunpack.c.h.bf16 %v3586
        %v3629 = vunpack.c.l.bf16 %v3587
        %v3630 = vunpack.c.h.bf16 %v3587
        %v3631 = vunpack.c.l.bf16 %v3588
        %v3632 = vunpack.c.h.bf16 %v3588
        %v3633 = vunpack.c.l.bf16 %v3589
        %v3634 = vunpack.c.h.bf16 %v3589
        %v3635 = vunpack.c.l.bf16 %v3590
        %v3636 = vunpack.c.h.bf16 %v3590
        %v3637 = vunpack.c.l.bf16 %v3591
        %v3638 = vunpack.c.h.bf16 %v3591
        %v3639 = vunpack.c.l.bf16 %v3592
        %v3640 = vunpack.c.h.bf16 %v3592
        %v3642 = vsel %vm716, %v3568, 0
        %3644 = vmatpush.msra.mxu0 0.0
        %3645 = vmatpush.msra.mxu0 0.0
        %3646 = vmatpush.msra.mxu0 0.0
        %3647 = vmatpush.msra.mxu0 0.0
        %3648 = vmatpush.msra.mxu0 %v3637
        %3649 = vmatpush.msra.mxu0 %v3633
        %3650 = vmatpush.msra.mxu0 %v3629
        %3651 = vmatpush.msra.mxu0 %v3625
        %3652 = vmatpush.msra.mxu0 %v3621
        %3653 = vmatpush.msra.mxu0 %v3617
        %3654 = vmatpush.msra.mxu0 %v3613
        %3655 = vmatpush.msra.mxu0 %v3609
        %3656 = vmatpush.msra.mxu0 %v3605
        %3657 = vmatpush.msra.mxu0 %v3601
        %3658 = vmatpush.msra.mxu0 %v3597
        %3659 = vmatpush.msra.mxu0 %v3593
        %3660 = vmatmul.f32.gmra.mxu0 %v3642
        %v3661 = vpop.f32.mrf.mxu0
        %v3662 = vadd.f32 0.0, %v3661
        %3663 = vdwg.mxu0
        %3664 = vmatpush.msra.mxu0 0.0
        %3665 = vmatpush.msra.mxu0 0.0
        %3666 = vmatpush.msra.mxu0 0.0
        %3667 = vmatpush.msra.mxu0 0.0
        %3668 = vmatpush.msra.mxu0 %v3638
        %3669 = vmatpush.msra.mxu0 %v3634
        %3670 = vmatpush.msra.mxu0 %v3630
        %3671 = vmatpush.msra.mxu0 %v3626
        %3672 = vmatpush.msra.mxu0 %v3622
        %3673 = vmatpush.msra.mxu0 %v3618
        %3674 = vmatpush.msra.mxu0 %v3614
        %3675 = vmatpush.msra.mxu0 %v3610
        %3676 = vmatpush.msra.mxu0 %v3606
        %3677 = vmatpush.msra.mxu0 %v3602
        %3678 = vmatpush.msra.mxu0 %v3598
        %3679 = vmatpush.msra.mxu0 %v3594
        %3680 = vmatmul.f32.gmra.mxu0 %v3642
        %v3681 = vpop.f32.mrf.mxu0
        %v3682 = vadd.f32 0.0, %v3681
        %3683 = vdwg.mxu0
        %3684 = vmatpush.msra.mxu0 0.0
        %3685 = vmatpush.msra.mxu0 0.0
        %3686 = vmatpush.msra.mxu0 0.0
        %3687 = vmatpush.msra.mxu0 0.0
        %3688 = vmatpush.msra.mxu0 %v3639
        %3689 = vmatpush.msra.mxu0 %v3635
        %3690 = vmatpush.msra.mxu0 %v3631
        %3691 = vmatpush.msra.mxu0 %v3627
        %3692 = vmatpush.msra.mxu0 %v3623
        %3693 = vmatpush.msra.mxu0 %v3619
        %3694 = vmatpush.msra.mxu0 %v3615
        %3695 = vmatpush.msra.mxu0 %v3611
        %3696 = vmatpush.msra.mxu0 %v3607
        %3697 = vmatpush.msra.mxu0 %v3603
        %3698 = vmatpush.msra.mxu0 %v3599
        %3699 = vmatpush.msra.mxu0 %v3595
        %3700 = vmatmul.f32.gmra.mxu0 %v3642
        %v3701 = vpop.f32.mrf.mxu0
        %v3702 = vadd.f32 0.0, %v3701
        %3703 = vdwg.mxu0
        %3704 = vmatpush.msra.mxu0 0.0
        %3705 = vmatpush.msra.mxu0 0.0
        %3706 = vmatpush.msra.mxu0 0.0
        %3707 = vmatpush.msra.mxu0 0.0
        %3708 = vmatpush.msra.mxu0 %v3640
        %3709 = vmatpush.msra.mxu0 %v3636
        %3710 = vmatpush.msra.mxu0 %v3632
        %3711 = vmatpush.msra.mxu0 %v3628
        %3712 = vmatpush.msra.mxu0 %v3624
        %3713 = vmatpush.msra.mxu0 %v3620
        %3714 = vmatpush.msra.mxu0 %v3616
        %3715 = vmatpush.msra.mxu0 %v3612
        %3716 = vmatpush.msra.mxu0 %v3608
        %3717 = vmatpush.msra.mxu0 %v3604
        %3718 = vmatpush.msra.mxu0 %v3600
        %3719 = vmatpush.msra.mxu0 %v3596
        %3720 = vmatmul.f32.gmra.mxu0 %v3642
        %v3721 = vpop.f32.mrf.mxu0
        %v3722 = vadd.f32 0.0, %v3721
        %3723 = vdwg.mxu0
        %v3728 = vrot.slane %v3682, 7
        %v3729 = vrot.slane %v3702, 6
        %v3730 = vrot.slane %v3722, 5
        %v3731 = vsel %vm3560, %v3662, %v3728
        %v3732 = vsel %vm3562, %v3729, %v3730
        %v3733 = vsel %vm3564, %v3731, %v3732
        %v3735 = vadd.f32 %v3567, %v3733
        %v3736 = vld [vmem:[#allocation10 + $0x2] sm:$0x1]
        %v3737 = vld [vmem:[#allocation11 + $0x180] sm:$0xff]
        %v3738 = vld [vmem:[#allocation11 + $0x188] sm:$0xff]
        %v3739 = vld [vmem:[#allocation11 + $0x190] sm:$0xff]
        %v3740 = vld [vmem:[#allocation11 + $0x198] sm:$0xff]
        %v3741 = vld [vmem:[#allocation11 + $0x1a0] sm:$0xff]
        %v3742 = vld [vmem:[#allocation11 + $0x1a8] sm:$0xff]
        %v3743 = vld [vmem:[#allocation11 + $0x1b0] sm:$0xff]
        %v3744 = vld [vmem:[#allocation11 + $0x1b8] sm:$0xff]
        %v3745 = vld [vmem:[#allocation11 + $0x1c0] sm:$0xff]
        %v3746 = vld [vmem:[#allocation11 + $0x1c8] sm:$0xff]
        %v3747 = vld [vmem:[#allocation11 + $0x1d0] sm:$0xff]
        %v3748 = vld [vmem:[#allocation11 + $0x1d8] sm:$0xff]
        %v3749 = vld [vmem:[#allocation11 + $0x1e0] sm:$0xff]
        %v3750 = vld [vmem:[#allocation11 + $0x1e8] sm:$0xff]
        %v3751 = vld [vmem:[#allocation11 + $0x1f0] sm:$0xff]
        %v3752 = vld [vmem:[#allocation11 + $0x1f8] sm:$0xff]
        %v3753 = vld [vmem:[#allocation11 + $0x200] sm:$0xff]
        %v3754 = vld [vmem:[#allocation11 + $0x208] sm:$0xff]
        %v3755 = vld [vmem:[#allocation11 + $0x210] sm:$0xff]
        %v3756 = vld [vmem:[#allocation11 + $0x218] sm:$0xff]
        %v3757 = vld [vmem:[#allocation11 + $0x220] sm:$0xff]
        %v3758 = vld [vmem:[#allocation11 + $0x228] sm:$0xff]
        %v3759 = vld [vmem:[#allocation11 + $0x230] sm:$0xff]
        %v3760 = vld [vmem:[#allocation11 + $0x238] sm:$0xff]
        %v3761 = vunpack.c.l.bf16 %v3737
        %v3762 = vunpack.c.h.bf16 %v3737
        %v3763 = vunpack.c.l.bf16 %v3738
        %v3764 = vunpack.c.h.bf16 %v3738
        %v3765 = vunpack.c.l.bf16 %v3739
        %v3766 = vunpack.c.h.bf16 %v3739
        %v3767 = vunpack.c.l.bf16 %v3740
        %v3768 = vunpack.c.h.bf16 %v3740
        %v3769 = vunpack.c.l.bf16 %v3741
        %v3770 = vunpack.c.h.bf16 %v3741
        %v3771 = vunpack.c.l.bf16 %v3742
        %v3772 = vunpack.c.h.bf16 %v3742
        %v3773 = vunpack.c.l.bf16 %v3743
        %v3774 = vunpack.c.h.bf16 %v3743
        %v3775 = vunpack.c.l.bf16 %v3744
        %v3776 = vunpack.c.h.bf16 %v3744
        %v3777 = vunpack.c.l.bf16 %v3745
        %v3778 = vunpack.c.h.bf16 %v3745
        %v3779 = vunpack.c.l.bf16 %v3746
        %v3780 = vunpack.c.h.bf16 %v3746
        %v3781 = vunpack.c.l.bf16 %v3747
        %v3782 = vunpack.c.h.bf16 %v3747
        %v3783 = vunpack.c.l.bf16 %v3748
        %v3784 = vunpack.c.h.bf16 %v3748
        %v3785 = vunpack.c.l.bf16 %v3749
        %v3786 = vunpack.c.h.bf16 %v3749
        %v3787 = vunpack.c.l.bf16 %v3750
        %v3788 = vunpack.c.h.bf16 %v3750
        %v3789 = vunpack.c.l.bf16 %v3751
        %v3790 = vunpack.c.h.bf16 %v3751
        %v3791 = vunpack.c.l.bf16 %v3752
        %v3792 = vunpack.c.h.bf16 %v3752
        %v3793 = vunpack.c.l.bf16 %v3753
        %v3794 = vunpack.c.h.bf16 %v3753
        %v3795 = vunpack.c.l.bf16 %v3754
        %v3796 = vunpack.c.h.bf16 %v3754
        %v3797 = vunpack.c.l.bf16 %v3755
        %v3798 = vunpack.c.h.bf16 %v3755
        %v3799 = vunpack.c.l.bf16 %v3756
        %v3800 = vunpack.c.h.bf16 %v3756
        %v3801 = vunpack.c.l.bf16 %v3757
        %v3802 = vunpack.c.h.bf16 %v3757
        %v3803 = vunpack.c.l.bf16 %v3758
        %v3804 = vunpack.c.h.bf16 %v3758
        %v3805 = vunpack.c.l.bf16 %v3759
        %v3806 = vunpack.c.h.bf16 %v3759
        %v3807 = vunpack.c.l.bf16 %v3760
        %v3808 = vunpack.c.h.bf16 %v3760
        %v3810 = vsel %vm716, %v3736, 0
        %3812 = vmatpush.msra.mxu0 0.0
        %3813 = vmatpush.msra.mxu0 0.0
        %3814 = vmatpush.msra.mxu0 0.0
        %3815 = vmatpush.msra.mxu0 0.0
        %3816 = vmatpush.msra.mxu0 %v3805
        %3817 = vmatpush.msra.mxu0 %v3801
        %3818 = vmatpush.msra.mxu0 %v3797
        %3819 = vmatpush.msra.mxu0 %v3793
        %3820 = vmatpush.msra.mxu0 %v3789
        %3821 = vmatpush.msra.mxu0 %v3785
        %3822 = vmatpush.msra.mxu0 %v3781
        %3823 = vmatpush.msra.mxu0 %v3777
        %3824 = vmatpush.msra.mxu0 %v3773
        %3825 = vmatpush.msra.mxu0 %v3769
        %3826 = vmatpush.msra.mxu0 %v3765
        %3827 = vmatpush.msra.mxu0 %v3761
        %3828 = vmatmul.f32.gmra.mxu0 %v3810
        %v3829 = vpop.f32.mrf.mxu0
        %v3830 = vadd.f32 0.0, %v3829
        %3831 = vdwg.mxu0
        %3832 = vmatpush.msra.mxu0 0.0
        %3833 = vmatpush.msra.mxu0 0.0
        %3834 = vmatpush.msra.mxu0 0.0
        %3835 = vmatpush.msra.mxu0 0.0
        %3836 = vmatpush.msra.mxu0 %v3806
        %3837 = vmatpush.msra.mxu0 %v3802
        %3838 = vmatpush.msra.mxu0 %v3798
        %3839 = vmatpush.msra.mxu0 %v3794
        %3840 = vmatpush.msra.mxu0 %v3790
        %3841 = vmatpush.msra.mxu0 %v3786
        %3842 = vmatpush.msra.mxu0 %v3782
        %3843 = vmatpush.msra.mxu0 %v3778
        %3844 = vmatpush.msra.mxu0 %v3774
        %3845 = vmatpush.msra.mxu0 %v3770
        %3846 = vmatpush.msra.mxu0 %v3766
        %3847 = vmatpush.msra.mxu0 %v3762
        %3848 = vmatmul.f32.gmra.mxu0 %v3810
        %v3849 = vpop.f32.mrf.mxu0
        %v3850 = vadd.f32 0.0, %v3849
        %3851 = vdwg.mxu0
        %3852 = vmatpush.msra.mxu0 0.0
        %3853 = vmatpush.msra.mxu0 0.0
        %3854 = vmatpush.msra.mxu0 0.0
        %3855 = vmatpush.msra.mxu0 0.0
        %3856 = vmatpush.msra.mxu0 %v3807
        %3857 = vmatpush.msra.mxu0 %v3803
        %3858 = vmatpush.msra.mxu0 %v3799
        %3859 = vmatpush.msra.mxu0 %v3795
        %3860 = vmatpush.msra.mxu0 %v3791
        %3861 = vmatpush.msra.mxu0 %v3787
        %3862 = vmatpush.msra.mxu0 %v3783
        %3863 = vmatpush.msra.mxu0 %v3779
        %3864 = vmatpush.msra.mxu0 %v3775
        %3865 = vmatpush.msra.mxu0 %v3771
        %3866 = vmatpush.msra.mxu0 %v3767
        %3867 = vmatpush.msra.mxu0 %v3763
        %3868 = vmatmul.f32.gmra.mxu0 %v3810
        %v3869 = vpop.f32.mrf.mxu0
        %v3870 = vadd.f32 0.0, %v3869
        %3871 = vdwg.mxu0
        %3872 = vmatpush.msra.mxu0 0.0
        %3873 = vmatpush.msra.mxu0 0.0
        %3874 = vmatpush.msra.mxu0 0.0
        %3875 = vmatpush.msra.mxu0 0.0
        %3876 = vmatpush.msra.mxu0 %v3808
        %3877 = vmatpush.msra.mxu0 %v3804
        %3878 = vmatpush.msra.mxu0 %v3800
        %3879 = vmatpush.msra.mxu0 %v3796
        %3880 = vmatpush.msra.mxu0 %v3792
        %3881 = vmatpush.msra.mxu0 %v3788
        %3882 = vmatpush.msra.mxu0 %v3784
        %3883 = vmatpush.msra.mxu0 %v3780
        %3884 = vmatpush.msra.mxu0 %v3776
        %3885 = vmatpush.msra.mxu0 %v3772
        %3886 = vmatpush.msra.mxu0 %v3768
        %3887 = vmatpush.msra.mxu0 %v3764
        %3888 = vmatmul.f32.gmra.mxu0 %v3810
        %v3889 = vpop.f32.mrf.mxu0
        %v3890 = vadd.f32 0.0, %v3889
        %3891 = vdwg.mxu0
        %v3896 = vrot.slane %v3850, 7
        %v3897 = vrot.slane %v3870, 6
        %v3898 = vrot.slane %v3890, 5
        %v3899 = vsel %vm3560, %v3830, %v3896
        %v3900 = vsel %vm3562, %v3897, %v3898
        %v3901 = vsel %vm3564, %v3899, %v3900
        %v3903 = vadd.f32 %v3735, %v3901
        %v3904 = vld [vmem:[#allocation10 + $0x3] sm:$0x1]
        %v3905 = vld [vmem:[#allocation11 + $0x240] sm:$0xff]
        %v3906 = vld [vmem:[#allocation11 + $0x248] sm:$0xff]
        %v3907 = vld [vmem:[#allocation11 + $0x250] sm:$0xff]
        %v3908 = vld [vmem:[#allocation11 + $0x258] sm:$0xff]
        %v3909 = vld [vmem:[#allocation11 + $0x260] sm:$0xff]
        %v3910 = vld [vmem:[#allocation11 + $0x268] sm:$0xff]
        %v3911 = vld [vmem:[#allocation11 + $0x270] sm:$0xff]
        %v3912 = vld [vmem:[#allocation11 + $0x278] sm:$0xff]
        %v3913 = vld [vmem:[#allocation11 + $0x280] sm:$0xff]
        %v3914 = vld [vmem:[#allocation11 + $0x288] sm:$0xff]
        %v3915 = vld [vmem:[#allocation11 + $0x290] sm:$0xff]
        %v3916 = vld [vmem:[#allocation11 + $0x298] sm:$0xff]
        %v3917 = vld [vmem:[#allocation11 + $0x2a0] sm:$0xff]
        %v3918 = vld [vmem:[#allocation11 + $0x2a8] sm:$0xff]
        %v3919 = vld [vmem:[#allocation11 + $0x2b0] sm:$0xff]
        %v3920 = vld [vmem:[#allocation11 + $0x2b8] sm:$0xff]
        %v3921 = vld [vmem:[#allocation11 + $0x2c0] sm:$0xff]
        %v3922 = vld [vmem:[#allocation11 + $0x2c8] sm:$0xff]
        %v3923 = vld [vmem:[#allocation11 + $0x2d0] sm:$0xff]
        %v3924 = vld [vmem:[#allocation11 + $0x2d8] sm:$0xff]
        %v3925 = vld [vmem:[#allocation11 + $0x2e0] sm:$0xff]
        %v3926 = vld [vmem:[#allocation11 + $0x2e8] sm:$0xff]
        %v3927 = vld [vmem:[#allocation11 + $0x2f0] sm:$0xff]
        %v3928 = vld [vmem:[#allocation11 + $0x2f8] sm:$0xff]
        %v3929 = vunpack.c.l.bf16 %v3905
        %v3930 = vunpack.c.h.bf16 %v3905
        %v3931 = vunpack.c.l.bf16 %v3906
        %v3932 = vunpack.c.h.bf16 %v3906
        %v3933 = vunpack.c.l.bf16 %v3907
        %v3934 = vunpack.c.h.bf16 %v3907
        %v3935 = vunpack.c.l.bf16 %v3908
        %v3936 = vunpack.c.h.bf16 %v3908
        %v3937 = vunpack.c.l.bf16 %v3909
        %v3938 = vunpack.c.h.bf16 %v3909
        %v3939 = vunpack.c.l.bf16 %v3910
        %v3940 = vunpack.c.h.bf16 %v3910
        %v3941 = vunpack.c.l.bf16 %v3911
        %v3942 = vunpack.c.h.bf16 %v3911
        %v3943 = vunpack.c.l.bf16 %v3912
        %v3944 = vunpack.c.h.bf16 %v3912
        %v3945 = vunpack.c.l.bf16 %v3913
        %v3946 = vunpack.c.h.bf16 %v3913
        %v3947 = vunpack.c.l.bf16 %v3914
        %v3948 = vunpack.c.h.bf16 %v3914
        %v3949 = vunpack.c.l.bf16 %v3915
        %v3950 = vunpack.c.h.bf16 %v3915
        %v3951 = vunpack.c.l.bf16 %v3916
        %v3952 = vunpack.c.h.bf16 %v3916
        %v3953 = vunpack.c.l.bf16 %v3917
        %v3954 = vunpack.c.h.bf16 %v3917
        %v3955 = vunpack.c.l.bf16 %v3918
        %v3956 = vunpack.c.h.bf16 %v3918
        %v3957 = vunpack.c.l.bf16 %v3919
        %v3958 = vunpack.c.h.bf16 %v3919
        %v3959 = vunpack.c.l.bf16 %v3920
        %v3960 = vunpack.c.h.bf16 %v3920
        %v3961 = vunpack.c.l.bf16 %v3921
        %v3962 = vunpack.c.h.bf16 %v3921
        %v3963 = vunpack.c.l.bf16 %v3922
        %v3964 = vunpack.c.h.bf16 %v3922
        %v3965 = vunpack.c.l.bf16 %v3923
        %v3966 = vunpack.c.h.bf16 %v3923
        %v3967 = vunpack.c.l.bf16 %v3924
        %v3968 = vunpack.c.h.bf16 %v3924
        %v3969 = vunpack.c.l.bf16 %v3925
        %v3970 = vunpack.c.h.bf16 %v3925
        %v3971 = vunpack.c.l.bf16 %v3926
        %v3972 = vunpack.c.h.bf16 %v3926
        %v3973 = vunpack.c.l.bf16 %v3927
        %v3974 = vunpack.c.h.bf16 %v3927
        %v3975 = vunpack.c.l.bf16 %v3928
        %v3976 = vunpack.c.h.bf16 %v3928
        %v3978 = vsel %vm716, %v3904, 0
        %3980 = vmatpush.msra.mxu0 0.0
        %3981 = vmatpush.msra.mxu0 0.0
        %3982 = vmatpush.msra.mxu0 0.0
        %3983 = vmatpush.msra.mxu0 0.0
        %3984 = vmatpush.msra.mxu0 %v3973
        %3985 = vmatpush.msra.mxu0 %v3969
        %3986 = vmatpush.msra.mxu0 %v3965
        %3987 = vmatpush.msra.mxu0 %v3961
        %3988 = vmatpush.msra.mxu0 %v3957
        %3989 = vmatpush.msra.mxu0 %v3953
        %3990 = vmatpush.msra.mxu0 %v3949
        %3991 = vmatpush.msra.mxu0 %v3945
        %3992 = vmatpush.msra.mxu0 %v3941
        %3993 = vmatpush.msra.mxu0 %v3937
        %3994 = vmatpush.msra.mxu0 %v3933
        %3995 = vmatpush.msra.mxu0 %v3929
        %3996 = vmatmul.f32.gmra.mxu0 %v3978
        %v3997 = vpop.f32.mrf.mxu0
        %v3998 = vadd.f32 0.0, %v3997
        %3999 = vdwg.mxu0
        %4000 = vmatpush.msra.mxu0 0.0
        %4001 = vmatpush.msra.mxu0 0.0
        %4002 = vmatpush.msra.mxu0 0.0
        %4003 = vmatpush.msra.mxu0 0.0
        %4004 = vmatpush.msra.mxu0 %v3974
        %4005 = vmatpush.msra.mxu0 %v3970
        %4006 = vmatpush.msra.mxu0 %v3966
        %4007 = vmatpush.msra.mxu0 %v3962
        %4008 = vmatpush.msra.mxu0 %v3958
        %4009 = vmatpush.msra.mxu0 %v3954
        %4010 = vmatpush.msra.mxu0 %v3950
        %4011 = vmatpush.msra.mxu0 %v3946
        %4012 = vmatpush.msra.mxu0 %v3942
        %4013 = vmatpush.msra.mxu0 %v3938
        %4014 = vmatpush.msra.mxu0 %v3934
        %4015 = vmatpush.msra.mxu0 %v3930
        %4016 = vmatmul.f32.gmra.mxu0 %v3978
        %v4017 = vpop.f32.mrf.mxu0
        %v4018 = vadd.f32 0.0, %v4017
        %4019 = vdwg.mxu0
        %4020 = vmatpush.msra.mxu0 0.0
        %4021 = vmatpush.msra.mxu0 0.0
        %4022 = vmatpush.msra.mxu0 0.0
        %4023 = vmatpush.msra.mxu0 0.0
        %4024 = vmatpush.msra.mxu0 %v3975
        %4025 = vmatpush.msra.mxu0 %v3971
        %4026 = vmatpush.msra.mxu0 %v3967
        %4027 = vmatpush.msra.mxu0 %v3963
        %4028 = vmatpush.msra.mxu0 %v3959
        %4029 = vmatpush.msra.mxu0 %v3955
        %4030 = vmatpush.msra.mxu0 %v3951
        %4031 = vmatpush.msra.mxu0 %v3947
        %4032 = vmatpush.msra.mxu0 %v3943
        %4033 = vmatpush.msra.mxu0 %v3939
        %4034 = vmatpush.msra.mxu0 %v3935
        %4035 = vmatpush.msra.mxu0 %v3931
        %4036 = vmatmul.f32.gmra.mxu0 %v3978
        %v4037 = vpop.f32.mrf.mxu0
        %v4038 = vadd.f32 0.0, %v4037
        %4039 = vdwg.mxu0
        %4040 = vmatpush.msra.mxu0 0.0
        %4041 = vmatpush.msra.mxu0 0.0
        %4042 = vmatpush.msra.mxu0 0.0
        %4043 = vmatpush.msra.mxu0 0.0
        %4044 = vmatpush.msra.mxu0 %v3976
        %4045 = vmatpush.msra.mxu0 %v3972
        %4046 = vmatpush.msra.mxu0 %v3968
        %4047 = vmatpush.msra.mxu0 %v3964
        %4048 = vmatpush.msra.mxu0 %v3960
        %4049 = vmatpush.msra.mxu0 %v3956
        %4050 = vmatpush.msra.mxu0 %v3952
        %4051 = vmatpush.msra.mxu0 %v3948
        %4052 = vmatpush.msra.mxu0 %v3944
        %4053 = vmatpush.msra.mxu0 %v3940
        %4054 = vmatpush.msra.mxu0 %v3936
        %4055 = vmatpush.msra.mxu0 %v3932
        %4056 = vmatmul.f32.gmra.mxu0 %v3978
        %v4057 = vpop.f32.mrf.mxu0
        %v4058 = vadd.f32 0.0, %v4057
        %4059 = vdwg.mxu0
        %v4064 = vrot.slane %v4018, 7
        %v4065 = vrot.slane %v4038, 6
        %v4066 = vrot.slane %v4058, 5
        %v4067 = vsel %vm3560, %v3998, %v4064
        %v4068 = vsel %vm3562, %v4065, %v4066
        %v4069 = vsel %vm3564, %v4067, %v4068
        %v4071 = vadd.f32 %v3903, %v4069
        %v4072 = vld [vmem:[#allocation10 + $0x4] sm:$0x1]
        %v4073 = vld [vmem:[#allocation11 + $0x300] sm:$0xff]
        %v4074 = vld [vmem:[#allocation11 + $0x308] sm:$0xff]
        %v4075 = vld [vmem:[#allocation11 + $0x310] sm:$0xff]
        %v4076 = vld [vmem:[#allocation11 + $0x318] sm:$0xff]
        %v4077 = vld [vmem:[#allocation11 + $0x320] sm:$0xff]
        %v4078 = vld [vmem:[#allocation11 + $0x328] sm:$0xff]
        %v4079 = vld [vmem:[#allocation11 + $0x330] sm:$0xff]
        %v4080 = vld [vmem:[#allocation11 + $0x338] sm:$0xff]
        %v4081 = vld [vmem:[#allocation11 + $0x340] sm:$0xff]
        %v4082 = vld [vmem:[#allocation11 + $0x348] sm:$0xff]
        %v4083 = vld [vmem:[#allocation11 + $0x350] sm:$0xff]
        %v4084 = vld [vmem:[#allocation11 + $0x358] sm:$0xff]
        %v4085 = vld [vmem:[#allocation11 + $0x360] sm:$0xff]
        %v4086 = vld [vmem:[#allocation11 + $0x368] sm:$0xff]
        %v4087 = vld [vmem:[#allocation11 + $0x370] sm:$0xff]
        %v4088 = vld [vmem:[#allocation11 + $0x378] sm:$0xff]
        %v4089 = vld [vmem:[#allocation11 + $0x380] sm:$0xff]
        %v4090 = vld [vmem:[#allocation11 + $0x388] sm:$0xff]
        %v4091 = vld [vmem:[#allocation11 + $0x390] sm:$0xff]
        %v4092 = vld [vmem:[#allocation11 + $0x398] sm:$0xff]
        %v4093 = vld [vmem:[#allocation11 + $0x3a0] sm:$0xff]
        %v4094 = vld [vmem:[#allocation11 + $0x3a8] sm:$0xff]
        %v4095 = vld [vmem:[#allocation11 + $0x3b0] sm:$0xff]
        %v4096 = vld [vmem:[#allocation11 + $0x3b8] sm:$0xff]
        %v4097 = vunpack.c.l.bf16 %v4073
        %v4098 = vunpack.c.h.bf16 %v4073
        %v4099 = vunpack.c.l.bf16 %v4074
        %v4100 = vunpack.c.h.bf16 %v4074
        %v4101 = vunpack.c.l.bf16 %v4075
        %v4102 = vunpack.c.h.bf16 %v4075
        %v4103 = vunpack.c.l.bf16 %v4076
        %v4104 = vunpack.c.h.bf16 %v4076
        %v4105 = vunpack.c.l.bf16 %v4077
        %v4106 = vunpack.c.h.bf16 %v4077
        %v4107 = vunpack.c.l.bf16 %v4078
        %v4108 = vunpack.c.h.bf16 %v4078
        %v4109 = vunpack.c.l.bf16 %v4079
        %v4110 = vunpack.c.h.bf16 %v4079
        %v4111 = vunpack.c.l.bf16 %v4080
        %v4112 = vunpack.c.h.bf16 %v4080
        %v4113 = vunpack.c.l.bf16 %v4081
        %v4114 = vunpack.c.h.bf16 %v4081
        %v4115 = vunpack.c.l.bf16 %v4082
        %v4116 = vunpack.c.h.bf16 %v4082
        %v4117 = vunpack.c.l.bf16 %v4083
        %v4118 = vunpack.c.h.bf16 %v4083
        %v4119 = vunpack.c.l.bf16 %v4084
        %v4120 = vunpack.c.h.bf16 %v4084
        %v4121 = vunpack.c.l.bf16 %v4085
        %v4122 = vunpack.c.h.bf16 %v4085
        %v4123 = vunpack.c.l.bf16 %v4086
        %v4124 = vunpack.c.h.bf16 %v4086
        %v4125 = vunpack.c.l.bf16 %v4087
        %v4126 = vunpack.c.h.bf16 %v4087
        %v4127 = vunpack.c.l.bf16 %v4088
        %v4128 = vunpack.c.h.bf16 %v4088
        %v4129 = vunpack.c.l.bf16 %v4089
        %v4130 = vunpack.c.h.bf16 %v4089
        %v4131 = vunpack.c.l.bf16 %v4090
        %v4132 = vunpack.c.h.bf16 %v4090
        %v4133 = vunpack.c.l.bf16 %v4091
        %v4134 = vunpack.c.h.bf16 %v4091
        %v4135 = vunpack.c.l.bf16 %v4092
        %v4136 = vunpack.c.h.bf16 %v4092
        %v4137 = vunpack.c.l.bf16 %v4093
        %v4138 = vunpack.c.h.bf16 %v4093
        %v4139 = vunpack.c.l.bf16 %v4094
        %v4140 = vunpack.c.h.bf16 %v4094
        %v4141 = vunpack.c.l.bf16 %v4095
        %v4142 = vunpack.c.h.bf16 %v4095
        %v4143 = vunpack.c.l.bf16 %v4096
        %v4144 = vunpack.c.h.bf16 %v4096
        %v4146 = vsel %vm716, %v4072, 0
        %4148 = vmatpush.msra.mxu0 0.0
        %4149 = vmatpush.msra.mxu0 0.0
        %4150 = vmatpush.msra.mxu0 0.0
        %4151 = vmatpush.msra.mxu0 0.0
        %4152 = vmatpush.msra.mxu0 %v4141
        %4153 = vmatpush.msra.mxu0 %v4137
        %4154 = vmatpush.msra.mxu0 %v4133
        %4155 = vmatpush.msra.mxu0 %v4129
        %4156 = vmatpush.msra.mxu0 %v4125
        %4157 = vmatpush.msra.mxu0 %v4121
        %4158 = vmatpush.msra.mxu0 %v4117
        %4159 = vmatpush.msra.mxu0 %v4113
        %4160 = vmatpush.msra.mxu0 %v4109
        %4161 = vmatpush.msra.mxu0 %v4105
        %4162 = vmatpush.msra.mxu0 %v4101
        %4163 = vmatpush.msra.mxu0 %v4097
        %4164 = vmatmul.f32.gmra.mxu0 %v4146
        %v4165 = vpop.f32.mrf.mxu0
        %v4166 = vadd.f32 0.0, %v4165
        %4167 = vdwg.mxu0
        %4168 = vmatpush.msra.mxu0 0.0
        %4169 = vmatpush.msra.mxu0 0.0
        %4170 = vmatpush.msra.mxu0 0.0
        %4171 = vmatpush.msra.mxu0 0.0
        %4172 = vmatpush.msra.mxu0 %v4142
        %4173 = vmatpush.msra.mxu0 %v4138
        %4174 = vmatpush.msra.mxu0 %v4134
        %4175 = vmatpush.msra.mxu0 %v4130
        %4176 = vmatpush.msra.mxu0 %v4126
        %4177 = vmatpush.msra.mxu0 %v4122
        %4178 = vmatpush.msra.mxu0 %v4118
        %4179 = vmatpush.msra.mxu0 %v4114
        %4180 = vmatpush.msra.mxu0 %v4110
        %4181 = vmatpush.msra.mxu0 %v4106
        %4182 = vmatpush.msra.mxu0 %v4102
        %4183 = vmatpush.msra.mxu0 %v4098
        %4184 = vmatmul.f32.gmra.mxu0 %v4146
        %v4185 = vpop.f32.mrf.mxu0
        %v4186 = vadd.f32 0.0, %v4185
        %4187 = vdwg.mxu0
        %4188 = vmatpush.msra.mxu0 0.0
        %4189 = vmatpush.msra.mxu0 0.0
        %4190 = vmatpush.msra.mxu0 0.0
        %4191 = vmatpush.msra.mxu0 0.0
        %4192 = vmatpush.msra.mxu0 %v4143
        %4193 = vmatpush.msra.mxu0 %v4139
        %4194 = vmatpush.msra.mxu0 %v4135
        %4195 = vmatpush.msra.mxu0 %v4131
        %4196 = vmatpush.msra.mxu0 %v4127
        %4197 = vmatpush.msra.mxu0 %v4123
        %4198 = vmatpush.msra.mxu0 %v4119
        %4199 = vmatpush.msra.mxu0 %v4115
        %4200 = vmatpush.msra.mxu0 %v4111
        %4201 = vmatpush.msra.mxu0 %v4107
        %4202 = vmatpush.msra.mxu0 %v4103
        %4203 = vmatpush.msra.mxu0 %v4099
        %4204 = vmatmul.f32.gmra.mxu0 %v4146
        %v4205 = vpop.f32.mrf.mxu0
        %v4206 = vadd.f32 0.0, %v4205
        %4207 = vdwg.mxu0
        %4208 = vmatpush.msra.mxu0 0.0
        %4209 = vmatpush.msra.mxu0 0.0
        %4210 = vmatpush.msra.mxu0 0.0
        %4211 = vmatpush.msra.mxu0 0.0
        %4212 = vmatpush.msra.mxu0 %v4144
        %4213 = vmatpush.msra.mxu0 %v4140
        %4214 = vmatpush.msra.mxu0 %v4136
        %4215 = vmatpush.msra.mxu0 %v4132
        %4216 = vmatpush.msra.mxu0 %v4128
        %4217 = vmatpush.msra.mxu0 %v4124
        %4218 = vmatpush.msra.mxu0 %v4120
        %4219 = vmatpush.msra.mxu0 %v4116
        %4220 = vmatpush.msra.mxu0 %v4112
        %4221 = vmatpush.msra.mxu0 %v4108
        %4222 = vmatpush.msra.mxu0 %v4104
        %4223 = vmatpush.msra.mxu0 %v4100
        %4224 = vmatmul.f32.gmra.mxu0 %v4146
        %v4225 = vpop.f32.mrf.mxu0
        %v4226 = vadd.f32 0.0, %v4225
        %4227 = vdwg.mxu0
        %v4232 = vrot.slane %v4186, 7
        %v4233 = vrot.slane %v4206, 6
        %v4234 = vrot.slane %v4226, 5
        %v4235 = vsel %vm3560, %v4166, %v4232
        %v4236 = vsel %vm3562, %v4233, %v4234
        %v4237 = vsel %vm3564, %v4235, %v4236
        %v4239 = vadd.f32 %v4071, %v4237
        %v4240 = vld [vmem:[#allocation10 + $0x5] sm:$0x1]
        %v4241 = vld [vmem:[#allocation11 + $0x3c0] sm:$0xff]
        %v4242 = vld [vmem:[#allocation11 + $0x3c8] sm:$0xff]
        %v4243 = vld [vmem:[#allocation11 + $0x3d0] sm:$0xff]
        %v4244 = vld [vmem:[#allocation11 + $0x3d8] sm:$0xff]
        %v4245 = vld [vmem:[#allocation11 + $0x3e0] sm:$0xff]
        %v4246 = vld [vmem:[#allocation11 + $0x3e8] sm:$0xff]
        %v4247 = vld [vmem:[#allocation11 + $0x3f0] sm:$0xff]
        %v4248 = vld [vmem:[#allocation11 + $0x3f8] sm:$0xff]
        %v4249 = vld [vmem:[#allocation11 + $0x400] sm:$0xff]
        %v4250 = vld [vmem:[#allocation11 + $0x408] sm:$0xff]
        %v4251 = vld [vmem:[#allocation11 + $0x410] sm:$0xff]
        %v4252 = vld [vmem:[#allocation11 + $0x418] sm:$0xff]
        %v4253 = vld [vmem:[#allocation11 + $0x420] sm:$0xff]
        %v4254 = vld [vmem:[#allocation11 + $0x428] sm:$0xff]
        %v4255 = vld [vmem:[#allocation11 + $0x430] sm:$0xff]
        %v4256 = vld [vmem:[#allocation11 + $0x438] sm:$0xff]
        %v4257 = vld [vmem:[#allocation11 + $0x440] sm:$0xff]
        %v4258 = vld [vmem:[#allocation11 + $0x448] sm:$0xff]
        %v4259 = vld [vmem:[#allocation11 + $0x450] sm:$0xff]
        %v4260 = vld [vmem:[#allocation11 + $0x458] sm:$0xff]
        %v4261 = vld [vmem:[#allocation11 + $0x460] sm:$0xff]
        %v4262 = vld [vmem:[#allocation11 + $0x468] sm:$0xff]
        %v4263 = vld [vmem:[#allocation11 + $0x470] sm:$0xff]
        %v4264 = vld [vmem:[#allocation11 + $0x478] sm:$0xff]
        %v4265 = vunpack.c.l.bf16 %v4241
        %v4266 = vunpack.c.h.bf16 %v4241
        %v4267 = vunpack.c.l.bf16 %v4242
        %v4268 = vunpack.c.h.bf16 %v4242
        %v4269 = vunpack.c.l.bf16 %v4243
        %v4270 = vunpack.c.h.bf16 %v4243
        %v4271 = vunpack.c.l.bf16 %v4244
        %v4272 = vunpack.c.h.bf16 %v4244
        %v4273 = vunpack.c.l.bf16 %v4245
        %v4274 = vunpack.c.h.bf16 %v4245
        %v4275 = vunpack.c.l.bf16 %v4246
        %v4276 = vunpack.c.h.bf16 %v4246
        %v4277 = vunpack.c.l.bf16 %v4247
        %v4278 = vunpack.c.h.bf16 %v4247
        %v4279 = vunpack.c.l.bf16 %v4248
        %v4280 = vunpack.c.h.bf16 %v4248
        %v4281 = vunpack.c.l.bf16 %v4249
        %v4282 = vunpack.c.h.bf16 %v4249
        %v4283 = vunpack.c.l.bf16 %v4250
        %v4284 = vunpack.c.h.bf16 %v4250
        %v4285 = vunpack.c.l.bf16 %v4251
        %v4286 = vunpack.c.h.bf16 %v4251
        %v4287 = vunpack.c.l.bf16 %v4252
        %v4288 = vunpack.c.h.bf16 %v4252
        %v4289 = vunpack.c.l.bf16 %v4253
        %v4290 = vunpack.c.h.bf16 %v4253
        %v4291 = vunpack.c.l.bf16 %v4254
        %v4292 = vunpack.c.h.bf16 %v4254
        %v4293 = vunpack.c.l.bf16 %v4255
        %v4294 = vunpack.c.h.bf16 %v4255
        %v4295 = vunpack.c.l.bf16 %v4256
        %v4296 = vunpack.c.h.bf16 %v4256
        %v4297 = vunpack.c.l.bf16 %v4257
        %v4298 = vunpack.c.h.bf16 %v4257
        %v4299 = vunpack.c.l.bf16 %v4258
        %v4300 = vunpack.c.h.bf16 %v4258
        %v4301 = vunpack.c.l.bf16 %v4259
        %v4302 = vunpack.c.h.bf16 %v4259
        %v4303 = vunpack.c.l.bf16 %v4260
        %v4304 = vunpack.c.h.bf16 %v4260
        %v4305 = vunpack.c.l.bf16 %v4261
        %v4306 = vunpack.c.h.bf16 %v4261
        %v4307 = vunpack.c.l.bf16 %v4262
        %v4308 = vunpack.c.h.bf16 %v4262
        %v4309 = vunpack.c.l.bf16 %v4263
        %v4310 = vunpack.c.h.bf16 %v4263
        %v4311 = vunpack.c.l.bf16 %v4264
        %v4312 = vunpack.c.h.bf16 %v4264
        %v4314 = vsel %vm716, %v4240, 0
        %4316 = vmatpush.msra.mxu0 0.0
        %4317 = vmatpush.msra.mxu0 0.0
        %4318 = vmatpush.msra.mxu0 0.0
        %4319 = vmatpush.msra.mxu0 0.0
        %4320 = vmatpush.msra.mxu0 %v4309
        %4321 = vmatpush.msra.mxu0 %v4305
        %4322 = vmatpush.msra.mxu0 %v4301
        %4323 = vmatpush.msra.mxu0 %v4297
        %4324 = vmatpush.msra.mxu0 %v4293
        %4325 = vmatpush.msra.mxu0 %v4289
        %4326 = vmatpush.msra.mxu0 %v4285
        %4327 = vmatpush.msra.mxu0 %v4281
        %4328 = vmatpush.msra.mxu0 %v4277
        %4329 = vmatpush.msra.mxu0 %v4273
        %4330 = vmatpush.msra.mxu0 %v4269
        %4331 = vmatpush.msra.mxu0 %v4265
        %4332 = vmatmul.f32.gmra.mxu0 %v4314
        %v4333 = vpop.f32.mrf.mxu0
        %v4334 = vadd.f32 0.0, %v4333
        %4335 = vdwg.mxu0
        %4336 = vmatpush.msra.mxu0 0.0
        %4337 = vmatpush.msra.mxu0 0.0
        %4338 = vmatpush.msra.mxu0 0.0
        %4339 = vmatpush.msra.mxu0 0.0
        %4340 = vmatpush.msra.mxu0 %v4310
        %4341 = vmatpush.msra.mxu0 %v4306
        %4342 = vmatpush.msra.mxu0 %v4302
        %4343 = vmatpush.msra.mxu0 %v4298
        %4344 = vmatpush.msra.mxu0 %v4294
        %4345 = vmatpush.msra.mxu0 %v4290
        %4346 = vmatpush.msra.mxu0 %v4286
        %4347 = vmatpush.msra.mxu0 %v4282
        %4348 = vmatpush.msra.mxu0 %v4278
        %4349 = vmatpush.msra.mxu0 %v4274
        %4350 = vmatpush.msra.mxu0 %v4270
        %4351 = vmatpush.msra.mxu0 %v4266
        %4352 = vmatmul.f32.gmra.mxu0 %v4314
        %v4353 = vpop.f32.mrf.mxu0
        %v4354 = vadd.f32 0.0, %v4353
        %4355 = vdwg.mxu0
        %4356 = vmatpush.msra.mxu0 0.0
        %4357 = vmatpush.msra.mxu0 0.0
        %4358 = vmatpush.msra.mxu0 0.0
        %4359 = vmatpush.msra.mxu0 0.0
        %4360 = vmatpush.msra.mxu0 %v4311
        %4361 = vmatpush.msra.mxu0 %v4307
        %4362 = vmatpush.msra.mxu0 %v4303
        %4363 = vmatpush.msra.mxu0 %v4299
        %4364 = vmatpush.msra.mxu0 %v4295
        %4365 = vmatpush.msra.mxu0 %v4291
        %4366 = vmatpush.msra.mxu0 %v4287
        %4367 = vmatpush.msra.mxu0 %v4283
        %4368 = vmatpush.msra.mxu0 %v4279
        %4369 = vmatpush.msra.mxu0 %v4275
        %4370 = vmatpush.msra.mxu0 %v4271
        %4371 = vmatpush.msra.mxu0 %v4267
        %4372 = vmatmul.f32.gmra.mxu0 %v4314
        %v4373 = vpop.f32.mrf.mxu0
        %v4374 = vadd.f32 0.0, %v4373
        %4375 = vdwg.mxu0
        %4376 = vmatpush.msra.mxu0 0.0
        %4377 = vmatpush.msra.mxu0 0.0
        %4378 = vmatpush.msra.mxu0 0.0
        %4379 = vmatpush.msra.mxu0 0.0
        %4380 = vmatpush.msra.mxu0 %v4312
        %4381 = vmatpush.msra.mxu0 %v4308
        %4382 = vmatpush.msra.mxu0 %v4304
        %4383 = vmatpush.msra.mxu0 %v4300
        %4384 = vmatpush.msra.mxu0 %v4296
        %4385 = vmatpush.msra.mxu0 %v4292
        %4386 = vmatpush.msra.mxu0 %v4288
        %4387 = vmatpush.msra.mxu0 %v4284
        %4388 = vmatpush.msra.mxu0 %v4280
        %4389 = vmatpush.msra.mxu0 %v4276
        %4390 = vmatpush.msra.mxu0 %v4272
        %4391 = vmatpush.msra.mxu0 %v4268
        %4392 = vmatmul.f32.gmra.mxu0 %v4314
        %v4393 = vpop.f32.mrf.mxu0
        %v4394 = vadd.f32 0.0, %v4393
        %4395 = vdwg.mxu0
        %v4400 = vrot.slane %v4354, 7
        %v4401 = vrot.slane %v4374, 6
        %v4402 = vrot.slane %v4394, 5
        %v4403 = vsel %vm3560, %v4334, %v4400
        %v4404 = vsel %vm3562, %v4401, %v4402
        %v4405 = vsel %vm3564, %v4403, %v4404
        %v4407 = vadd.f32 %v4239, %v4405
        %v4408 = vmax.f32 %v4407, 0.0
        %v4409 = vld [vmem:[%s11] sm:$0xf]
        %v4410 = vld [vmem:[%s11 + $0x4] sm:$0xf]
        %v4411 = vld [vmem:[%s11 + $0x8] sm:$0xf]
        %v4412 = vld [vmem:[%s11 + $0xc] sm:$0xf]
        %v4413 = vld [vmem:[%s11 + $0x10] sm:$0xf]
        %v4414 = vld [vmem:[%s11 + $0x14] sm:$0xf]
        %v4415 = vld [vmem:[%s11 + $0x18] sm:$0xf]
        %v4416 = vld [vmem:[%s11 + $0x1c] sm:$0xf]
        %v4417 = vld [vmem:[%s11 + $0x20] sm:$0xf]
        %v4418 = vld [vmem:[%s11 + $0x24] sm:$0xf]
        %v4419 = vld [vmem:[%s11 + $0x28] sm:$0xf]
        %v4420 = vld [vmem:[%s11 + $0x2c] sm:$0xf]
        %v4421 = vld [vmem:[%s11 + $0x30] sm:$0xf]
        %v4422 = vld [vmem:[%s11 + $0x34] sm:$0xf]
        %v4423 = vld [vmem:[%s11 + $0x38] sm:$0xf]
        %v4424 = vld [vmem:[%s11 + $0x3c] sm:$0xf]
        %v4425 = vld [vmem:[%s11 + $0x40] sm:$0xf]
        %v4426 = vld [vmem:[%s11 + $0x44] sm:$0xf]
        %v4427 = vld [vmem:[%s11 + $0x48] sm:$0xf]
        %v4428 = vld [vmem:[%s11 + $0x4c] sm:$0xf]
        %v4429 = vld [vmem:[%s11 + $0x50] sm:$0xf]
        %v4430 = vld [vmem:[%s11 + $0x54] sm:$0xf]
        %v4431 = vld [vmem:[%s11 + $0x58] sm:$0xf]
        %v4432 = vld [vmem:[%s11 + $0x5c] sm:$0xf]
        %v4433 = vld [vmem:[%s11 + $0x60] sm:$0xf]
        %v4434 = vld [vmem:[%s11 + $0x64] sm:$0xf]
        %v4435 = vld [vmem:[%s11 + $0x68] sm:$0xf]
        %v4436 = vld [vmem:[%s11 + $0x6c] sm:$0xf]
        %v4437 = vld [vmem:[%s11 + $0x70] sm:$0xf]
        %v4438 = vld [vmem:[%s11 + $0x74] sm:$0xf]
        %v4439 = vld [vmem:[%s11 + $0x78] sm:$0xf]
        %v4440 = vld [vmem:[%s11 + $0x7c] sm:$0xf]
        %v4441 = vld [vmem:[%s11 + $0x80] sm:$0xf]
        %v4442 = vld [vmem:[%s11 + $0x84] sm:$0xf]
        %v4443 = vld [vmem:[%s11 + $0x88] sm:$0xf]
        %v4444 = vld [vmem:[%s11 + $0x8c] sm:$0xf]
        %v4445 = vld [vmem:[%s11 + $0x90] sm:$0xf]
        %v4446 = vld [vmem:[%s11 + $0x94] sm:$0xf]
        %v4447 = vld [vmem:[%s11 + $0x98] sm:$0xf]
        %v4448 = vld [vmem:[%s11 + $0x9c] sm:$0xf]
        %v4449 = vld [vmem:[%s11 + $0xa0] sm:$0xf]
        %v4450 = vld [vmem:[%s11 + $0xa4] sm:$0xf]
        %v4451 = vld [vmem:[%s11 + $0xa8] sm:$0xf]
        %v4452 = vld [vmem:[%s11 + $0xac] sm:$0xf]
        %v4453 = vld [vmem:[%s11 + $0xb0] sm:$0xf]
        %v4454 = vld [vmem:[%s11 + $0xb4] sm:$0xf]
        %v4455 = vld [vmem:[%s11 + $0xb8] sm:$0xf]
        %v4456 = vld [vmem:[%s11 + $0xbc] sm:$0xf]
        %v4457 = vld [vmem:[%s11 + $0xc0] sm:$0xf]
        %v4458 = vld [vmem:[%s11 + $0xc4] sm:$0xf]
        %v4459 = vld [vmem:[%s11 + $0xc8] sm:$0xf]
        %v4460 = vld [vmem:[%s11 + $0xcc] sm:$0xf]
        %v4461 = vld [vmem:[%s11 + $0xd0] sm:$0xf]
        %v4462 = vld [vmem:[%s11 + $0xd4] sm:$0xf]
        %v4463 = vld [vmem:[%s11 + $0xd8] sm:$0xf]
        %v4464 = vld [vmem:[%s11 + $0xdc] sm:$0xf]
        %v4465 = vld [vmem:[%s11 + $0xe0] sm:$0xf]
        %v4466 = vld [vmem:[%s11 + $0xe4] sm:$0xf]
        %v4467 = vld [vmem:[%s11 + $0xe8] sm:$0xf]
        %v4468 = vld [vmem:[%s11 + $0xec] sm:$0xf]
        %v4469 = vld [vmem:[%s11 + $0xf0] sm:$0xf]
        %v4470 = vld [vmem:[%s11 + $0xf4] sm:$0xf]
        %v4471 = vld [vmem:[%s11 + $0xf8] sm:$0xf]
        %v4472 = vld [vmem:[%s11 + $0xfc] sm:$0xf]
        %v4473 = vunpack.c.l.bf16 %v4409
        %v4474 = vunpack.c.l.bf16 %v4410
        %v4475 = vunpack.c.l.bf16 %v4411
        %v4476 = vunpack.c.l.bf16 %v4412
        %v4477 = vunpack.c.l.bf16 %v4413
        %v4478 = vunpack.c.l.bf16 %v4414
        %v4479 = vunpack.c.l.bf16 %v4415
        %v4480 = vunpack.c.l.bf16 %v4416
        %v4481 = vunpack.c.l.bf16 %v4417
        %v4482 = vunpack.c.l.bf16 %v4418
        %v4483 = vunpack.c.l.bf16 %v4419
        %v4484 = vunpack.c.l.bf16 %v4420
        %v4485 = vunpack.c.l.bf16 %v4421
        %v4486 = vunpack.c.l.bf16 %v4422
        %v4487 = vunpack.c.l.bf16 %v4423
        %v4488 = vunpack.c.l.bf16 %v4424
        %v4489 = vunpack.c.l.bf16 %v4425
        %v4490 = vunpack.c.l.bf16 %v4426
        %v4491 = vunpack.c.l.bf16 %v4427
        %v4492 = vunpack.c.l.bf16 %v4428
        %v4493 = vunpack.c.l.bf16 %v4429
        %v4494 = vunpack.c.l.bf16 %v4430
        %v4495 = vunpack.c.l.bf16 %v4431
        %v4496 = vunpack.c.l.bf16 %v4432
        %v4497 = vunpack.c.l.bf16 %v4433
        %v4498 = vunpack.c.l.bf16 %v4434
        %v4499 = vunpack.c.l.bf16 %v4435
        %v4500 = vunpack.c.l.bf16 %v4436
        %v4501 = vunpack.c.l.bf16 %v4437
        %v4502 = vunpack.c.l.bf16 %v4438
        %v4503 = vunpack.c.l.bf16 %v4439
        %v4504 = vunpack.c.l.bf16 %v4440
        %v4505 = vunpack.c.l.bf16 %v4441
        %v4506 = vunpack.c.l.bf16 %v4442
        %v4507 = vunpack.c.l.bf16 %v4443
        %v4508 = vunpack.c.l.bf16 %v4444
        %v4509 = vunpack.c.l.bf16 %v4445
        %v4510 = vunpack.c.l.bf16 %v4446
        %v4511 = vunpack.c.l.bf16 %v4447
        %v4512 = vunpack.c.l.bf16 %v4448
        %v4513 = vunpack.c.l.bf16 %v4449
        %v4514 = vunpack.c.l.bf16 %v4450
        %v4515 = vunpack.c.l.bf16 %v4451
        %v4516 = vunpack.c.l.bf16 %v4452
        %v4517 = vunpack.c.l.bf16 %v4453
        %v4518 = vunpack.c.l.bf16 %v4454
        %v4519 = vunpack.c.l.bf16 %v4455
        %v4520 = vunpack.c.l.bf16 %v4456
        %v4521 = vunpack.c.l.bf16 %v4457
        %v4522 = vunpack.c.l.bf16 %v4458
        %v4523 = vunpack.c.l.bf16 %v4459
        %v4524 = vunpack.c.l.bf16 %v4460
        %v4525 = vunpack.c.l.bf16 %v4461
        %v4526 = vunpack.c.l.bf16 %v4462
        %v4527 = vunpack.c.l.bf16 %v4463
        %v4528 = vunpack.c.l.bf16 %v4464
        %v4529 = vunpack.c.l.bf16 %v4465
        %v4530 = vunpack.c.l.bf16 %v4466
        %v4531 = vunpack.c.l.bf16 %v4467
        %v4532 = vunpack.c.l.bf16 %v4468
        %v4533 = vunpack.c.l.bf16 %v4469
        %v4534 = vunpack.c.l.bf16 %v4470
        %v4535 = vunpack.c.l.bf16 %v4471
        %v4536 = vunpack.c.l.bf16 %v4472
        %v4537 = vld [vmem:[%s12] sm:$0x1]
        %v4539 = vperm.slane %v4408, 0
        %v4540 = vperm.slane %v4408, 1
        %v4541 = vperm.slane %v4408, 2
        %v4542 = vperm.slane %v4408, 3
        %4547 = vmatpush.msra.mxu0 %v4488
        %4548 = vmatpush.msra.mxu0 %v4487
        %4549 = vmatpush.msra.mxu0 %v4486
        %4550 = vmatpush.msra.mxu0 %v4485
        %4551 = vmatpush.msra.mxu0 %v4484
        %4552 = vmatpush.msra.mxu0 %v4483
        %4553 = vmatpush.msra.mxu0 %v4482
        %4554 = vmatpush.msra.mxu0 %v4481
        %4555 = vmatpush.msra.mxu0 %v4480
        %4556 = vmatpush.msra.mxu0 %v4479
        %4557 = vmatpush.msra.mxu0 %v4478
        %4558 = vmatpush.msra.mxu0 %v4477
        %4559 = vmatpush.msra.mxu0 %v4476
        %4560 = vmatpush.msra.mxu0 %v4475
        %4561 = vmatpush.msra.mxu0 %v4474
        %4562 = vmatpush.msra.mxu0 %v4473
        %4563 = vmatmul.f32.gmra.mxu0 %v4539
        %v4564 = vpop.f32.mrf.mxu0
        %v4565 = vadd.f32 %v4537, %v4564
        %4566 = vdwg.mxu0
        %4567 = vmatpush.msra.mxu0 %v4504
        %4568 = vmatpush.msra.mxu0 %v4503
        %4569 = vmatpush.msra.mxu0 %v4502
        %4570 = vmatpush.msra.mxu0 %v4501
        %4571 = vmatpush.msra.mxu0 %v4500
        %4572 = vmatpush.msra.mxu0 %v4499
        %4573 = vmatpush.msra.mxu0 %v4498
        %4574 = vmatpush.msra.mxu0 %v4497
        %4575 = vmatpush.msra.mxu0 %v4496
        %4576 = vmatpush.msra.mxu0 %v4495
        %4577 = vmatpush.msra.mxu0 %v4494
        %4578 = vmatpush.msra.mxu0 %v4493
        %4579 = vmatpush.msra.mxu0 %v4492
        %4580 = vmatpush.msra.mxu0 %v4491
        %4581 = vmatpush.msra.mxu0 %v4490
        %4582 = vmatpush.msra.mxu0 %v4489
        %4583 = vmatmul.f32.gmra.mxu0 %v4540
        %v4584 = vpop.f32.mrf.mxu0
        %v4585 = vadd.f32 %v4565, %v4584
        %4586 = vdwg.mxu0
        %4587 = vmatpush.msra.mxu0 %v4520
        %4588 = vmatpush.msra.mxu0 %v4519
        %4589 = vmatpush.msra.mxu0 %v4518
        %4590 = vmatpush.msra.mxu0 %v4517
        %4591 = vmatpush.msra.mxu0 %v4516
        %4592 = vmatpush.msra.mxu0 %v4515
        %4593 = vmatpush.msra.mxu0 %v4514
        %4594 = vmatpush.msra.mxu0 %v4513
        %4595 = vmatpush.msra.mxu0 %v4512
        %4596 = vmatpush.msra.mxu0 %v4511
        %4597 = vmatpush.msra.mxu0 %v4510
        %4598 = vmatpush.msra.mxu0 %v4509
        %4599 = vmatpush.msra.mxu0 %v4508
        %4600 = vmatpush.msra.mxu0 %v4507
        %4601 = vmatpush.msra.mxu0 %v4506
        %4602 = vmatpush.msra.mxu0 %v4505
        %4603 = vmatmul.f32.gmra.mxu0 %v4541
        %v4604 = vpop.f32.mrf.mxu0
        %v4605 = vadd.f32 %v4585, %v4604
        %4606 = vdwg.mxu0
        %4607 = vmatpush.msra.mxu0 %v4536
        %4608 = vmatpush.msra.mxu0 %v4535
        %4609 = vmatpush.msra.mxu0 %v4534
        %4610 = vmatpush.msra.mxu0 %v4533
        %4611 = vmatpush.msra.mxu0 %v4532
        %4612 = vmatpush.msra.mxu0 %v4531
        %4613 = vmatpush.msra.mxu0 %v4530
        %4614 = vmatpush.msra.mxu0 %v4529
        %4615 = vmatpush.msra.mxu0 %v4528
        %4616 = vmatpush.msra.mxu0 %v4527
        %4617 = vmatpush.msra.mxu0 %v4526
        %4618 = vmatpush.msra.mxu0 %v4525
        %4619 = vmatpush.msra.mxu0 %v4524
        %4620 = vmatpush.msra.mxu0 %v4523
        %4621 = vmatpush.msra.mxu0 %v4522
        %4622 = vmatpush.msra.mxu0 %v4521
        %4623 = vmatmul.f32.gmra.mxu0 %v4542
        %v4624 = vpop.f32.mrf.mxu0
        %v4625 = vadd.f32 %v4605, %v4624
        %4626 = vdwg.mxu0
        %vm4627 = vcmask 73728
        %4628 = vst.msk [vmem:[%s406] sm:$0x1] %vm4627, %v4625
        %s4629 = sand.u32 %s292, 1
        %s4630 = scalar_lea.sflag [#allocation14], %s4629
        %s4631 = sand.u32 %s292, 1
        %s4632 = scalar_lea.vmem [#allocation13], %s4631
        // Predicated region
        $region88: #{cifarnet_forward.1} parent=67 // pred_check
          %p4633 = pneg %p302
        $region89: #{cifarnet_forward.1} parent=67 // pred_check_branch
          %4635 = sbr.rel (%p4633) target = $region91
        $region90: #{cifarnet_forward.1} parent=67 // pred_region
          %4637 = vsyncadd %s4630, 0
          %s4638 = scalar_lea.hbm %s13, %s27
          %s4640 = sshll.u32 %s4632, 4
          %s4641 = int_to_ptr.vmem [resolvable:$true] %s4640
          %s4642 = sshll.u32 %s4638, 4
          %s4643 = int_to_ptr.hbm [resolvable:$true] %s4642
          %4645 = dma.vmem_to_hbm [thread:$0]  %s4641, 16, %s4643, %s4630
        $region91: #{cifarnet_forward.1} parent=67 // pred_fallthru
          _
      $region68: #{cifarnet_forward.1} parent=5 // pred_fallthru
        _
      %p4646 = scmp.le.s32.totalorder 2, %s22
      // Predicated region
      $region92: #{cifarnet_forward.1} parent=5 // pred_check
        %p4647 = pneg %p4646
      $region93: #{cifarnet_forward.1} parent=5 // pred_check_branch
        %4649 = sbr.rel (%p4647) target = $region95
      $region94: #{cifarnet_forward.1} parent=5 // pred_region
        %s4650 = ssub.s32 %s22, 2
        // Predicated region
        $region96: #{cifarnet_forward.1} parent=94 // pred_check
          %p4651 = pneg %p308
        $region97: #{cifarnet_forward.1} parent=94 // pred_check_branch
          %4653 = sbr.rel (%p4651) target = $region99
        $region98: #{cifarnet_forward.1} parent=94 // pred_region
          %s4654 = sand.u32 %s293, 1
          %s4655 = scalar_lea.sflag [#allocation14], %s4654
          %s4656 = sand.u32 %s293, 1
          %s4657 = scalar_lea.vmem [#allocation13], %s4656
          %4659 = dma.done %s4655, 16
        $region99: #{cifarnet_forward.1} parent=94 // pred_fallthru
          _
      $region95: #{cifarnet_forward.1} parent=5 // pred_fallthru
        _
    $region6: #{cifarnet_forward.1} parent=1 // loop_footer
      %s26 = sadd.s32 1, %s22
    $region7: #{cifarnet_forward.1} parent=1 // loop_footer_branch
      %21 = sbr.rel target = $region3
    $region8: #{cifarnet_forward.1} parent=1 // loop_exit
      _
    %4660 = vsyncpa [#allocation14], 1
    %s4661 = scalar_lea.sflag [#allocation14], 1
    %4662 = vsyncpa %s4661, 1
  %4663 = vsyncmov [#allocation12]
  %s4664 = vpop.sfrf %4663
  %p4665 = scmp.eq.s32.totalorder %s4664, 0
  %p4666 = pneg %p4665
  %4668 = shalt.err (%p4666)

</llo_original>
